<compile_context>
chip_gen: v7x
topology: tpu7x:2x2x1
jax: 0.10.0
libtpu: 0.0.40
codegen_flags: <defaults>
</compile_context>

<pallas_src>
import jax
import jax.numpy as jnp
from jax.experimental import pallas as pl
from jax.experimental.pallas import tpu as pltpu

EPS = 1e-5
NEG_SLOPE = 0.2
K = 3  # conv kernel size


def _residual_block_kernel(x_ref, w1_ref, w2_ref, g1_ref, b1_ref,
                           g2_ref, b2_ref, out_ref, pad_scr):
    _, H, W, C = x_ref.shape
    Wq = pad_scr.shape[1]          # padded width, rounded up to a multiple of 8
    R = H * Wq                     # rows of the flat conv result (incl. junk cols)
    f32 = jnp.float32

    # -- refresh the zero halo only (cheap: ~2 rows + 2 cols per step).
    #    Doing it every step keeps iterations self-contained -> "parallel" is
    #    megacore-safe; the interior is overwritten below anyway.
    pad_scr[0:1, :, :] = jnp.zeros((1, Wq, C), f32)
    pad_scr[H + 1:H + 3, :, :] = jnp.zeros((2, Wq, C), f32)
    pad_scr[1:H + 1, 0:1, :] = jnp.zeros((H, 1, C), f32)
    pad_scr[1:H + 1, W + 1:W + 2, :] = jnp.zeros((H, 1, C), f32)
    # (columns >= W+2 and row H+2 only ever feed junk output columns that get
    #  sliced away, so they may hold stale data.)

    def conv3x3(w_ref):
        # Padded-width flat-slab conv: for flat output index j = h*Wq + w the
        # tap (dy, dx) is flat[dy*Wq + dx + j]; per dy the 3 dx taps are
        # row-offset slices of the same buffer, concatenated along channels,
        # giving a single (R, 3C) @ (3C, C) MXU matmul per kernel row.
        flat = pad_scr[...].reshape((H + 3) * Wq, C)
        acc = jnp.zeros((R, C), f32)
        for dy in range(K):
            base = dy * Wq
            taps = jnp.concatenate(
                [flat[base + 0:base + 0 + R, :],
                 flat[base + 1:base + 1 + R, :],
                 flat[base + 2:base + 2 + R, :]], axis=-1)
            acc = acc + jnp.dot(taps, w_ref[dy],
                                preferred_element_type=f32)
        # drop the junk columns introduced by the padded-width trick
        return acc.reshape(H, Wq, C)[:, :W, :]

    def inst_norm(v, g_ref, b_ref):
        # one-pass stats (sum + sum of squares), biased variance, and the
        # normalize + affine folded into a single scale/shift.
        inv_n = 1.0 / float(H * W)
        s = jnp.sum(jnp.sum(v, axis=0, keepdims=True), axis=1, keepdims=True)
        ss = jnp.sum(jnp.sum(v * v, axis=0, keepdims=True),
                     axis=1, keepdims=True)
        m = s * inv_n
        var = ss * inv_n - m * m
        scale = g_ref[...].reshape(1, 1, C) * jax.lax.rsqrt(var + EPS)
        shift = b_ref[...].reshape(1, 1, C) - m * scale
        return v * scale + shift

    # ---- conv1 -> IN1 -> LeakyReLU(0.2)
    pad_scr[1:H + 1, 1:W + 1, :] = x_ref[0]
    y = inst_norm(conv3x3(w1_ref), g1_ref, b1_ref)
    y = jnp.maximum(y, NEG_SLOPE * y)

    # ---- conv2 -> IN2 -> + identity   (halo is still zero this step)
    pad_scr[1:H + 1, 1:W + 1, :] = y
    z = inst_norm(conv3x3(w2_ref), g2_ref, b2_ref) + x_ref[0]

    # ---- lane-dense store: fold `pack` spatial columns into channels so the
    #      stored last dim is C*pack (=128 when pack==2) -> unmasked stores.
    pack = out_ref.shape[-1] // C
    out_ref[0] = z.reshape(H, W // pack, C * pack).astype(out_ref.dtype)


def residual_block_nhwc(x, w1, g1, b1, w2, g2, b2):
    """x: (N, H, W, 64). w*: (3, 3, Cin, Cout) HWIO. g*/b*: (64,).

    Chained residual blocks should call this NHWC entry point directly so
    activations never bounce through NCHW<->NHWC transposes between blocks.
    """
    N, H, W, C = x.shape
    x = x.astype(jnp.float32)
    Wq = ((W + 2 + 7) // 8) * 8            # scratch width, multiple of 8

    w1r = jnp.asarray(w1, jnp.float32).reshape(K, K * C, C)
    w2r = jnp.asarray(w2, jnp.float32).reshape(K, K * C, C)
    g1r = jnp.asarray(g1, jnp.float32).reshape(1, C)
    b1r = jnp.asarray(b1, jnp.float32).reshape(1, C)
    g2r = jnp.asarray(g2, jnp.float32).reshape(1, C)
    b2r = jnp.asarray(b2, jnp.float32).reshape(1, C)

    def call(pack):
        return pl.pallas_call(
            _residual_block_kernel,
            out_shape=jax.ShapeDtypeStruct((N, H, W // pack, C * pack),
                                           jnp.float32),
            grid_spec=pltpu.PrefetchScalarGridSpec(
                num_scalar_prefetch=0,
                grid=(N,),
                in_specs=[
                    pl.BlockSpec((1, H, W, C), lambda n: (n, 0, 0, 0)),
                    pl.BlockSpec((K, K * C, C), lambda n: (0, 0, 0)),
                    pl.BlockSpec((K, K * C, C), lambda n: (0, 0, 0)),
                    pl.BlockSpec((1, C), lambda n: (0, 0)),
                    pl.BlockSpec((1, C), lambda n: (0, 0)),
                    pl.BlockSpec((1, C), lambda n: (0, 0)),
                    pl.BlockSpec((1, C), lambda n: (0, 0)),
                ],
                out_specs=pl.BlockSpec((1, H, W // pack, C * pack),
                                       lambda n: (n, 0, 0, 0)),
                scratch_shapes=[pltpu.VMEM((H + 3, Wq, C), jnp.float32)],
            ),
            compiler_params=pltpu.CompilerParams(
                dimension_semantics=("parallel",),
                # Explicit VMEM budget: within v7x's 64 MiB physical VMEM and
                # ample for whole-image-per-step at SR-sized inputs.
                vmem_limit_bytes=64 * 1024 * 1024),
        )(x, w1r, w2r, g1r, b1r, g2r, b2r)

    # TODO(synk): for very large H*W (image no longer fits VMEM / to expose
    # >1 parallel step at N=1 on v7x), add a row-band grid axis with a 1-row
    # halo and two-pass cross-band instance-norm statistics.
    pack = 2 if W % 2 == 0 else 1
    try:
        out = call(pack)
    except Exception:
        if pack == 1:
            raise
        out = call(1)        # fallback if the lane-dense pack reshape
        pack = 1             # does not lower on this toolchain
    return out.reshape(N, H, W, C)


def residual_block(x_nchw, w1, g1, b1, w2, g2, b2):
    """PyTorch-layout entry point: (N, 64, H, W) -> (N, 64, H, W)."""
    x = jnp.transpose(x_nchw, (0, 2, 3, 1))
    out = residual_block_nhwc(x, w1, g1, b1, w2, g2, b2)
    return jnp.transpose(out, (0, 3, 1, 2))


def _reference(x_nchw, w1, g1, b1, w2, g2, b2):
    """Pure-JAX reference (matches PyTorch semantics) for validation."""
    x = jnp.transpose(x_nchw, (0, 2, 3, 1)).astype(jnp.float32)

    def conv(v, w):
        return jax.lax.conv_general_dilated(
            v, w, window_strides=(1, 1), padding="SAME",
            dimension_numbers=("NHWC", "HWIO", "NHWC"))

    def inorm(v, g, b):
        m = jnp.mean(v, axis=(1, 2), keepdims=True)
        var = jnp.mean((v - m) ** 2, axis=(1, 2), keepdims=True)
        return (v - m) * jax.lax.rsqrt(var + EPS) * g.reshape(1, 1, 1, -1) \
            + b.reshape(1, 1, 1, -1)

    y = inorm(conv(x, w1), g1, b1)
    y = jnp.where(y >= 0, y, NEG_SLOPE * y)
    z = inorm(conv(y, w2), g2, b2) + x
    return jnp.transpose(z, (0, 3, 1, 2))


if __name__ == "__main__":
    key = jax.random.PRNGKey(0)
    ks = jax.random.split(key, 7)

    # Module fixes channels at 64; keep batch / spatial small.
    N, C, H, W = 2, 64, 16, 16
    x = jax.random.normal(ks[0], (N, C, H, W), jnp.float32)

    # Conv weights stored HWIO = (3, 3, Cin, Cout)  (PyTorch is (Cout, Cin, 3, 3)).
    w1 = 0.05 * jax.random.normal(ks[1], (K, K, C, C), jnp.float32)
    w2 = 0.05 * jax.random.normal(ks[2], (K, K, C, C), jnp.float32)
    g1 = 1.0 + 0.1 * jax.random.normal(ks[3], (C,), jnp.float32)
    b1 = 0.1 * jax.random.normal(ks[4], (C,), jnp.float32)
    g2 = 1.0 + 0.1 * jax.random.normal(ks[5], (C,), jnp.float32)
    b2 = 0.1 * jax.random.normal(ks[6], (C,), jnp.float32)

    out = residual_block(x, w1, g1, b1, w2, g2, b2)
    out = jax.block_until_ready(out)

    ref = _reference(x, w1, g1, b1, w2, g2, b2)
    assert out.shape == (N, C, H, W) and out.dtype == jnp.float32
    assert jnp.allclose(out, ref, rtol=2e-3, atol=2e-3), \
        float(jnp.max(jnp.abs(out - ref)))

    print("KERNEL_OK")
</pallas_src>

<mosaic_0001>
module attributes {stable_mosaic.version = 11 : i64} {
  func.func @_residual_block_kernel(%arg0: i32, %arg1: memref<1x16x16x64xf32, #tpu.memory_space<vmem>>, %arg2: memref<3x192x64xf32, #tpu.memory_space<vmem>>, %arg3: memref<3x192x64xf32, #tpu.memory_space<vmem>>, %arg4: memref<1x64xf32, #tpu.memory_space<vmem>>, %arg5: memref<1x64xf32, #tpu.memory_space<vmem>>, %arg6: memref<1x64xf32, #tpu.memory_space<vmem>>, %arg7: memref<1x64xf32, #tpu.memory_space<vmem>>, %arg8: memref<1x16x8x128xf32, #tpu.memory_space<vmem>>, %arg9: memref<19x24x64xf32, #tpu.memory_space<vmem>>) attributes {dimension_semantics = [#tpu.dimension_semantics<parallel>], iteration_bounds = array<i64: 2>, scalar_prefetch = 0 : i64, scratch_operands = 1 : i64, tpu.core_type = #tpu.core_type<tc>, window_params = [{transform_indices = @transform_0, window_bounds = array<i64: 1, 16, 16, 64>}, {pipeline_mode = #tpu.pipeline_mode<synchronous>, transform_indices = @transform_1, window_bounds = array<i64: 3, 192, 64>}, {pipeline_mode = #tpu.pipeline_mode<synchronous>, transform_indices = @transform_2, window_bounds = array<i64: 3, 192, 64>}, {pipeline_mode = #tpu.pipeline_mode<synchronous>, transform_indices = @transform_3, window_bounds = array<i64: 1, 64>}, {pipeline_mode = #tpu.pipeline_mode<synchronous>, transform_indices = @transform_4, window_bounds = array<i64: 1, 64>}, {pipeline_mode = #tpu.pipeline_mode<synchronous>, transform_indices = @transform_5, window_bounds = array<i64: 1, 64>}, {pipeline_mode = #tpu.pipeline_mode<synchronous>, transform_indices = @transform_6, window_bounds = array<i64: 1, 64>}, {transform_indices = @transform_7, window_bounds = array<i64: 1, 16, 8, 128>}]} {
    %cst = arith.constant 0.000000e+00 : f32
    %0 = vector.broadcast %cst : f32 to vector<1x24x64xf32>
    %c0 = arith.constant 0 : index
    %c0_0 = arith.constant 0 : index
    %c0_1 = arith.constant 0 : index
    %1 = vector.load %arg9[%c0, %c0_0, %c0_1] : memref<19x24x64xf32, #tpu.memory_space<vmem>>, vector<1x24x64xf32>
    tpu.vector_store %arg9[%c0, %c0_0, %c0_1], %0 {strides = array<i32>} : memref<19x24x64xf32, #tpu.memory_space<vmem>>, vector<1x24x64xf32>,
    %cst_2 = arith.constant 0.000000e+00 : f32
    %2 = vector.broadcast %cst_2 : f32 to vector<2x24x64xf32>
    %c17 = arith.constant 17 : index
    %c0_3 = arith.constant 0 : index
    %c0_4 = arith.constant 0 : index
    %3 = vector.load %arg9[%c17, %c0_3, %c0_4] : memref<19x24x64xf32, #tpu.memory_space<vmem>>, vector<2x24x64xf32>
    tpu.vector_store %arg9[%c17, %c0_3, %c0_4], %2 {strides = array<i32>} : memref<19x24x64xf32, #tpu.memory_space<vmem>>, vector<2x24x64xf32>,
    %cst_5 = arith.constant 0.000000e+00 : f32
    %4 = vector.broadcast %cst_5 : f32 to vector<16x1x64xf32>
    %c1 = arith.constant 1 : index
    %c0_6 = arith.constant 0 : index
    %c0_7 = arith.constant 0 : index
    %5 = vector.load %arg9[%c1, %c0_6, %c0_7] : memref<19x24x64xf32, #tpu.memory_space<vmem>>, vector<16x1x64xf32>
    tpu.vector_store %arg9[%c1, %c0_6, %c0_7], %4 {strides = array<i32>} : memref<19x24x64xf32, #tpu.memory_space<vmem>>, vector<16x1x64xf32>,
    %cst_8 = arith.constant 0.000000e+00 : f32
    %6 = vector.broadcast %cst_8 : f32 to vector<16x1x64xf32>
    %c1_9 = arith.constant 1 : index
    %c17_10 = arith.constant 17 : index
    %c0_11 = arith.constant 0 : index
    %7 = vector.load %arg9[%c1_9, %c17_10, %c0_11] : memref<19x24x64xf32, #tpu.memory_space<vmem>>, vector<16x1x64xf32>
    tpu.vector_store %arg9[%c1_9, %c17_10, %c0_11], %6 {strides = array<i32>} : memref<19x24x64xf32, #tpu.memory_space<vmem>>, vector<16x1x64xf32>,
    %c0_12 = arith.constant 0 : index
    %c0_13 = arith.constant 0 : index
    %c0_14 = arith.constant 0 : index
    %c0_15 = arith.constant 0 : index
    %8 = vector.load %arg1[%c0_12, %c0_13, %c0_14, %c0_15] : memref<1x16x16x64xf32, #tpu.memory_space<vmem>>, vector<1x16x16x64xf32>
    %9 = vector.shape_cast %8 : vector<1x16x16x64xf32> to vector<16x16x64xf32>
    %c1_16 = arith.constant 1 : index
    %c1_17 = arith.constant 1 : index
    %c0_18 = arith.constant 0 : index
    %10 = vector.load %arg9[%c1_16, %c1_17, %c0_18] : memref<19x24x64xf32, #tpu.memory_space<vmem>>, vector<16x16x64xf32>
    tpu.vector_store %arg9[%c1_16, %c1_17, %c0_18], %9 {strides = array<i32>} : memref<19x24x64xf32, #tpu.memory_space<vmem>>, vector<16x16x64xf32>,
    %c0_19 = arith.constant 0 : index
    %c0_20 = arith.constant 0 : index
    %c0_21 = arith.constant 0 : index
    %11 = vector.load %arg9[%c0_19, %c0_20, %c0_21] : memref<19x24x64xf32, #tpu.memory_space<vmem>>, vector<19x24x64xf32>
    %12 = vector.shape_cast %11 : vector<19x24x64xf32> to vector<456x64xf32>
    %cst_22 = arith.constant 0.000000e+00 : f32
    %13 = vector.broadcast %cst_22 : f32 to vector<384x64xf32>
    %14 = vector.extract_strided_slice %12 {offsets = [0, 0], sizes = [384, 64], strides = [1, 1]} : vector<456x64xf32> to vector<384x64xf32>
    %15 = vector.extract_strided_slice %12 {offsets = [1, 0], sizes = [384, 64], strides = [1, 1]} : vector<456x64xf32> to vector<384x64xf32>
    %16 = vector.extract_strided_slice %12 {offsets = [2, 0], sizes = [384, 64], strides = [1, 1]} : vector<456x64xf32> to vector<384x64xf32>
    %17 = tpu.concatenate %14, %15, %16 in 1 : vector<384x64xf32>, vector<384x64xf32>, vector<384x64xf32> -> vector<384x192xf32>
    %c0_23 = arith.constant 0 : index
    %c0_24 = arith.constant 0 : index
    %c0_25 = arith.constant 0 : index
    %18 = vector.load %arg2[%c0_23, %c0_24, %c0_25] : memref<3x192x64xf32, #tpu.memory_space<vmem>>, vector<1x192x64xf32>
    %19 = vector.shape_cast %18 : vector<1x192x64xf32> to vector<192x64xf32>
    %cst_26 = arith.constant dense<0.000000e+00> : vector<384x64xf32>
    %20 = tpu.matmul %17, %19, %cst_26 {dimension_numbers = #tpu.dot_dimension_numbers<[1], [0], [0], [1], [0, 0, 1, 1], [], []>} : vector<384x192xf32>, vector<192x64xf32>, vector<384x64xf32> -> vector<384x64xf32>
    %21 = arith.addf %13, %20 : vector<384x64xf32>
    %22 = vector.extract_strided_slice %12 {offsets = [24, 0], sizes = [384, 64], strides = [1, 1]} : vector<456x64xf32> to vector<384x64xf32>
    %23 = vector.extract_strided_slice %12 {offsets = [25, 0], sizes = [384, 64], strides = [1, 1]} : vector<456x64xf32> to vector<384x64xf32>
    %24 = vector.extract_strided_slice %12 {offsets = [26, 0], sizes = [384, 64], strides = [1, 1]} : vector<456x64xf32> to vector<384x64xf32>
    %25 = tpu.concatenate %22, %23, %24 in 1 : vector<384x64xf32>, vector<384x64xf32>, vector<384x64xf32> -> vector<384x192xf32>
    %c1_27 = arith.constant 1 : index
    %c0_28 = arith.constant 0 : index
    %c0_29 = arith.constant 0 : index
    %26 = vector.load %arg2[%c1_27, %c0_28, %c0_29] : memref<3x192x64xf32, #tpu.memory_space<vmem>>, vector<1x192x64xf32>
    %27 = vector.shape_cast %26 : vector<1x192x64xf32> to vector<192x64xf32>
    %cst_30 = arith.constant dense<0.000000e+00> : vector<384x64xf32>
    %28 = tpu.matmul %25, %27, %cst_30 {dimension_numbers = #tpu.dot_dimension_numbers<[1], [0], [0], [1], [0, 0, 1, 1], [], []>} : vector<384x192xf32>, vector<192x64xf32>, vector<384x64xf32> -> vector<384x64xf32>
    %29 = arith.addf %21, %28 : vector<384x64xf32>
    %30 = vector.extract_strided_slice %12 {offsets = [48, 0], sizes = [384, 64], strides = [1, 1]} : vector<456x64xf32> to vector<384x64xf32>
    %31 = vector.extract_strided_slice %12 {offsets = [49, 0], sizes = [384, 64], strides = [1, 1]} : vector<456x64xf32> to vector<384x64xf32>
    %32 = vector.extract_strided_slice %12 {offsets = [50, 0], sizes = [384, 64], strides = [1, 1]} : vector<456x64xf32> to vector<384x64xf32>
    %33 = tpu.concatenate %30, %31, %32 in 1 : vector<384x64xf32>, vector<384x64xf32>, vector<384x64xf32> -> vector<384x192xf32>
    %c2 = arith.constant 2 : index
    %c0_31 = arith.constant 0 : index
    %c0_32 = arith.constant 0 : index
    %34 = vector.load %arg2[%c2, %c0_31, %c0_32] : memref<3x192x64xf32, #tpu.memory_space<vmem>>, vector<1x192x64xf32>
    %35 = vector.shape_cast %34 : vector<1x192x64xf32> to vector<192x64xf32>
    %cst_33 = arith.constant dense<0.000000e+00> : vector<384x64xf32>
    %36 = tpu.matmul %33, %35, %cst_33 {dimension_numbers = #tpu.dot_dimension_numbers<[1], [0], [0], [1], [0, 0, 1, 1], [], []>} : vector<384x192xf32>, vector<192x64xf32>, vector<384x64xf32> -> vector<384x64xf32>
    %37 = arith.addf %29, %36 : vector<384x64xf32>
    %38 = vector.shape_cast %37 : vector<384x64xf32> to vector<16x24x64xf32>
    %39 = vector.extract_strided_slice %38 {offsets = [0, 0, 0], sizes = [16, 16, 64], strides = [1, 1, 1]} : vector<16x24x64xf32> to vector<16x16x64xf32>
    %cst_34 = arith.constant dense<0.000000e+00> : vector<16x64xf32>
    %40 = vector.multi_reduction <add>, %39, %cst_34 [0] : vector<16x16x64xf32> to vector<16x64xf32>
    %41 = vector.shape_cast %40 : vector<16x64xf32> to vector<1x16x64xf32>
    %cst_35 = arith.constant dense<0.000000e+00> : vector<1x64xf32>
    %42 = vector.multi_reduction <add>, %41, %cst_35 [1] : vector<1x16x64xf32> to vector<1x64xf32>
    %43 = vector.shape_cast %42 : vector<1x64xf32> to vector<1x1x64xf32>
    %44 = arith.mulf %39, %39 : vector<16x16x64xf32>
    %cst_36 = arith.constant dense<0.000000e+00> : vector<16x64xf32>
    %45 = vector.multi_reduction <add>, %44, %cst_36 [0] : vector<16x16x64xf32> to vector<16x64xf32>
    %46 = vector.shape_cast %45 : vector<16x64xf32> to vector<1x16x64xf32>
    %cst_37 = arith.constant dense<0.000000e+00> : vector<1x64xf32>
    %47 = vector.multi_reduction <add>, %46, %cst_37 [1] : vector<1x16x64xf32> to vector<1x64xf32>
    %48 = vector.shape_cast %47 : vector<1x64xf32> to vector<1x1x64xf32>
    %cst_38 = arith.constant 3.906250e-03 : f32
    %49 = vector.broadcast %cst_38 : f32 to vector<1x1x64xf32>
    %50 = arith.mulf %43, %49 : vector<1x1x64xf32>
    %cst_39 = arith.constant 3.906250e-03 : f32
    %51 = vector.broadcast %cst_39 : f32 to vector<1x1x64xf32>
    %52 = arith.mulf %48, %51 : vector<1x1x64xf32>
    %53 = arith.mulf %50, %50 : vector<1x1x64xf32>
    %54 = arith.subf %52, %53 : vector<1x1x64xf32>
    %c0_40 = arith.constant 0 : index
    %c0_41 = arith.constant 0 : index
    %55 = vector.load %arg4[%c0_40, %c0_41] : memref<1x64xf32, #tpu.memory_space<vmem>>, vector<1x64xf32>
    %56 = vector.shape_cast %55 : vector<1x64xf32> to vector<1x1x64xf32>
    %cst_42 = arith.constant 9.99999974E-6 : f32
    %57 = vector.broadcast %cst_42 : f32 to vector<1x1x64xf32>
    %58 = arith.addf %54, %57 : vector<1x1x64xf32>
    %59 = math.rsqrt %58 : vector<1x1x64xf32>
    %60 = arith.mulf %56, %59 : vector<1x1x64xf32>
    %c0_43 = arith.constant 0 : index
    %c0_44 = arith.constant 0 : index
    %61 = vector.load %arg5[%c0_43, %c0_44] : memref<1x64xf32, #tpu.memory_space<vmem>>, vector<1x64xf32>
    %62 = vector.shape_cast %61 : vector<1x64xf32> to vector<1x1x64xf32>
    %63 = arith.mulf %50, %60 : vector<1x1x64xf32>
    %64 = arith.subf %62, %63 : vector<1x1x64xf32>
    %65 = vector.broadcast %60 : vector<1x1x64xf32> to vector<16x16x64xf32>
    %66 = arith.mulf %39, %65 : vector<16x16x64xf32>
    %67 = vector.broadcast %64 : vector<1x1x64xf32> to vector<16x16x64xf32>
    %68 = arith.addf %66, %67 : vector<16x16x64xf32>
    %cst_45 = arith.constant 2.000000e-01 : f32
    %69 = vector.broadcast %cst_45 : f32 to vector<16x16x64xf32>
    %70 = arith.mulf %69, %68 : vector<16x16x64xf32>
    %71 = arith.maximumf %68, %70 : vector<16x16x64xf32>
    %c1_46 = arith.constant 1 : index
    %c1_47 = arith.constant 1 : index
    %c0_48 = arith.constant 0 : index
    %72 = vector.load %arg9[%c1_46, %c1_47, %c0_48] : memref<19x24x64xf32, #tpu.memory_space<vmem>>, vector<16x16x64xf32>
    tpu.vector_store %arg9[%c1_46, %c1_47, %c0_48], %71 {strides = array<i32>} : memref<19x24x64xf32, #tpu.memory_space<vmem>>, vector<16x16x64xf32>,
    %c0_49 = arith.constant 0 : index
    %c0_50 = arith.constant 0 : index
    %c0_51 = arith.constant 0 : index
    %73 = vector.load %arg9[%c0_49, %c0_50, %c0_51] : memref<19x24x64xf32, #tpu.memory_space<vmem>>, vector<19x24x64xf32>
    %74 = vector.shape_cast %73 : vector<19x24x64xf32> to vector<456x64xf32>
    %cst_52 = arith.constant 0.000000e+00 : f32
    %75 = vector.broadcast %cst_52 : f32 to vector<384x64xf32>
    %76 = vector.extract_strided_slice %74 {offsets = [0, 0], sizes = [384, 64], strides = [1, 1]} : vector<456x64xf32> to vector<384x64xf32>
    %77 = vector.extract_strided_slice %74 {offsets = [1, 0], sizes = [384, 64], strides = [1, 1]} : vector<456x64xf32> to vector<384x64xf32>
    %78 = vector.extract_strided_slice %74 {offsets = [2, 0], sizes = [384, 64], strides = [1, 1]} : vector<456x64xf32> to vector<384x64xf32>
    %79 = tpu.concatenate %76, %77, %78 in 1 : vector<384x64xf32>, vector<384x64xf32>, vector<384x64xf32> -> vector<384x192xf32>
    %c0_53 = arith.constant 0 : index
    %c0_54 = arith.constant 0 : index
    %c0_55 = arith.constant 0 : index
    %80 = vector.load %arg3[%c0_53, %c0_54, %c0_55] : memref<3x192x64xf32, #tpu.memory_space<vmem>>, vector<1x192x64xf32>
    %81 = vector.shape_cast %80 : vector<1x192x64xf32> to vector<192x64xf32>
    %cst_56 = arith.constant dense<0.000000e+00> : vector<384x64xf32>
    %82 = tpu.matmul %79, %81, %cst_56 {dimension_numbers = #tpu.dot_dimension_numbers<[1], [0], [0], [1], [0, 0, 1, 1], [], []>} : vector<384x192xf32>, vector<192x64xf32>, vector<384x64xf32> -> vector<384x64xf32>
    %83 = arith.addf %75, %82 : vector<384x64xf32>
    %84 = vector.extract_strided_slice %74 {offsets = [24, 0], sizes = [384, 64], strides = [1, 1]} : vector<456x64xf32> to vector<384x64xf32>
    %85 = vector.extract_strided_slice %74 {offsets = [25, 0], sizes = [384, 64], strides = [1, 1]} : vector<456x64xf32> to vector<384x64xf32>
    %86 = vector.extract_strided_slice %74 {offsets = [26, 0], sizes = [384, 64], strides = [1, 1]} : vector<456x64xf32> to vector<384x64xf32>
    %87 = tpu.concatenate %84, %85, %86 in 1 : vector<384x64xf32>, vector<384x64xf32>, vector<384x64xf32> -> vector<384x192xf32>
    %c1_57 = arith.constant 1 : index
    %c0_58 = arith.constant 0 : index
    %c0_59 = arith.constant 0 : index
    %88 = vector.load %arg3[%c1_57, %c0_58, %c0_59] : memref<3x192x64xf32, #tpu.memory_space<vmem>>, vector<1x192x64xf32>
    %89 = vector.shape_cast %88 : vector<1x192x64xf32> to vector<192x64xf32>
    %cst_60 = arith.constant dense<0.000000e+00> : vector<384x64xf32>
    %90 = tpu.matmul %87, %89, %cst_60 {dimension_numbers = #tpu.dot_dimension_numbers<[1], [0], [0], [1], [0, 0, 1, 1], [], []>} : vector<384x192xf32>, vector<192x64xf32>, vector<384x64xf32> -> vector<384x64xf32>
    %91 = arith.addf %83, %90 : vector<384x64xf32>
    %92 = vector.extract_strided_slice %74 {offsets = [48, 0], sizes = [384, 64], strides = [1, 1]} : vector<456x64xf32> to vector<384x64xf32>
    %93 = vector.extract_strided_slice %74 {offsets = [49, 0], sizes = [384, 64], strides = [1, 1]} : vector<456x64xf32> to vector<384x64xf32>
    %94 = vector.extract_strided_slice %74 {offsets = [50, 0], sizes = [384, 64], strides = [1, 1]} : vector<456x64xf32> to vector<384x64xf32>
    %95 = tpu.concatenate %92, %93, %94 in 1 : vector<384x64xf32>, vector<384x64xf32>, vector<384x64xf32> -> vector<384x192xf32>
    %c2_61 = arith.constant 2 : index
    %c0_62 = arith.constant 0 : index
    %c0_63 = arith.constant 0 : index
    %96 = vector.load %arg3[%c2_61, %c0_62, %c0_63] : memref<3x192x64xf32, #tpu.memory_space<vmem>>, vector<1x192x64xf32>
    %97 = vector.shape_cast %96 : vector<1x192x64xf32> to vector<192x64xf32>
    %cst_64 = arith.constant dense<0.000000e+00> : vector<384x64xf32>
    %98 = tpu.matmul %95, %97, %cst_64 {dimension_numbers = #tpu.dot_dimension_numbers<[1], [0], [0], [1], [0, 0, 1, 1], [], []>} : vector<384x192xf32>, vector<192x64xf32>, vector<384x64xf32> -> vector<384x64xf32>
    %99 = arith.addf %91, %98 : vector<384x64xf32>
    %100 = vector.shape_cast %99 : vector<384x64xf32> to vector<16x24x64xf32>
    %101 = vector.extract_strided_slice %100 {offsets = [0, 0, 0], sizes = [16, 16, 64], strides = [1, 1, 1]} : vector<16x24x64xf32> to vector<16x16x64xf32>
    %cst_65 = arith.constant dense<0.000000e+00> : vector<16x64xf32>
    %102 = vector.multi_reduction <add>, %101, %cst_65 [0] : vector<16x16x64xf32> to vector<16x64xf32>
    %103 = vector.shape_cast %102 : vector<16x64xf32> to vector<1x16x64xf32>
    %cst_66 = arith.constant dense<0.000000e+00> : vector<1x64xf32>
    %104 = vector.multi_reduction <add>, %103, %cst_66 [1] : vector<1x16x64xf32> to vector<1x64xf32>
    %105 = vector.shape_cast %104 : vector<1x64xf32> to vector<1x1x64xf32>
    %106 = arith.mulf %101, %101 : vector<16x16x64xf32>
    %cst_67 = arith.constant dense<0.000000e+00> : vector<16x64xf32>
    %107 = vector.multi_reduction <add>, %106, %cst_67 [0] : vector<16x16x64xf32> to vector<16x64xf32>
    %108 = vector.shape_cast %107 : vector<16x64xf32> to vector<1x16x64xf32>
    %cst_68 = arith.constant dense<0.000000e+00> : vector<1x64xf32>
    %109 = vector.multi_reduction <add>, %108, %cst_68 [1] : vector<1x16x64xf32> to vector<1x64xf32>
    %110 = vector.shape_cast %109 : vector<1x64xf32> to vector<1x1x64xf32>
    %cst_69 = arith.constant 3.906250e-03 : f32
    %111 = vector.broadcast %cst_69 : f32 to vector<1x1x64xf32>
    %112 = arith.mulf %105, %111 : vector<1x1x64xf32>
    %cst_70 = arith.constant 3.906250e-03 : f32
    %113 = vector.broadcast %cst_70 : f32 to vector<1x1x64xf32>
    %114 = arith.mulf %110, %113 : vector<1x1x64xf32>
    %115 = arith.mulf %112, %112 : vector<1x1x64xf32>
    %116 = arith.subf %114, %115 : vector<1x1x64xf32>
    %c0_71 = arith.constant 0 : index
    %c0_72 = arith.constant 0 : index
    %117 = vector.load %arg6[%c0_71, %c0_72] : memref<1x64xf32, #tpu.memory_space<vmem>>, vector<1x64xf32>
    %118 = vector.shape_cast %117 : vector<1x64xf32> to vector<1x1x64xf32>
    %cst_73 = arith.constant 9.99999974E-6 : f32
    %119 = vector.broadcast %cst_73 : f32 to vector<1x1x64xf32>
    %120 = arith.addf %116, %119 : vector<1x1x64xf32>
    %121 = math.rsqrt %120 : vector<1x1x64xf32>
    %122 = arith.mulf %118, %121 : vector<1x1x64xf32>
    %c0_74 = arith.constant 0 : index
    %c0_75 = arith.constant 0 : index
    %123 = vector.load %arg7[%c0_74, %c0_75] : memref<1x64xf32, #tpu.memory_space<vmem>>, vector<1x64xf32>
    %124 = vector.shape_cast %123 : vector<1x64xf32> to vector<1x1x64xf32>
    %125 = arith.mulf %112, %122 : vector<1x1x64xf32>
    %126 = arith.subf %124, %125 : vector<1x1x64xf32>
    %127 = vector.broadcast %122 : vector<1x1x64xf32> to vector<16x16x64xf32>
    %128 = arith.mulf %101, %127 : vector<16x16x64xf32>
    %129 = vector.broadcast %126 : vector<1x1x64xf32> to vector<16x16x64xf32>
    %130 = arith.addf %128, %129 : vector<16x16x64xf32>
    %c0_76 = arith.constant 0 : index
    %c0_77 = arith.constant 0 : index
    %c0_78 = arith.constant 0 : index
    %c0_79 = arith.constant 0 : index
    %131 = vector.load %arg1[%c0_76, %c0_77, %c0_78, %c0_79] : memref<1x16x16x64xf32, #tpu.memory_space<vmem>>, vector<1x16x16x64xf32>
    %132 = vector.shape_cast %131 : vector<1x16x16x64xf32> to vector<16x16x64xf32>
    %133 = arith.addf %130, %132 : vector<16x16x64xf32>
    %134 = vector.shape_cast %133 : vector<16x16x64xf32> to vector<16x8x128xf32>
    %c0_80 = arith.constant 0 : index
    %c0_81 = arith.constant 0 : index
    %c0_82 = arith.constant 0 : index
    %c0_83 = arith.constant 0 : index
    %135 = vector.load %arg8[%c0_80, %c0_81, %c0_82, %c0_83] : memref<1x16x8x128xf32, #tpu.memory_space<vmem>>, vector<1x16x8x128xf32>
    %136 = vector.shape_cast %135 : vector<1x16x8x128xf32> to vector<16x8x128xf32>
    %137 = vector.shape_cast %134 : vector<16x8x128xf32> to vector<1x16x8x128xf32>
    tpu.vector_store %arg8[%c0_80, %c0_81, %c0_82, %c0_83], %137 {strides = array<i32>} : memref<1x16x8x128xf32, #tpu.memory_space<vmem>>, vector<1x16x8x128xf32>,
    return
  }
  func.func @transform_0(%arg0: i32) -> (i32, i32, i32, i32) {
    %c0_i32 = arith.constant 0 : i32
    %c0_i32_0 = arith.constant 0 : i32
    %c0_i32_1 = arith.constant 0 : i32
    %c0_i32_2 = arith.constant 0 : i32
    return %arg0, %c0_i32, %c0_i32_0, %c0_i32_1 : i32, i32, i32, i32
  }
  func.func @transform_1(%arg0: i32) -> (i32, i32, i32) {
    %c0_i32 = arith.constant 0 : i32
    %c0_i32_0 = arith.constant 0 : i32
    %c0_i32_1 = arith.constant 0 : i32
    %c0_i32_2 = arith.constant 0 : i32
    return %c0_i32, %c0_i32_0, %c0_i32_1 : i32, i32, i32
  }
  func.func @transform_2(%arg0: i32) -> (i32, i32, i32) {
    %c0_i32 = arith.constant 0 : i32
    %c0_i32_0 = arith.constant 0 : i32
    %c0_i32_1 = arith.constant 0 : i32
    %c0_i32_2 = arith.constant 0 : i32
    return %c0_i32, %c0_i32_0, %c0_i32_1 : i32, i32, i32
  }
  func.func @transform_3(%arg0: i32) -> (i32, i32) {
    %c0_i32 = arith.constant 0 : i32
    %c0_i32_0 = arith.constant 0 : i32
    %c0_i32_1 = arith.constant 0 : i32
    return %c0_i32, %c0_i32_0 : i32, i32
  }
  func.func @transform_4(%arg0: i32) -> (i32, i32) {
    %c0_i32 = arith.constant 0 : i32
    %c0_i32_0 = arith.constant 0 : i32
    %c0_i32_1 = arith.constant 0 : i32
    return %c0_i32, %c0_i32_0 : i32, i32
  }
  func.func @transform_5(%arg0: i32) -> (i32, i32) {
    %c0_i32 = arith.constant 0 : i32
    %c0_i32_0 = arith.constant 0 : i32
    %c0_i32_1 = arith.constant 0 : i32
    return %c0_i32, %c0_i32_0 : i32, i32
  }
  func.func @transform_6(%arg0: i32) -> (i32, i32) {
    %c0_i32 = arith.constant 0 : i32
    %c0_i32_0 = arith.constant 0 : i32
    %c0_i32_1 = arith.constant 0 : i32
    return %c0_i32, %c0_i32_0 : i32, i32
  }
  func.func @transform_7(%arg0: i32) -> (i32, i32, i32, i32) {
    %c0_i32 = arith.constant 0 : i32
    %c0_i32_0 = arith.constant 0 : i32
    %c0_i32_1 = arith.constant 0 : i32
    %c0_i32_2 = arith.constant 0 : i32
    return %arg0, %c0_i32, %c0_i32_0, %c0_i32_1 : i32, i32, i32, i32
  }
}

module attributes {stable_mosaic.version = 11 : i64} {
  func.func @_residual_block_kernel(%arg0: i32, %arg1: memref<1x16x16x64xf32, #tpu.memory_space<vmem>>, %arg2: memref<3x192x64xf32, #tpu.memory_space<vmem>>, %arg3: memref<3x192x64xf32, #tpu.memory_space<vmem>>, %arg4: memref<1x64xf32, #tpu.memory_space<vmem>>, %arg5: memref<1x64xf32, #tpu.memory_space<vmem>>, %arg6: memref<1x64xf32, #tpu.memory_space<vmem>>, %arg7: memref<1x64xf32, #tpu.memory_space<vmem>>, %arg8: memref<1x16x16x64xf32, #tpu.memory_space<vmem>>, %arg9: memref<19x24x64xf32, #tpu.memory_space<vmem>>) attributes {dimension_semantics = [#tpu.dimension_semantics<parallel>], iteration_bounds = array<i64: 2>, scalar_prefetch = 0 : i64, scratch_operands = 1 : i64, tpu.core_type = #tpu.core_type<tc>, window_params = [{transform_indices = @transform_0, window_bounds = array<i64: 1, 16, 16, 64>}, {pipeline_mode = #tpu.pipeline_mode<synchronous>, transform_indices = @transform_1, window_bounds = array<i64: 3, 192, 64>}, {pipeline_mode = #tpu.pipeline_mode<synchronous>, transform_indices = @transform_2, window_bounds = array<i64: 3, 192, 64>}, {pipeline_mode = #tpu.pipeline_mode<synchronous>, transform_indices = @transform_3, window_bounds = array<i64: 1, 64>}, {pipeline_mode = #tpu.pipeline_mode<synchronous>, transform_indices = @transform_4, window_bounds = array<i64: 1, 64>}, {pipeline_mode = #tpu.pipeline_mode<synchronous>, transform_indices = @transform_5, window_bounds = array<i64: 1, 64>}, {pipeline_mode = #tpu.pipeline_mode<synchronous>, transform_indices = @transform_6, window_bounds = array<i64: 1, 64>}, {transform_indices = @transform_7, window_bounds = array<i64: 1, 16, 16, 64>}]} {
    %cst = arith.constant 0.000000e+00 : f32
    %0 = vector.broadcast %cst : f32 to vector<1x24x64xf32>
    %c0 = arith.constant 0 : index
    %c0_0 = arith.constant 0 : index
    %c0_1 = arith.constant 0 : index
    %1 = vector.load %arg9[%c0, %c0_0, %c0_1] : memref<19x24x64xf32, #tpu.memory_space<vmem>>, vector<1x24x64xf32>
    tpu.vector_store %arg9[%c0, %c0_0, %c0_1], %0 {strides = array<i32>} : memref<19x24x64xf32, #tpu.memory_space<vmem>>, vector<1x24x64xf32>,
    %cst_2 = arith.constant 0.000000e+00 : f32
    %2 = vector.broadcast %cst_2 : f32 to vector<2x24x64xf32>
    %c17 = arith.constant 17 : index
    %c0_3 = arith.constant 0 : index
    %c0_4 = arith.constant 0 : index
    %3 = vector.load %arg9[%c17, %c0_3, %c0_4] : memref<19x24x64xf32, #tpu.memory_space<vmem>>, vector<2x24x64xf32>
    tpu.vector_store %arg9[%c17, %c0_3, %c0_4], %2 {strides = array<i32>} : memref<19x24x64xf32, #tpu.memory_space<vmem>>, vector<2x24x64xf32>,
    %cst_5 = arith.constant 0.000000e+00 : f32
    %4 = vector.broadcast %cst_5 : f32 to vector<16x1x64xf32>
    %c1 = arith.constant 1 : index
    %c0_6 = arith.constant 0 : index
    %c0_7 = arith.constant 0 : index
    %5 = vector.load %arg9[%c1, %c0_6, %c0_7] : memref<19x24x64xf32, #tpu.memory_space<vmem>>, vector<16x1x64xf32>
    tpu.vector_store %arg9[%c1, %c0_6, %c0_7], %4 {strides = array<i32>} : memref<19x24x64xf32, #tpu.memory_space<vmem>>, vector<16x1x64xf32>,
    %cst_8 = arith.constant 0.000000e+00 : f32
    %6 = vector.broadcast %cst_8 : f32 to vector<16x1x64xf32>
    %c1_9 = arith.constant 1 : index
    %c17_10 = arith.constant 17 : index
    %c0_11 = arith.constant 0 : index
    %7 = vector.load %arg9[%c1_9, %c17_10, %c0_11] : memref<19x24x64xf32, #tpu.memory_space<vmem>>, vector<16x1x64xf32>
    tpu.vector_store %arg9[%c1_9, %c17_10, %c0_11], %6 {strides = array<i32>} : memref<19x24x64xf32, #tpu.memory_space<vmem>>, vector<16x1x64xf32>,
    %c0_12 = arith.constant 0 : index
    %c0_13 = arith.constant 0 : index
    %c0_14 = arith.constant 0 : index
    %c0_15 = arith.constant 0 : index
    %8 = vector.load %arg1[%c0_12, %c0_13, %c0_14, %c0_15] : memref<1x16x16x64xf32, #tpu.memory_space<vmem>>, vector<1x16x16x64xf32>
    %9 = vector.shape_cast %8 : vector<1x16x16x64xf32> to vector<16x16x64xf32>
    %c1_16 = arith.constant 1 : index
    %c1_17 = arith.constant 1 : index
    %c0_18 = arith.constant 0 : index
    %10 = vector.load %arg9[%c1_16, %c1_17, %c0_18] : memref<19x24x64xf32, #tpu.memory_space<vmem>>, vector<16x16x64xf32>
    tpu.vector_store %arg9[%c1_16, %c1_17, %c0_18], %9 {strides = array<i32>} : memref<19x24x64xf32, #tpu.memory_space<vmem>>, vector<16x16x64xf32>,
    %c0_19 = arith.constant 0 : index
    %c0_20 = arith.constant 0 : index
    %c0_21 = arith.constant 0 : index
    %11 = vector.load %arg9[%c0_19, %c0_20, %c0_21] : memref<19x24x64xf32, #tpu.memory_space<vmem>>, vector<19x24x64xf32>
    %12 = vector.shape_cast %11 : vector<19x24x64xf32> to vector<456x64xf32>
    %cst_22 = arith.constant 0.000000e+00 : f32
    %13 = vector.broadcast %cst_22 : f32 to vector<384x64xf32>
    %14 = vector.extract_strided_slice %12 {offsets = [0, 0], sizes = [384, 64], strides = [1, 1]} : vector<456x64xf32> to vector<384x64xf32>
    %15 = vector.extract_strided_slice %12 {offsets = [1, 0], sizes = [384, 64], strides = [1, 1]} : vector<456x64xf32> to vector<384x64xf32>
    %16 = vector.extract_strided_slice %12 {offsets = [2, 0], sizes = [384, 64], strides = [1, 1]} : vector<456x64xf32> to vector<384x64xf32>
    %17 = tpu.concatenate %14, %15, %16 in 1 : vector<384x64xf32>, vector<384x64xf32>, vector<384x64xf32> -> vector<384x192xf32>
    %c0_23 = arith.constant 0 : index
    %c0_24 = arith.constant 0 : index
    %c0_25 = arith.constant 0 : index
    %18 = vector.load %arg2[%c0_23, %c0_24, %c0_25] : memref<3x192x64xf32, #tpu.memory_space<vmem>>, vector<1x192x64xf32>
    %19 = vector.shape_cast %18 : vector<1x192x64xf32> to vector<192x64xf32>
    %cst_26 = arith.constant dense<0.000000e+00> : vector<384x64xf32>
    %20 = tpu.matmul %17, %19, %cst_26 {dimension_numbers = #tpu.dot_dimension_numbers<[1], [0], [0], [1], [0, 0, 1, 1], [], []>} : vector<384x192xf32>, vector<192x64xf32>, vector<384x64xf32> -> vector<384x64xf32>
    %21 = arith.addf %13, %20 : vector<384x64xf32>
    %22 = vector.extract_strided_slice %12 {offsets = [24, 0], sizes = [384, 64], strides = [1, 1]} : vector<456x64xf32> to vector<384x64xf32>
    %23 = vector.extract_strided_slice %12 {offsets = [25, 0], sizes = [384, 64], strides = [1, 1]} : vector<456x64xf32> to vector<384x64xf32>
    %24 = vector.extract_strided_slice %12 {offsets = [26, 0], sizes = [384, 64], strides = [1, 1]} : vector<456x64xf32> to vector<384x64xf32>
    %25 = tpu.concatenate %22, %23, %24 in 1 : vector<384x64xf32>, vector<384x64xf32>, vector<384x64xf32> -> vector<384x192xf32>
    %c1_27 = arith.constant 1 : index
    %c0_28 = arith.constant 0 : index
    %c0_29 = arith.constant 0 : index
    %26 = vector.load %arg2[%c1_27, %c0_28, %c0_29] : memref<3x192x64xf32, #tpu.memory_space<vmem>>, vector<1x192x64xf32>
    %27 = vector.shape_cast %26 : vector<1x192x64xf32> to vector<192x64xf32>
    %cst_30 = arith.constant dense<0.000000e+00> : vector<384x64xf32>
    %28 = tpu.matmul %25, %27, %cst_30 {dimension_numbers = #tpu.dot_dimension_numbers<[1], [0], [0], [1], [0, 0, 1, 1], [], []>} : vector<384x192xf32>, vector<192x64xf32>, vector<384x64xf32> -> vector<384x64xf32>
    %29 = arith.addf %21, %28 : vector<384x64xf32>
    %30 = vector.extract_strided_slice %12 {offsets = [48, 0], sizes = [384, 64], strides = [1, 1]} : vector<456x64xf32> to vector<384x64xf32>
    %31 = vector.extract_strided_slice %12 {offsets = [49, 0], sizes = [384, 64], strides = [1, 1]} : vector<456x64xf32> to vector<384x64xf32>
    %32 = vector.extract_strided_slice %12 {offsets = [50, 0], sizes = [384, 64], strides = [1, 1]} : vector<456x64xf32> to vector<384x64xf32>
    %33 = tpu.concatenate %30, %31, %32 in 1 : vector<384x64xf32>, vector<384x64xf32>, vector<384x64xf32> -> vector<384x192xf32>
    %c2 = arith.constant 2 : index
    %c0_31 = arith.constant 0 : index
    %c0_32 = arith.constant 0 : index
    %34 = vector.load %arg2[%c2, %c0_31, %c0_32] : memref<3x192x64xf32, #tpu.memory_space<vmem>>, vector<1x192x64xf32>
    %35 = vector.shape_cast %34 : vector<1x192x64xf32> to vector<192x64xf32>
    %cst_33 = arith.constant dense<0.000000e+00> : vector<384x64xf32>
    %36 = tpu.matmul %33, %35, %cst_33 {dimension_numbers = #tpu.dot_dimension_numbers<[1], [0], [0], [1], [0, 0, 1, 1], [], []>} : vector<384x192xf32>, vector<192x64xf32>, vector<384x64xf32> -> vector<384x64xf32>
    %37 = arith.addf %29, %36 : vector<384x64xf32>
    %38 = vector.shape_cast %37 : vector<384x64xf32> to vector<16x24x64xf32>
    %39 = vector.extract_strided_slice %38 {offsets = [0, 0, 0], sizes = [16, 16, 64], strides = [1, 1, 1]} : vector<16x24x64xf32> to vector<16x16x64xf32>
    %cst_34 = arith.constant dense<0.000000e+00> : vector<16x64xf32>
    %40 = vector.multi_reduction <add>, %39, %cst_34 [0] : vector<16x16x64xf32> to vector<16x64xf32>
    %41 = vector.shape_cast %40 : vector<16x64xf32> to vector<1x16x64xf32>
    %cst_35 = arith.constant dense<0.000000e+00> : vector<1x64xf32>
    %42 = vector.multi_reduction <add>, %41, %cst_35 [1] : vector<1x16x64xf32> to vector<1x64xf32>
    %43 = vector.shape_cast %42 : vector<1x64xf32> to vector<1x1x64xf32>
    %44 = arith.mulf %39, %39 : vector<16x16x64xf32>
    %cst_36 = arith.constant dense<0.000000e+00> : vector<16x64xf32>
    %45 = vector.multi_reduction <add>, %44, %cst_36 [0] : vector<16x16x64xf32> to vector<16x64xf32>
    %46 = vector.shape_cast %45 : vector<16x64xf32> to vector<1x16x64xf32>
    %cst_37 = arith.constant dense<0.000000e+00> : vector<1x64xf32>
    %47 = vector.multi_reduction <add>, %46, %cst_37 [1] : vector<1x16x64xf32> to vector<1x64xf32>
    %48 = vector.shape_cast %47 : vector<1x64xf32> to vector<1x1x64xf32>
    %cst_38 = arith.constant 3.906250e-03 : f32
    %49 = vector.broadcast %cst_38 : f32 to vector<1x1x64xf32>
    %50 = arith.mulf %43, %49 : vector<1x1x64xf32>
    %cst_39 = arith.constant 3.906250e-03 : f32
    %51 = vector.broadcast %cst_39 : f32 to vector<1x1x64xf32>
    %52 = arith.mulf %48, %51 : vector<1x1x64xf32>
    %53 = arith.mulf %50, %50 : vector<1x1x64xf32>
    %54 = arith.subf %52, %53 : vector<1x1x64xf32>
    %c0_40 = arith.constant 0 : index
    %c0_41 = arith.constant 0 : index
    %55 = vector.load %arg4[%c0_40, %c0_41] : memref<1x64xf32, #tpu.memory_space<vmem>>, vector<1x64xf32>
    %56 = vector.shape_cast %55 : vector<1x64xf32> to vector<1x1x64xf32>
    %cst_42 = arith.constant 9.99999974E-6 : f32
    %57 = vector.broadcast %cst_42 : f32 to vector<1x1x64xf32>
    %58 = arith.addf %54, %57 : vector<1x1x64xf32>
    %59 = math.rsqrt %58 : vector<1x1x64xf32>
    %60 = arith.mulf %56, %59 : vector<1x1x64xf32>
    %c0_43 = arith.constant 0 : index
    %c0_44 = arith.constant 0 : index
    %61 = vector.load %arg5[%c0_43, %c0_44] : memref<1x64xf32, #tpu.memory_space<vmem>>, vector<1x64xf32>
    %62 = vector.shape_cast %61 : vector<1x64xf32> to vector<1x1x64xf32>
    %63 = arith.mulf %50, %60 : vector<1x1x64xf32>
    %64 = arith.subf %62, %63 : vector<1x1x64xf32>
    %65 = vector.broadcast %60 : vector<1x1x64xf32> to vector<16x16x64xf32>
    %66 = arith.mulf %39, %65 : vector<16x16x64xf32>
    %67 = vector.broadcast %64 : vector<1x1x64xf32> to vector<16x16x64xf32>
    %68 = arith.addf %66, %67 : vector<16x16x64xf32>
    %cst_45 = arith.constant 2.000000e-01 : f32
    %69 = vector.broadcast %cst_45 : f32 to vector<16x16x64xf32>
    %70 = arith.mulf %69, %68 : vector<16x16x64xf32>
    %71 = arith.maximumf %68, %70 : vector<16x16x64xf32>
    %c1_46 = arith.constant 1 : index
    %c1_47 = arith.constant 1 : index
    %c0_48 = arith.constant 0 : index
    %72 = vector.load %arg9[%c1_46, %c1_47, %c0_48] : memref<19x24x64xf32, #tpu.memory_space<vmem>>, vector<16x16x64xf32>
    tpu.vector_store %arg9[%c1_46, %c1_47, %c0_48], %71 {strides = array<i32>} : memref<19x24x64xf32, #tpu.memory_space<vmem>>, vector<16x16x64xf32>,
    %c0_49 = arith.constant 0 : index
    %c0_50 = arith.constant 0 : index
    %c0_51 = arith.constant 0 : index
    %73 = vector.load %arg9[%c0_49, %c0_50, %c0_51] : memref<19x24x64xf32, #tpu.memory_space<vmem>>, vector<19x24x64xf32>
    %74 = vector.shape_cast %73 : vector<19x24x64xf32> to vector<456x64xf32>
    %cst_52 = arith.constant 0.000000e+00 : f32
    %75 = vector.broadcast %cst_52 : f32 to vector<384x64xf32>
    %76 = vector.extract_strided_slice %74 {offsets = [0, 0], sizes = [384, 64], strides = [1, 1]} : vector<456x64xf32> to vector<384x64xf32>
    %77 = vector.extract_strided_slice %74 {offsets = [1, 0], sizes = [384, 64], strides = [1, 1]} : vector<456x64xf32> to vector<384x64xf32>
    %78 = vector.extract_strided_slice %74 {offsets = [2, 0], sizes = [384, 64], strides = [1, 1]} : vector<456x64xf32> to vector<384x64xf32>
    %79 = tpu.concatenate %76, %77, %78 in 1 : vector<384x64xf32>, vector<384x64xf32>, vector<384x64xf32> -> vector<384x192xf32>
    %c0_53 = arith.constant 0 : index
    %c0_54 = arith.constant 0 : index
    %c0_55 = arith.constant 0 : index
    %80 = vector.load %arg3[%c0_53, %c0_54, %c0_55] : memref<3x192x64xf32, #tpu.memory_space<vmem>>, vector<1x192x64xf32>
    %81 = vector.shape_cast %80 : vector<1x192x64xf32> to vector<192x64xf32>
    %cst_56 = arith.constant dense<0.000000e+00> : vector<384x64xf32>
    %82 = tpu.matmul %79, %81, %cst_56 {dimension_numbers = #tpu.dot_dimension_numbers<[1], [0], [0], [1], [0, 0, 1, 1], [], []>} : vector<384x192xf32>, vector<192x64xf32>, vector<384x64xf32> -> vector<384x64xf32>
    %83 = arith.addf %75, %82 : vector<384x64xf32>
    %84 = vector.extract_strided_slice %74 {offsets = [24, 0], sizes = [384, 64], strides = [1, 1]} : vector<456x64xf32> to vector<384x64xf32>
    %85 = vector.extract_strided_slice %74 {offsets = [25, 0], sizes = [384, 64], strides = [1, 1]} : vector<456x64xf32> to vector<384x64xf32>
    %86 = vector.extract_strided_slice %74 {offsets = [26, 0], sizes = [384, 64], strides = [1, 1]} : vector<456x64xf32> to vector<384x64xf32>
    %87 = tpu.concatenate %84, %85, %86 in 1 : vector<384x64xf32>, vector<384x64xf32>, vector<384x64xf32> -> vector<384x192xf32>
    %c1_57 = arith.constant 1 : index
    %c0_58 = arith.constant 0 : index
    %c0_59 = arith.constant 0 : index
    %88 = vector.load %arg3[%c1_57, %c0_58, %c0_59] : memref<3x192x64xf32, #tpu.memory_space<vmem>>, vector<1x192x64xf32>
    %89 = vector.shape_cast %88 : vector<1x192x64xf32> to vector<192x64xf32>
    %cst_60 = arith.constant dense<0.000000e+00> : vector<384x64xf32>
    %90 = tpu.matmul %87, %89, %cst_60 {dimension_numbers = #tpu.dot_dimension_numbers<[1], [0], [0], [1], [0, 0, 1, 1], [], []>} : vector<384x192xf32>, vector<192x64xf32>, vector<384x64xf32> -> vector<384x64xf32>
    %91 = arith.addf %83, %90 : vector<384x64xf32>
    %92 = vector.extract_strided_slice %74 {offsets = [48, 0], sizes = [384, 64], strides = [1, 1]} : vector<456x64xf32> to vector<384x64xf32>
    %93 = vector.extract_strided_slice %74 {offsets = [49, 0], sizes = [384, 64], strides = [1, 1]} : vector<456x64xf32> to vector<384x64xf32>
    %94 = vector.extract_strided_slice %74 {offsets = [50, 0], sizes = [384, 64], strides = [1, 1]} : vector<456x64xf32> to vector<384x64xf32>
    %95 = tpu.concatenate %92, %93, %94 in 1 : vector<384x64xf32>, vector<384x64xf32>, vector<384x64xf32> -> vector<384x192xf32>
    %c2_61 = arith.constant 2 : index
    %c0_62 = arith.constant 0 : index
    %c0_63 = arith.constant 0 : index
    %96 = vector.load %arg3[%c2_61, %c0_62, %c0_63] : memref<3x192x64xf32, #tpu.memory_space<vmem>>, vector<1x192x64xf32>
    %97 = vector.shape_cast %96 : vector<1x192x64xf32> to vector<192x64xf32>
    %cst_64 = arith.constant dense<0.000000e+00> : vector<384x64xf32>
    %98 = tpu.matmul %95, %97, %cst_64 {dimension_numbers = #tpu.dot_dimension_numbers<[1], [0], [0], [1], [0, 0, 1, 1], [], []>} : vector<384x192xf32>, vector<192x64xf32>, vector<384x64xf32> -> vector<384x64xf32>
    %99 = arith.addf %91, %98 : vector<384x64xf32>
    %100 = vector.shape_cast %99 : vector<384x64xf32> to vector<16x24x64xf32>
    %101 = vector.extract_strided_slice %100 {offsets = [0, 0, 0], sizes = [16, 16, 64], strides = [1, 1, 1]} : vector<16x24x64xf32> to vector<16x16x64xf32>
    %cst_65 = arith.constant dense<0.000000e+00> : vector<16x64xf32>
    %102 = vector.multi_reduction <add>, %101, %cst_65 [0] : vector<16x16x64xf32> to vector<16x64xf32>
    %103 = vector.shape_cast %102 : vector<16x64xf32> to vector<1x16x64xf32>
    %cst_66 = arith.constant dense<0.000000e+00> : vector<1x64xf32>
    %104 = vector.multi_reduction <add>, %103, %cst_66 [1] : vector<1x16x64xf32> to vector<1x64xf32>
    %105 = vector.shape_cast %104 : vector<1x64xf32> to vector<1x1x64xf32>
    %106 = arith.mulf %101, %101 : vector<16x16x64xf32>
    %cst_67 = arith.constant dense<0.000000e+00> : vector<16x64xf32>
    %107 = vector.multi_reduction <add>, %106, %cst_67 [0] : vector<16x16x64xf32> to vector<16x64xf32>
    %108 = vector.shape_cast %107 : vector<16x64xf32> to vector<1x16x64xf32>
    %cst_68 = arith.constant dense<0.000000e+00> : vector<1x64xf32>
    %109 = vector.multi_reduction <add>, %108, %cst_68 [1] : vector<1x16x64xf32> to vector<1x64xf32>
    %110 = vector.shape_cast %109 : vector<1x64xf32> to vector<1x1x64xf32>
    %cst_69 = arith.constant 3.906250e-03 : f32
    %111 = vector.broadcast %cst_69 : f32 to vector<1x1x64xf32>
    %112 = arith.mulf %105, %111 : vector<1x1x64xf32>
    %cst_70 = arith.constant 3.906250e-03 : f32
    %113 = vector.broadcast %cst_70 : f32 to vector<1x1x64xf32>
    %114 = arith.mulf %110, %113 : vector<1x1x64xf32>
    %115 = arith.mulf %112, %112 : vector<1x1x64xf32>
    %116 = arith.subf %114, %115 : vector<1x1x64xf32>
    %c0_71 = arith.constant 0 : index
    %c0_72 = arith.constant 0 : index
    %117 = vector.load %arg6[%c0_71, %c0_72] : memref<1x64xf32, #tpu.memory_space<vmem>>, vector<1x64xf32>
    %118 = vector.shape_cast %117 : vector<1x64xf32> to vector<1x1x64xf32>
    %cst_73 = arith.constant 9.99999974E-6 : f32
    %119 = vector.broadcast %cst_73 : f32 to vector<1x1x64xf32>
    %120 = arith.addf %116, %119 : vector<1x1x64xf32>
    %121 = math.rsqrt %120 : vector<1x1x64xf32>
    %122 = arith.mulf %118, %121 : vector<1x1x64xf32>
    %c0_74 = arith.constant 0 : index
    %c0_75 = arith.constant 0 : index
    %123 = vector.load %arg7[%c0_74, %c0_75] : memref<1x64xf32, #tpu.memory_space<vmem>>, vector<1x64xf32>
    %124 = vector.shape_cast %123 : vector<1x64xf32> to vector<1x1x64xf32>
    %125 = arith.mulf %112, %122 : vector<1x1x64xf32>
    %126 = arith.subf %124, %125 : vector<1x1x64xf32>
    %127 = vector.broadcast %122 : vector<1x1x64xf32> to vector<16x16x64xf32>
    %128 = arith.mulf %101, %127 : vector<16x16x64xf32>
    %129 = vector.broadcast %126 : vector<1x1x64xf32> to vector<16x16x64xf32>
    %130 = arith.addf %128, %129 : vector<16x16x64xf32>
    %c0_76 = arith.constant 0 : index
    %c0_77 = arith.constant 0 : index
    %c0_78 = arith.constant 0 : index
    %c0_79 = arith.constant 0 : index
    %131 = vector.load %arg1[%c0_76, %c0_77, %c0_78, %c0_79] : memref<1x16x16x64xf32, #tpu.memory_space<vmem>>, vector<1x16x16x64xf32>
    %132 = vector.shape_cast %131 : vector<1x16x16x64xf32> to vector<16x16x64xf32>
    %133 = arith.addf %130, %132 : vector<16x16x64xf32>
    %c0_80 = arith.constant 0 : index
    %c0_81 = arith.constant 0 : index
    %c0_82 = arith.constant 0 : index
    %c0_83 = arith.constant 0 : index
    %134 = vector.load %arg8[%c0_80, %c0_81, %c0_82, %c0_83] : memref<1x16x16x64xf32, #tpu.memory_space<vmem>>, vector<1x16x16x64xf32>
    %135 = vector.shape_cast %134 : vector<1x16x16x64xf32> to vector<16x16x64xf32>
    %136 = vector.shape_cast %133 : vector<16x16x64xf32> to vector<1x16x16x64xf32>
    tpu.vector_store %arg8[%c0_80, %c0_81, %c0_82, %c0_83], %136 {strides = array<i32>} : memref<1x16x16x64xf32, #tpu.memory_space<vmem>>, vector<1x16x16x64xf32>,
    return
  }
  func.func @transform_0(%arg0: i32) -> (i32, i32, i32, i32) {
    %c0_i32 = arith.constant 0 : i32
    %c0_i32_0 = arith.constant 0 : i32
    %c0_i32_1 = arith.constant 0 : i32
    %c0_i32_2 = arith.constant 0 : i32
    return %arg0, %c0_i32, %c0_i32_0, %c0_i32_1 : i32, i32, i32, i32
  }
  func.func @transform_1(%arg0: i32) -> (i32, i32, i32) {
    %c0_i32 = arith.constant 0 : i32
    %c0_i32_0 = arith.constant 0 : i32
    %c0_i32_1 = arith.constant 0 : i32
    %c0_i32_2 = arith.constant 0 : i32
    return %c0_i32, %c0_i32_0, %c0_i32_1 : i32, i32, i32
  }
  func.func @transform_2(%arg0: i32) -> (i32, i32, i32) {
    %c0_i32 = arith.constant 0 : i32
    %c0_i32_0 = arith.constant 0 : i32
    %c0_i32_1 = arith.constant 0 : i32
    %c0_i32_2 = arith.constant 0 : i32
    return %c0_i32, %c0_i32_0, %c0_i32_1 : i32, i32, i32
  }
  func.func @transform_3(%arg0: i32) -> (i32, i32) {
    %c0_i32 = arith.constant 0 : i32
    %c0_i32_0 = arith.constant 0 : i32
    %c0_i32_1 = arith.constant 0 : i32
    return %c0_i32, %c0_i32_0 : i32, i32
  }
  func.func @transform_4(%arg0: i32) -> (i32, i32) {
    %c0_i32 = arith.constant 0 : i32
    %c0_i32_0 = arith.constant 0 : i32
    %c0_i32_1 = arith.constant 0 : i32
    return %c0_i32, %c0_i32_0 : i32, i32
  }
  func.func @transform_5(%arg0: i32) -> (i32, i32) {
    %c0_i32 = arith.constant 0 : i32
    %c0_i32_0 = arith.constant 0 : i32
    %c0_i32_1 = arith.constant 0 : i32
    return %c0_i32, %c0_i32_0 : i32, i32
  }
  func.func @transform_6(%arg0: i32) -> (i32, i32) {
    %c0_i32 = arith.constant 0 : i32
    %c0_i32_0 = arith.constant 0 : i32
    %c0_i32_1 = arith.constant 0 : i32
    return %c0_i32, %c0_i32_0 : i32, i32
  }
  func.func @transform_7(%arg0: i32) -> (i32, i32, i32, i32) {
    %c0_i32 = arith.constant 0 : i32
    %c0_i32_0 = arith.constant 0 : i32
    %c0_i32_1 = arith.constant 0 : i32
    %c0_i32_2 = arith.constant 0 : i32
    return %arg0, %c0_i32, %c0_i32_0, %c0_i32_1 : i32, i32, i32, i32
  }
}

</mosaic_0001>

<llo_original>
// kernel: tpu_custom_call.1
$region0: #{tpu_custom_call.1}
  #allocation0 [shape = 'u32[]', space=smem, size = 0x4, offset = 0x4, fixed_abs, tag = 'smem constant byte address 0x4 - core index']
  #allocation1 [shape = 'u32[144,128]{1,0:T(1,128)}', space=vmem, size = 0x12000, scoped, tag = 'internal scratch']
  #allocation2 [shape = 'f32[19,24,64]{2,1,0:T(8,128)}', space=vmem, size = 0x39000, scoped, tag = 'scratch operand']
  %s0 = inlined_call_operand.hbm [shape: f32[2,16,16,64], index: 0, kind: input, shape index: {}]
  %s1 = inlined_call_operand.hbm [shape: f32[3,192,64], index: 1, kind: input, shape index: {}]
  %s2 = inlined_call_operand.hbm [shape: f32[3,192,64], index: 2, kind: input, shape index: {}]
  %s3 = inlined_call_operand.hbm [shape: f32[1,64], index: 3, kind: input, shape index: {}]
  %s4 = inlined_call_operand.hbm [shape: f32[1,64], index: 4, kind: input, shape index: {}]
  %s5 = inlined_call_operand.hbm [shape: f32[1,64], index: 5, kind: input, shape index: {}]
  %s6 = inlined_call_operand.hbm [shape: f32[1,64], index: 6, kind: input, shape index: {}]
  %s7 = inlined_call_operand.hbm [shape: f32[2,16,16,64], index: 7, kind: output, shape index: {}]
  %s8 = sld [smem:[#allocation0]]
  $region89: #{tpu_custom_call.1} parent=0
    _
  %s10 = ssub.s32 1, %s8
  %s11 = scalar_select 0, %s10, %s8
  $region1: #{tpu_custom_call.1} parent=0
    #allocation3 [shape = 'u8[262144]{0}', space=vmem, size = 0x40000, scoped, tag = 'input window, operand 0']
    #allocation4 [shape = 's32[2]{0}', space=sflag, size = 0x8, scoped, tag = 'scoped memory for tpu_custom_call.1']
    #allocation5 [shape = 's32[2]{0}', space=sflag, size = 0x8, scoped, tag = 'scoped memory for tpu_custom_call.1']
    #allocation6 [shape = 'u8[294912]{0}', space=vmem, size = 0x48000, scoped, tag = 'input window, operand 1, single buffered']
    #allocation7 [shape = 's32[1]{0}', space=sflag, size = 0x4, scoped, tag = 'scoped memory for tpu_custom_call.1']
    #allocation8 [shape = 'u8[294912]{0}', space=vmem, size = 0x48000, scoped, tag = 'input window, operand 2, single buffered']
    #allocation9 [shape = 'u8[512]{0}', space=vmem, size = 0x400, scoped, tag = 'input window, operand 3, single buffered']
    #allocation10 [shape = 's32[1]{0}', space=sflag, size = 0x4, scoped, tag = 'scoped memory for tpu_custom_call.1']
    #allocation11 [shape = 'u8[512]{0}', space=vmem, size = 0x400, scoped, tag = 'input window, operand 4, single buffered']
    #allocation12 [shape = 'u8[512]{0}', space=vmem, size = 0x400, scoped, tag = 'input window, operand 5, single buffered']
    #allocation13 [shape = 's32[1]{0}', space=sflag, size = 0x4, scoped, tag = 'scoped memory for tpu_custom_call.1']
    #allocation14 [shape = 'u8[512]{0}', space=vmem, size = 0x400, scoped, tag = 'input window, operand 6, single buffered']
    #allocation15 [shape = 'u8[262144]{0}', space=vmem, size = 0x40000, scoped, tag = 'output window, operand 0']
    %12 = vsyncpa [#allocation4], 0
    %s13 = scalar_lea.sflag [#allocation4], 1
    %14 = vsyncpa %s13, 0
    %15 = vsyncpa [#allocation7], 0
    %16 = vsyncpa [#allocation10], 0
    %17 = vsyncpa [#allocation13], 0
    %18 = vsyncpa [#allocation5], 0
    %s19 = scalar_lea.sflag [#allocation5], 1
    %20 = vsyncpa %s19, 0
    loop: start=0, step=1, limit=4
    $region2: #{tpu_custom_call.1} parent=1 // loop_pre_header
      _
    $region3: #{tpu_custom_call.1} parent=1 // loop_header
      %s22 = sphi 0, %s26
      %p23 = scmp.ge.s32.totalorder %s22, 4
      %s32 = sphi 0, %s34
      %s35 = sphi 0, %s32
      %s36 = sphi 0, %s35
      %s52 = sphi 0, %s36
      %s56 = sphi 0, %s56
      %s58 = sphi 0, %s56
      %s59 = sphi 0, %s58
      %s73 = sphi 0, %s59
      %s77 = sphi 0, %s77
      %s79 = sphi 0, %s77
      %s80 = sphi 0, %s79
      %s94 = sphi 0, %s80
      %s98 = sphi 0, %s98
      %s100 = sphi 0, %s98
      %s101 = sphi 0, %s100
      %s115 = sphi 0, %s101
      %s119 = sphi 0, %s119
      %s121 = sphi 0, %s119
      %s122 = sphi 0, %s121
      %s136 = sphi 0, %s122
      %s140 = sphi 0, %s140
      %s142 = sphi 0, %s140
      %s143 = sphi 0, %s142
      %s157 = sphi 0, %s143
      %s161 = sphi 0, %s161
      %s163 = sphi 0, %s161
      %s164 = sphi 0, %s163
      %s178 = sphi 0, %s164
      %s184 = sphi 0, %s186
      %s187 = sphi 0, %s184
      %s188 = sphi 0, %s187
      %s204 = sphi 0, %s188
    $region4: #{tpu_custom_call.1} parent=1 // loop_header_branch
      %25 = sbr.rel (%p23) target = $region8
    $region5: #{tpu_custom_call.1} parent=1 // loop_body
      %s27 = ssub.s32 %s22, 1
      %s28 = ssub.s32 %s22, 2
      %s29 = sadd.s32 %s22, 1
      %s30 = ssub.s32 %s22, %s29
      %p31 = scmp.eq.s32.totalorder %s30, 0
      %s33 = sadd.s32 %s32, 1
      %s34 = scalar_select %p31, %s32, %s33
      %p37 = pneg %p31
      %p38 = scmp.eq.s32.totalorder %s22, 1
      %p39 = por %p37, %p38
      %p40 = scmp.ne.s32.totalorder %s32, %s35
      %p41 = scmp.eq.s32.totalorder %s22, 0
      %p42 = por %p40, %p41
      %p43 = scmp.ne.s32.totalorder %s32, %s35
      %p44 = scmp.eq.s32.totalorder %s27, 1
      %p45 = por %p43, %p44
      %p46 = scmp.ne.s32.totalorder %s35, %s36
      %p47 = scmp.eq.s32.totalorder %s27, 0
      %p48 = por %p46, %p47
      %p49 = scmp.ne.s32.totalorder %s35, %s36
      %p50 = scmp.eq.s32.totalorder %s28, 1
      %p51 = por %p49, %p50
      %p53 = scmp.ne.s32.totalorder %s36, %s52
      %p54 = scmp.eq.s32.totalorder %s28, 0
      %p55 = por %p53, %p54
      %s57 = sadd.s32 %s56, 1
      %p60 = scmp.eq.s32.totalorder %s22, 1
      %p61 = scmp.ne.s32.totalorder %s56, %s58
      %p62 = scmp.eq.s32.totalorder %s22, 0
      %p63 = por %p61, %p62
      %p64 = scmp.ne.s32.totalorder %s56, %s58
      %p65 = scmp.eq.s32.totalorder %s27, 1
      %p66 = por %p64, %p65
      %p67 = scmp.ne.s32.totalorder %s58, %s59
      %p68 = scmp.eq.s32.totalorder %s27, 0
      %p69 = por %p67, %p68
      %p70 = scmp.ne.s32.totalorder %s58, %s59
      %p71 = scmp.eq.s32.totalorder %s28, 1
      %p72 = por %p70, %p71
      %p74 = scmp.ne.s32.totalorder %s59, %s73
      %p75 = scmp.eq.s32.totalorder %s28, 0
      %p76 = por %p74, %p75
      %s78 = sadd.s32 %s77, 1
      %p81 = scmp.eq.s32.totalorder %s22, 1
      %p82 = scmp.ne.s32.totalorder %s77, %s79
      %p83 = scmp.eq.s32.totalorder %s22, 0
      %p84 = por %p82, %p83
      %p85 = scmp.ne.s32.totalorder %s77, %s79
      %p86 = scmp.eq.s32.totalorder %s27, 1
      %p87 = por %p85, %p86
      %p88 = scmp.ne.s32.totalorder %s79, %s80
      %p89 = scmp.eq.s32.totalorder %s27, 0
      %p90 = por %p88, %p89
      %p91 = scmp.ne.s32.totalorder %s79, %s80
      %p92 = scmp.eq.s32.totalorder %s28, 1
      %p93 = por %p91, %p92
      %p95 = scmp.ne.s32.totalorder %s80, %s94
      %p96 = scmp.eq.s32.totalorder %s28, 0
      %p97 = por %p95, %p96
      %s99 = sadd.s32 %s98, 1
      %p102 = scmp.eq.s32.totalorder %s22, 1
      %p103 = scmp.ne.s32.totalorder %s98, %s100
      %p104 = scmp.eq.s32.totalorder %s22, 0
      %p105 = por %p103, %p104
      %p106 = scmp.ne.s32.totalorder %s98, %s100
      %p107 = scmp.eq.s32.totalorder %s27, 1
      %p108 = por %p106, %p107
      %p109 = scmp.ne.s32.totalorder %s100, %s101
      %p110 = scmp.eq.s32.totalorder %s27, 0
      %p111 = por %p109, %p110
      %p112 = scmp.ne.s32.totalorder %s100, %s101
      %p113 = scmp.eq.s32.totalorder %s28, 1
      %p114 = por %p112, %p113
      %p116 = scmp.ne.s32.totalorder %s101, %s115
      %p117 = scmp.eq.s32.totalorder %s28, 0
      %p118 = por %p116, %p117
      %s120 = sadd.s32 %s119, 1
      %p123 = scmp.eq.s32.totalorder %s22, 1
      %p124 = scmp.ne.s32.totalorder %s119, %s121
      %p125 = scmp.eq.s32.totalorder %s22, 0
      %p126 = por %p124, %p125
      %p127 = scmp.ne.s32.totalorder %s119, %s121
      %p128 = scmp.eq.s32.totalorder %s27, 1
      %p129 = por %p127, %p128
      %p130 = scmp.ne.s32.totalorder %s121, %s122
      %p131 = scmp.eq.s32.totalorder %s27, 0
      %p132 = por %p130, %p131
      %p133 = scmp.ne.s32.totalorder %s121, %s122
      %p134 = scmp.eq.s32.totalorder %s28, 1
      %p135 = por %p133, %p134
      %p137 = scmp.ne.s32.totalorder %s122, %s136
      %p138 = scmp.eq.s32.totalorder %s28, 0
      %p139 = por %p137, %p138
      %s141 = sadd.s32 %s140, 1
      %p144 = scmp.eq.s32.totalorder %s22, 1
      %p145 = scmp.ne.s32.totalorder %s140, %s142
      %p146 = scmp.eq.s32.totalorder %s22, 0
      %p147 = por %p145, %p146
      %p148 = scmp.ne.s32.totalorder %s140, %s142
      %p149 = scmp.eq.s32.totalorder %s27, 1
      %p150 = por %p148, %p149
      %p151 = scmp.ne.s32.totalorder %s142, %s143
      %p152 = scmp.eq.s32.totalorder %s27, 0
      %p153 = por %p151, %p152
      %p154 = scmp.ne.s32.totalorder %s142, %s143
      %p155 = scmp.eq.s32.totalorder %s28, 1
      %p156 = por %p154, %p155
      %p158 = scmp.ne.s32.totalorder %s143, %s157
      %p159 = scmp.eq.s32.totalorder %s28, 0
      %p160 = por %p158, %p159
      %s162 = sadd.s32 %s161, 1
      %p165 = scmp.eq.s32.totalorder %s22, 1
      %p166 = scmp.ne.s32.totalorder %s161, %s163
      %p167 = scmp.eq.s32.totalorder %s22, 0
      %p168 = por %p166, %p167
      %p169 = scmp.ne.s32.totalorder %s161, %s163
      %p170 = scmp.eq.s32.totalorder %s27, 1
      %p171 = por %p169, %p170
      %p172 = scmp.ne.s32.totalorder %s163, %s164
      %p173 = scmp.eq.s32.totalorder %s27, 0
      %p174 = por %p172, %p173
      %p175 = scmp.ne.s32.totalorder %s163, %s164
      %p176 = scmp.eq.s32.totalorder %s28, 1
      %p177 = por %p175, %p176
      %p179 = scmp.ne.s32.totalorder %s164, %s178
      %p180 = scmp.eq.s32.totalorder %s28, 0
      %p181 = por %p179, %p180
      %s182 = ssub.s32 %s22, %s29
      %p183 = scmp.eq.s32.totalorder %s182, 0
      %s185 = sadd.s32 %s184, 1
      %s186 = scalar_select %p183, %s184, %s185
      %p189 = pneg %p183
      %p190 = scmp.eq.s32.totalorder %s22, 1
      %p191 = por %p189, %p190
      %p192 = scmp.ne.s32.totalorder %s184, %s187
      %p193 = scmp.eq.s32.totalorder %s22, 0
      %p194 = por %p192, %p193
      %p195 = scmp.ne.s32.totalorder %s184, %s187
      %p196 = scmp.eq.s32.totalorder %s27, 1
      %p197 = por %p195, %p196
      %p198 = scmp.ne.s32.totalorder %s187, %s188
      %p199 = scmp.eq.s32.totalorder %s27, 0
      %p200 = por %p198, %p199
      %p201 = scmp.ne.s32.totalorder %s187, %s188
      %p202 = scmp.eq.s32.totalorder %s28, 1
      %p203 = por %p201, %p202
      %p205 = scmp.ne.s32.totalorder %s188, %s204
      %p206 = scmp.eq.s32.totalorder %s28, 0
      %p207 = por %p205, %p206
      %p208 = scmp.le.s32.totalorder 1, %s22
      %p209 = scmp.lt.s32.totalorder %s22, 3
      %p210 = pnand %p208, %p209
      %p211 = pneg %p210
      // Predicated region
      $region9: #{tpu_custom_call.1} parent=5 // pred_check
        _
      $region10: #{tpu_custom_call.1} parent=5 // pred_check_branch
        %213 = sbr.rel (%p210) target = $region12
      $region11: #{tpu_custom_call.1} parent=5 // pred_region
        %s214 = ssub.s32 %s22, 1
        // Predicated region
        $region13: #{tpu_custom_call.1} parent=11 // pred_check
          %p215 = pneg %p69
        $region14: #{tpu_custom_call.1} parent=11 // pred_check_branch
          %217 = sbr.rel (%p215) target = $region16
        $region15: #{tpu_custom_call.1} parent=11 // pred_region
          %s219 = ssub.s32 9216, 9216
          %220 = vsyncadd [#allocation7], %s219
          %s221 = sshll.u32 [#allocation6], 4
          %s222 = int_to_ptr.vmem [resolvable:$true] %s221
          %227 = dma.hbm_to_vmem [thread:$0]  %s1, 9216, %s222, [#allocation7], 128, 128, 8
        $region16: #{tpu_custom_call.1} parent=11 // pred_fallthru
          _
        // Predicated region
        $region17: #{tpu_custom_call.1} parent=11 // pred_check
          %p228 = pneg %p90
        $region18: #{tpu_custom_call.1} parent=11 // pred_check_branch
          %230 = sbr.rel (%p228) target = $region20
        $region19: #{tpu_custom_call.1} parent=11 // pred_region
          %s232 = ssub.s32 9216, 9216
          %233 = vsyncadd [#allocation7], %s232
          %s234 = sshll.u32 [#allocation8], 4
          %s235 = int_to_ptr.vmem [resolvable:$true] %s234
          %240 = dma.hbm_to_vmem [thread:$0]  %s2, 9216, %s235, [#allocation7], 128, 128, 8
        $region20: #{tpu_custom_call.1} parent=11 // pred_fallthru
          _
        // Predicated region
        $region21: #{tpu_custom_call.1} parent=11 // pred_check
          %p241 = pneg %p111
        $region22: #{tpu_custom_call.1} parent=11 // pred_check_branch
          %243 = sbr.rel (%p241) target = $region24
        $region23: #{tpu_custom_call.1} parent=11 // pred_region
          %s245 = ssub.s32 16, 16
          %246 = vsyncadd [#allocation10], %s245
          %s248 = sshll.u32 [#allocation9], 4
          %s249 = int_to_ptr.vmem [resolvable:$true] %s248
          %251 = dma.hbm_to_vmem [thread:$0]  %s3, 16, %s249, [#allocation10]
        $region24: #{tpu_custom_call.1} parent=11 // pred_fallthru
          _
        // Predicated region
        $region25: #{tpu_custom_call.1} parent=11 // pred_check
          %p252 = pneg %p132
        $region26: #{tpu_custom_call.1} parent=11 // pred_check_branch
          %254 = sbr.rel (%p252) target = $region28
        $region27: #{tpu_custom_call.1} parent=11 // pred_region
          %s256 = ssub.s32 16, 16
          %257 = vsyncadd [#allocation10], %s256
          %s259 = sshll.u32 [#allocation11], 4
          %s260 = int_to_ptr.vmem [resolvable:$true] %s259
          %262 = dma.hbm_to_vmem [thread:$0]  %s4, 16, %s260, [#allocation10]
        $region28: #{tpu_custom_call.1} parent=11 // pred_fallthru
          _
        // Predicated region
        $region29: #{tpu_custom_call.1} parent=11 // pred_check
          %p263 = pneg %p153
        $region30: #{tpu_custom_call.1} parent=11 // pred_check_branch
          %265 = sbr.rel (%p263) target = $region32
        $region31: #{tpu_custom_call.1} parent=11 // pred_region
          %s267 = ssub.s32 16, 16
          %268 = vsyncadd [#allocation13], %s267
          %s270 = sshll.u32 [#allocation12], 4
          %s271 = int_to_ptr.vmem [resolvable:$true] %s270
          %273 = dma.hbm_to_vmem [thread:$0]  %s5, 16, %s271, [#allocation13]
        $region32: #{tpu_custom_call.1} parent=11 // pred_fallthru
          _
        // Predicated region
        $region33: #{tpu_custom_call.1} parent=11 // pred_check
          %p274 = pneg %p174
        $region34: #{tpu_custom_call.1} parent=11 // pred_check_branch
          %276 = sbr.rel (%p274) target = $region36
        $region35: #{tpu_custom_call.1} parent=11 // pred_region
          %s278 = ssub.s32 16, 16
          %279 = vsyncadd [#allocation13], %s278
          %s281 = sshll.u32 [#allocation14], 4
          %s282 = int_to_ptr.vmem [resolvable:$true] %s281
          %284 = dma.hbm_to_vmem [thread:$0]  %s6, 16, %s282, [#allocation13]
        $region36: #{tpu_custom_call.1} parent=11 // pred_fallthru
          _
      $region12: #{tpu_custom_call.1} parent=5 // pred_fallthru
        _
      %p285 = scmp.lt.s32.totalorder %s22, 2
      // Predicated region
      $region37: #{tpu_custom_call.1} parent=5 // pred_check
        %p286 = pneg %p285
      $region38: #{tpu_custom_call.1} parent=5 // pred_check_branch
        %288 = sbr.rel (%p286) target = $region40
      $region39: #{tpu_custom_call.1} parent=5 // pred_region
        // Predicated region
        $region41: #{tpu_custom_call.1} parent=39 // pred_check
          %p289 = pneg %p42
        $region42: #{tpu_custom_call.1} parent=39 // pred_check_branch
          %291 = sbr.rel (%p289) target = $region44
        $region43: #{tpu_custom_call.1} parent=39 // pred_region
          %s292 = sand.u32 %s32, 1
          %s293 = scalar_lea.sflag [#allocation4], %s292
          %s294 = sand.u32 %s32, 1
          %s295 = smul.addr %s294, 256
          %s296 = scalar_lea.vmem [#allocation3], %s295
          %s298 = ssub.s32 4096, 4096
          %299 = vsyncadd %s293, %s298
          %s300 = smul.addr %s22, 32
          %s301 = smul.addr %s300, 128
          %s302 = scalar_lea.hbm %s0, %s301
          %s303 = sshll.u32 %s296, 4
          %s304 = int_to_ptr.vmem [resolvable:$true] %s303
          %309 = dma.hbm_to_vmem [thread:$0]  %s302, 4096, %s304, %s293, 128, 128, 8
        $region44: #{tpu_custom_call.1} parent=39 // pred_fallthru
          _
      $region40: #{tpu_custom_call.1} parent=5 // pred_fallthru
        _
      %p310 = scmp.le.s32.totalorder 1, %s22
      %p311 = scmp.lt.s32.totalorder %s22, 3
      %p312 = pnand %p310, %p311
      %p313 = pneg %p312
      // Predicated region
      $region45: #{tpu_custom_call.1} parent=5 // pred_check
        _
      $region46: #{tpu_custom_call.1} parent=5 // pred_check_branch
        %315 = sbr.rel (%p312) target = $region48
      $region47: #{tpu_custom_call.1} parent=5 // pred_region
        %s316 = ssub.s32 %s22, 1
        %s317 = sand.u32 %s35, 1
        %s318 = scalar_lea.sflag [#allocation4], %s317
        %s319 = sand.u32 %s35, 1
        %s320 = smul.addr %s319, 256
        %s321 = scalar_lea.vmem [#allocation3], %s320
        // Predicated region
        $region49: #{tpu_custom_call.1} parent=47 // pred_check
          %p322 = pneg %p48
        $region50: #{tpu_custom_call.1} parent=47 // pred_check_branch
          %324 = sbr.rel (%p322) target = $region52
        $region51: #{tpu_custom_call.1} parent=47 // pred_region
          %325 = dma.done %s318, 4096
        $region52: #{tpu_custom_call.1} parent=47 // pred_fallthru
          _
        // Predicated region
        $region53: #{tpu_custom_call.1} parent=47 // pred_check
          %p326 = pneg %p69
        $region54: #{tpu_custom_call.1} parent=47 // pred_check_branch
          %328 = sbr.rel (%p326) target = $region56
        $region55: #{tpu_custom_call.1} parent=47 // pred_region
          %329 = dma.done [#allocation7], 9216
        $region56: #{tpu_custom_call.1} parent=47 // pred_fallthru
          _
        // Predicated region
        $region57: #{tpu_custom_call.1} parent=47 // pred_check
          %p330 = pneg %p90
        $region58: #{tpu_custom_call.1} parent=47 // pred_check_branch
          %332 = sbr.rel (%p330) target = $region60
        $region59: #{tpu_custom_call.1} parent=47 // pred_region
          %333 = dma.done [#allocation7], 9216
        $region60: #{tpu_custom_call.1} parent=47 // pred_fallthru
          _
        // Predicated region
        $region61: #{tpu_custom_call.1} parent=47 // pred_check
          %p334 = pneg %p111
        $region62: #{tpu_custom_call.1} parent=47 // pred_check_branch
          %336 = sbr.rel (%p334) target = $region64
        $region63: #{tpu_custom_call.1} parent=47 // pred_region
          %337 = dma.done [#allocation10], 16
        $region64: #{tpu_custom_call.1} parent=47 // pred_fallthru
          _
        // Predicated region
        $region65: #{tpu_custom_call.1} parent=47 // pred_check
          %p338 = pneg %p132
        $region66: #{tpu_custom_call.1} parent=47 // pred_check_branch
          %340 = sbr.rel (%p338) target = $region68
        $region67: #{tpu_custom_call.1} parent=47 // pred_region
          %341 = dma.done [#allocation10], 16
        $region68: #{tpu_custom_call.1} parent=47 // pred_fallthru
          _
        // Predicated region
        $region69: #{tpu_custom_call.1} parent=47 // pred_check
          %p342 = pneg %p153
        $region70: #{tpu_custom_call.1} parent=47 // pred_check_branch
          %344 = sbr.rel (%p342) target = $region72
        $region71: #{tpu_custom_call.1} parent=47 // pred_region
          %345 = dma.done [#allocation13], 16
        $region72: #{tpu_custom_call.1} parent=47 // pred_fallthru
          _
        // Predicated region
        $region73: #{tpu_custom_call.1} parent=47 // pred_check
          %p346 = pneg %p174
        $region74: #{tpu_custom_call.1} parent=47 // pred_check_branch
          %348 = sbr.rel (%p346) target = $region76
        $region75: #{tpu_custom_call.1} parent=47 // pred_region
          %349 = dma.done [#allocation13], 16
        $region76: #{tpu_custom_call.1} parent=47 // pred_fallthru
          _
        %s350 = sand.u32 %s35, 1
        %s351 = scalar_lea.sflag [#allocation4], %s350
        %s352 = sand.u32 %s35, 1
        %s353 = smul.addr %s352, 256
        %s354 = scalar_lea.vmem [#allocation3], %s353
        %p355 = pneg %p48
        %p356 = pneg %p45
        %p357 = pneg %p69
        %p358 = pneg %p66
        %p359 = pneg %p90
        %p360 = pneg %p87
        %p361 = pneg %p111
        %p362 = pneg %p108
        %p363 = pneg %p132
        %p364 = pneg %p129
        %p365 = pneg %p153
        %p366 = pneg %p150
        %p367 = pneg %p174
        %p368 = pneg %p171
        %p369 = pneg %p200
        %p370 = pneg %p197
        %s371 = sand.u32 %s187, 1
        %s372 = scalar_lea.sflag [#allocation5], %s371
        %s373 = sand.u32 %s187, 1
        %s374 = smul.addr %s373, 256
        %s375 = scalar_lea.vmem [#allocation15], %s374
        %vm376 = vcmask 523264
        %377 = vst.msk [vmem:[#allocation2] sm:$0xff] %vm376, 0.0
        %378 = vst.msk [vmem:[#allocation2 + $0x8] sm:$0xff] %vm376, 0.0
        %379 = vst.msk [vmem:[#allocation2 + $0x10] sm:$0xff] %vm376, 0.0
        %s380 = scalar_lea.vmem [#allocation2], 408
        %381 = vst.msk [vmem:[%s380] sm:$0xff] %vm376, 0.0
        %382 = vst.msk [vmem:[%s380 + $0x8] sm:$0xff] %vm376, 0.0
        %383 = vst.msk [vmem:[%s380 + $0x10] sm:$0xff] %vm376, 0.0
        %384 = vst.msk [vmem:[%s380 + $0x18] sm:$0xff] %vm376, 0.0
        %385 = vst.msk [vmem:[%s380 + $0x20] sm:$0xff] %vm376, 0.0
        %386 = vst.msk [vmem:[%s380 + $0x28] sm:$0xff] %vm376, 0.0
        %s387 = scalar_lea.vmem [#allocation2], 24
        %vm388 = vcmask 516096
        %389 = vst.msk [vmem:[%s387] sm:$0x1] %vm388, 0.0
        %390 = vst.msk [vmem:[%s387 + $0x18] sm:$0x1] %vm388, 0.0
        %391 = vst.msk [vmem:[%s387 + $0x30] sm:$0x1] %vm388, 0.0
        %392 = vst.msk [vmem:[%s387 + $0x48] sm:$0x1] %vm388, 0.0
        %393 = vst.msk [vmem:[%s387 + $0x60] sm:$0x1] %vm388, 0.0
        %394 = vst.msk [vmem:[%s387 + $0x78] sm:$0x1] %vm388, 0.0
        %395 = vst.msk [vmem:[%s387 + $0x90] sm:$0x1] %vm388, 0.0
        %396 = vst.msk [vmem:[%s387 + $0xa8] sm:$0x1] %vm388, 0.0
        %397 = vst.msk [vmem:[%s387 + $0xc0] sm:$0x1] %vm388, 0.0
        %398 = vst.msk [vmem:[%s387 + $0xd8] sm:$0x1] %vm388, 0.0
        %399 = vst.msk [vmem:[%s387 + $0xf0] sm:$0x1] %vm388, 0.0
        %400 = vst.msk [vmem:[%s387 + $0x108] sm:$0x1] %vm388, 0.0
        %401 = vst.msk [vmem:[%s387 + $0x120] sm:$0x1] %vm388, 0.0
        %402 = vst.msk [vmem:[%s387 + $0x138] sm:$0x1] %vm388, 0.0
        %403 = vst.msk [vmem:[%s387 + $0x150] sm:$0x1] %vm388, 0.0
        %404 = vst.msk [vmem:[%s387 + $0x168] sm:$0x1] %vm388, 0.0
        %405 = vst.msk [vmem:[%s387 + $0x11] sm:$0x1] %vm388, 0.0
        %406 = vst.msk [vmem:[%s387 + $0x29] sm:$0x1] %vm388, 0.0
        %407 = vst.msk [vmem:[%s387 + $0x41] sm:$0x1] %vm388, 0.0
        %408 = vst.msk [vmem:[%s387 + $0x59] sm:$0x1] %vm388, 0.0
        %409 = vst.msk [vmem:[%s387 + $0x71] sm:$0x1] %vm388, 0.0
        %410 = vst.msk [vmem:[%s387 + $0x89] sm:$0x1] %vm388, 0.0
        %411 = vst.msk [vmem:[%s387 + $0xa1] sm:$0x1] %vm388, 0.0
        %412 = vst.msk [vmem:[%s387 + $0xb9] sm:$0x1] %vm388, 0.0
        %413 = vst.msk [vmem:[%s387 + $0xd1] sm:$0x1] %vm388, 0.0
        %414 = vst.msk [vmem:[%s387 + $0xe9] sm:$0x1] %vm388, 0.0
        %415 = vst.msk [vmem:[%s387 + $0x101] sm:$0x1] %vm388, 0.0
        %416 = vst.msk [vmem:[%s387 + $0x119] sm:$0x1] %vm388, 0.0
        %417 = vst.msk [vmem:[%s387 + $0x131] sm:$0x1] %vm388, 0.0
        %418 = vst.msk [vmem:[%s387 + $0x149] sm:$0x1] %vm388, 0.0
        %419 = vst.msk [vmem:[%s387 + $0x161] sm:$0x1] %vm388, 0.0
        %420 = vst.msk [vmem:[%s387 + $0x179] sm:$0x1] %vm388, 0.0
        %v421 = vld [vmem:[%s321] sm:$0xff]
        %v422 = vld [vmem:[%s321 + $0x8] sm:$0xff]
        %v423 = vld [vmem:[%s321 + $0x10] sm:$0xff]
        %v424 = vld [vmem:[%s321 + $0x18] sm:$0xff]
        %v425 = vld [vmem:[%s321 + $0x20] sm:$0xff]
        %v426 = vld [vmem:[%s321 + $0x28] sm:$0xff]
        %v427 = vld [vmem:[%s321 + $0x30] sm:$0xff]
        %v428 = vld [vmem:[%s321 + $0x38] sm:$0xff]
        %v429 = vld [vmem:[%s321 + $0x40] sm:$0xff]
        %v430 = vld [vmem:[%s321 + $0x48] sm:$0xff]
        %v431 = vld [vmem:[%s321 + $0x50] sm:$0xff]
        %v432 = vld [vmem:[%s321 + $0x58] sm:$0xff]
        %v433 = vld [vmem:[%s321 + $0x60] sm:$0xff]
        %v434 = vld [vmem:[%s321 + $0x68] sm:$0xff]
        %v435 = vld [vmem:[%s321 + $0x70] sm:$0xff]
        %v436 = vld [vmem:[%s321 + $0x78] sm:$0xff]
        %v437 = vld [vmem:[%s321 + $0x80] sm:$0xff]
        %v438 = vld [vmem:[%s321 + $0x88] sm:$0xff]
        %v439 = vld [vmem:[%s321 + $0x90] sm:$0xff]
        %v440 = vld [vmem:[%s321 + $0x98] sm:$0xff]
        %v441 = vld [vmem:[%s321 + $0xa0] sm:$0xff]
        %v442 = vld [vmem:[%s321 + $0xa8] sm:$0xff]
        %v443 = vld [vmem:[%s321 + $0xb0] sm:$0xff]
        %v444 = vld [vmem:[%s321 + $0xb8] sm:$0xff]
        %v445 = vld [vmem:[%s321 + $0xc0] sm:$0xff]
        %v446 = vld [vmem:[%s321 + $0xc8] sm:$0xff]
        %v447 = vld [vmem:[%s321 + $0xd0] sm:$0xff]
        %v448 = vld [vmem:[%s321 + $0xd8] sm:$0xff]
        %v449 = vld [vmem:[%s321 + $0xe0] sm:$0xff]
        %v450 = vld [vmem:[%s321 + $0xe8] sm:$0xff]
        %v451 = vld [vmem:[%s321 + $0xf0] sm:$0xff]
        %v452 = vld [vmem:[%s321 + $0xf8] sm:$0xff]
        %453 = vst.msk [vmem:[%s387 + $0x1] sm:$0xff] %vm376, %v421
        %454 = vst.msk [vmem:[%s387 + $0x9] sm:$0xff] %vm376, %v422
        %455 = vst.msk [vmem:[%s387 + $0x19] sm:$0xff] %vm376, %v423
        %456 = vst.msk [vmem:[%s387 + $0x21] sm:$0xff] %vm376, %v424
        %457 = vst.msk [vmem:[%s387 + $0x31] sm:$0xff] %vm376, %v425
        %458 = vst.msk [vmem:[%s387 + $0x39] sm:$0xff] %vm376, %v426
        %459 = vst.msk [vmem:[%s387 + $0x49] sm:$0xff] %vm376, %v427
        %460 = vst.msk [vmem:[%s387 + $0x51] sm:$0xff] %vm376, %v428
        %461 = vst.msk [vmem:[%s387 + $0x61] sm:$0xff] %vm376, %v429
        %462 = vst.msk [vmem:[%s387 + $0x69] sm:$0xff] %vm376, %v430
        %463 = vst.msk [vmem:[%s387 + $0x79] sm:$0xff] %vm376, %v431
        %464 = vst.msk [vmem:[%s387 + $0x81] sm:$0xff] %vm376, %v432
        %465 = vst.msk [vmem:[%s387 + $0x91] sm:$0xff] %vm376, %v433
        %466 = vst.msk [vmem:[%s387 + $0x99] sm:$0xff] %vm376, %v434
        %467 = vst.msk [vmem:[%s387 + $0xa9] sm:$0xff] %vm376, %v435
        %468 = vst.msk [vmem:[%s387 + $0xb1] sm:$0xff] %vm376, %v436
        %469 = vst.msk [vmem:[%s387 + $0xc1] sm:$0xff] %vm376, %v437
        %470 = vst.msk [vmem:[%s387 + $0xc9] sm:$0xff] %vm376, %v438
        %471 = vst.msk [vmem:[%s387 + $0xd9] sm:$0xff] %vm376, %v439
        %472 = vst.msk [vmem:[%s387 + $0xe1] sm:$0xff] %vm376, %v440
        %473 = vst.msk [vmem:[%s387 + $0xf1] sm:$0xff] %vm376, %v441
        %474 = vst.msk [vmem:[%s387 + $0xf9] sm:$0xff] %vm376, %v442
        %475 = vst.msk [vmem:[%s387 + $0x109] sm:$0xff] %vm376, %v443
        %476 = vst.msk [vmem:[%s387 + $0x111] sm:$0xff] %vm376, %v444
        %477 = vst.msk [vmem:[%s387 + $0x121] sm:$0xff] %vm376, %v445
        %478 = vst.msk [vmem:[%s387 + $0x129] sm:$0xff] %vm376, %v446
        %479 = vst.msk [vmem:[%s387 + $0x139] sm:$0xff] %vm376, %v447
        %480 = vst.msk [vmem:[%s387 + $0x141] sm:$0xff] %vm376, %v448
        %481 = vst.msk [vmem:[%s387 + $0x151] sm:$0xff] %vm376, %v449
        %482 = vst.msk [vmem:[%s387 + $0x159] sm:$0xff] %vm376, %v450
        %483 = vst.msk [vmem:[%s387 + $0x169] sm:$0xff] %vm376, %v451
        %484 = vst.msk [vmem:[%s387 + $0x171] sm:$0xff] %vm376, %v452
        %v485 = vld [vmem:[#allocation2] sm:$0xff]
        %v486 = vld [vmem:[#allocation2 + $0x8] sm:$0xff]
        %v487 = vld [vmem:[#allocation2 + $0x10] sm:$0xff]
        %v488 = vld [vmem:[#allocation2 + $0x18] sm:$0xff]
        %v489 = vld [vmem:[#allocation2 + $0x20] sm:$0xff]
        %v490 = vld [vmem:[#allocation2 + $0x28] sm:$0xff]
        %v491 = vld [vmem:[#allocation2 + $0x30] sm:$0xff]
        %v492 = vld [vmem:[#allocation2 + $0x38] sm:$0xff]
        %v493 = vld [vmem:[#allocation2 + $0x40] sm:$0xff]
        %v494 = vld [vmem:[#allocation2 + $0x48] sm:$0xff]
        %v495 = vld [vmem:[#allocation2 + $0x50] sm:$0xff]
        %v496 = vld [vmem:[#allocation2 + $0x58] sm:$0xff]
        %v497 = vld [vmem:[#allocation2 + $0x60] sm:$0xff]
        %v498 = vld [vmem:[#allocation2 + $0x68] sm:$0xff]
        %v499 = vld [vmem:[#allocation2 + $0x70] sm:$0xff]
        %v500 = vld [vmem:[#allocation2 + $0x78] sm:$0xff]
        %v501 = vld [vmem:[#allocation2 + $0x80] sm:$0xff]
        %v502 = vld [vmem:[#allocation2 + $0x88] sm:$0xff]
        %v503 = vld [vmem:[#allocation2 + $0x90] sm:$0xff]
        %v504 = vld [vmem:[#allocation2 + $0x98] sm:$0xff]
        %v505 = vld [vmem:[#allocation2 + $0xa0] sm:$0xff]
        %v506 = vld [vmem:[#allocation2 + $0xa8] sm:$0xff]
        %v507 = vld [vmem:[#allocation2 + $0xb0] sm:$0xff]
        %v508 = vld [vmem:[#allocation2 + $0xb8] sm:$0xff]
        %v509 = vld [vmem:[#allocation2 + $0xc0] sm:$0xff]
        %v510 = vld [vmem:[#allocation2 + $0xc8] sm:$0xff]
        %v511 = vld [vmem:[#allocation2 + $0xd0] sm:$0xff]
        %v512 = vld [vmem:[#allocation2 + $0xd8] sm:$0xff]
        %v513 = vld [vmem:[#allocation2 + $0xe0] sm:$0xff]
        %v514 = vld [vmem:[#allocation2 + $0xe8] sm:$0xff]
        %v515 = vld [vmem:[#allocation2 + $0xf0] sm:$0xff]
        %v516 = vld [vmem:[#allocation2 + $0xf8] sm:$0xff]
        %v517 = vld [vmem:[#allocation2 + $0x100] sm:$0xff]
        %v518 = vld [vmem:[#allocation2 + $0x108] sm:$0xff]
        %v519 = vld [vmem:[#allocation2 + $0x110] sm:$0xff]
        %v520 = vld [vmem:[#allocation2 + $0x118] sm:$0xff]
        %v521 = vld [vmem:[#allocation2 + $0x120] sm:$0xff]
        %v522 = vld [vmem:[#allocation2 + $0x128] sm:$0xff]
        %v523 = vld [vmem:[#allocation2 + $0x130] sm:$0xff]
        %v524 = vld [vmem:[#allocation2 + $0x138] sm:$0xff]
        %v525 = vld [vmem:[#allocation2 + $0x140] sm:$0xff]
        %v526 = vld [vmem:[#allocation2 + $0x148] sm:$0xff]
        %v527 = vld [vmem:[#allocation2 + $0x150] sm:$0xff]
        %v528 = vld [vmem:[#allocation2 + $0x158] sm:$0xff]
        %v529 = vld [vmem:[#allocation2 + $0x160] sm:$0xff]
        %v530 = vld [vmem:[#allocation2 + $0x168] sm:$0xff]
        %v531 = vld [vmem:[#allocation2 + $0x170] sm:$0xff]
        %v532 = vld [vmem:[#allocation2 + $0x178] sm:$0xff]
        %v533 = vld [vmem:[#allocation2 + $0x180] sm:$0xff]
        %v534 = vld [vmem:[#allocation2 + $0x188] sm:$0xff]
        %v535 = vld [vmem:[#allocation2 + $0x190] sm:$0xff]
        %v536 = vld [vmem:[#allocation2 + $0x198] sm:$0xff]
        %v537 = vld [vmem:[#allocation2 + $0x1a0] sm:$0xff]
        %v538 = vld [vmem:[#allocation2 + $0x1a8] sm:$0xff]
        %v539 = vld [vmem:[#allocation2 + $0x1b0] sm:$0xff]
        %vm589 = vcmask 1046528
        %v590 = vrot.slane %v485, 1
        %v591 = vrot.slane %v486, 1
        %v592 = vsel %vm589, %v590, %v591
        %v593 = vrot.slane %v487, 1
        %v594 = vsel %vm589, %v591, %v593
        %v595 = vrot.slane %v488, 1
        %v596 = vsel %vm589, %v593, %v595
        %v597 = vrot.slane %v489, 1
        %v598 = vsel %vm589, %v595, %v597
        %v599 = vrot.slane %v490, 1
        %v600 = vsel %vm589, %v597, %v599
        %v601 = vrot.slane %v491, 1
        %v602 = vsel %vm589, %v599, %v601
        %v603 = vrot.slane %v492, 1
        %v604 = vsel %vm589, %v601, %v603
        %v605 = vrot.slane %v493, 1
        %v606 = vsel %vm589, %v603, %v605
        %v607 = vrot.slane %v494, 1
        %v608 = vsel %vm589, %v605, %v607
        %v609 = vrot.slane %v495, 1
        %v610 = vsel %vm589, %v607, %v609
        %v611 = vrot.slane %v496, 1
        %v612 = vsel %vm589, %v609, %v611
        %v613 = vrot.slane %v497, 1
        %v614 = vsel %vm589, %v611, %v613
        %v615 = vrot.slane %v498, 1
        %v616 = vsel %vm589, %v613, %v615
        %v617 = vrot.slane %v499, 1
        %v618 = vsel %vm589, %v615, %v617
        %v619 = vrot.slane %v500, 1
        %v620 = vsel %vm589, %v617, %v619
        %v621 = vrot.slane %v501, 1
        %v622 = vsel %vm589, %v619, %v621
        %v623 = vrot.slane %v502, 1
        %v624 = vsel %vm589, %v621, %v623
        %v625 = vrot.slane %v503, 1
        %v626 = vsel %vm589, %v623, %v625
        %v627 = vrot.slane %v504, 1
        %v628 = vsel %vm589, %v625, %v627
        %v629 = vrot.slane %v505, 1
        %v630 = vsel %vm589, %v627, %v629
        %v631 = vrot.slane %v506, 1
        %v632 = vsel %vm589, %v629, %v631
        %v633 = vrot.slane %v507, 1
        %v634 = vsel %vm589, %v631, %v633
        %v635 = vrot.slane %v508, 1
        %v636 = vsel %vm589, %v633, %v635
        %v637 = vrot.slane %v509, 1
        %v638 = vsel %vm589, %v635, %v637
        %v639 = vrot.slane %v510, 1
        %v640 = vsel %vm589, %v637, %v639
        %v641 = vrot.slane %v511, 1
        %v642 = vsel %vm589, %v639, %v641
        %v643 = vrot.slane %v512, 1
        %v644 = vsel %vm589, %v641, %v643
        %v645 = vrot.slane %v513, 1
        %v646 = vsel %vm589, %v643, %v645
        %v647 = vrot.slane %v514, 1
        %v648 = vsel %vm589, %v645, %v647
        %v649 = vrot.slane %v515, 1
        %v650 = vsel %vm589, %v647, %v649
        %v651 = vrot.slane %v516, 1
        %v652 = vsel %vm589, %v649, %v651
        %v653 = vrot.slane %v517, 1
        %v654 = vsel %vm589, %v651, %v653
        %v655 = vrot.slane %v518, 1
        %v656 = vsel %vm589, %v653, %v655
        %v657 = vrot.slane %v519, 1
        %v658 = vsel %vm589, %v655, %v657
        %v659 = vrot.slane %v520, 1
        %v660 = vsel %vm589, %v657, %v659
        %v661 = vrot.slane %v521, 1
        %v662 = vsel %vm589, %v659, %v661
        %v663 = vrot.slane %v522, 1
        %v664 = vsel %vm589, %v661, %v663
        %v665 = vrot.slane %v523, 1
        %v666 = vsel %vm589, %v663, %v665
        %v667 = vrot.slane %v524, 1
        %v668 = vsel %vm589, %v665, %v667
        %v669 = vrot.slane %v525, 1
        %v670 = vsel %vm589, %v667, %v669
        %v671 = vrot.slane %v526, 1
        %v672 = vsel %vm589, %v669, %v671
        %v673 = vrot.slane %v527, 1
        %v674 = vsel %vm589, %v671, %v673
        %v675 = vrot.slane %v528, 1
        %v676 = vsel %vm589, %v673, %v675
        %v677 = vrot.slane %v529, 1
        %v678 = vsel %vm589, %v675, %v677
        %v679 = vrot.slane %v530, 1
        %v680 = vsel %vm589, %v677, %v679
        %v681 = vrot.slane %v531, 1
        %v682 = vsel %vm589, %v679, %v681
        %v683 = vrot.slane %v532, 1
        %v684 = vsel %vm589, %v681, %v683
        %v685 = vrot.slane %v533, 1
        %v686 = vsel %vm589, %v683, %v685
        %687 = vrot.lane.b32.xlu0 %v592, 64
        %v688 = vpop.permute.xlu0 %687
        %689 = vrot.lane.b32.xlu0 %v594, 64
        %v690 = vpop.permute.xlu0 %689
        %691 = vrot.lane.b32.xlu0 %v596, 64
        %v692 = vpop.permute.xlu0 %691
        %693 = vrot.lane.b32.xlu0 %v598, 64
        %v694 = vpop.permute.xlu0 %693
        %695 = vrot.lane.b32.xlu0 %v600, 64
        %v696 = vpop.permute.xlu0 %695
        %697 = vrot.lane.b32.xlu0 %v602, 64
        %v698 = vpop.permute.xlu0 %697
        %699 = vrot.lane.b32.xlu0 %v604, 64
        %v700 = vpop.permute.xlu0 %699
        %701 = vrot.lane.b32.xlu0 %v606, 64
        %v702 = vpop.permute.xlu0 %701
        %703 = vrot.lane.b32.xlu0 %v608, 64
        %v704 = vpop.permute.xlu0 %703
        %705 = vrot.lane.b32.xlu0 %v610, 64
        %v706 = vpop.permute.xlu0 %705
        %707 = vrot.lane.b32.xlu0 %v612, 64
        %v708 = vpop.permute.xlu0 %707
        %709 = vrot.lane.b32.xlu0 %v614, 64
        %v710 = vpop.permute.xlu0 %709
        %711 = vrot.lane.b32.xlu0 %v616, 64
        %v712 = vpop.permute.xlu0 %711
        %713 = vrot.lane.b32.xlu0 %v618, 64
        %v714 = vpop.permute.xlu0 %713
        %715 = vrot.lane.b32.xlu0 %v620, 64
        %v716 = vpop.permute.xlu0 %715
        %717 = vrot.lane.b32.xlu0 %v622, 64
        %v718 = vpop.permute.xlu0 %717
        %719 = vrot.lane.b32.xlu0 %v624, 64
        %v720 = vpop.permute.xlu0 %719
        %721 = vrot.lane.b32.xlu0 %v626, 64
        %v722 = vpop.permute.xlu0 %721
        %723 = vrot.lane.b32.xlu0 %v628, 64
        %v724 = vpop.permute.xlu0 %723
        %725 = vrot.lane.b32.xlu0 %v630, 64
        %v726 = vpop.permute.xlu0 %725
        %727 = vrot.lane.b32.xlu0 %v632, 64
        %v728 = vpop.permute.xlu0 %727
        %729 = vrot.lane.b32.xlu0 %v634, 64
        %v730 = vpop.permute.xlu0 %729
        %731 = vrot.lane.b32.xlu0 %v636, 64
        %v732 = vpop.permute.xlu0 %731
        %733 = vrot.lane.b32.xlu0 %v638, 64
        %v734 = vpop.permute.xlu0 %733
        %735 = vrot.lane.b32.xlu0 %v640, 64
        %v736 = vpop.permute.xlu0 %735
        %737 = vrot.lane.b32.xlu0 %v642, 64
        %v738 = vpop.permute.xlu0 %737
        %739 = vrot.lane.b32.xlu0 %v644, 64
        %v740 = vpop.permute.xlu0 %739
        %741 = vrot.lane.b32.xlu0 %v646, 64
        %v742 = vpop.permute.xlu0 %741
        %743 = vrot.lane.b32.xlu0 %v648, 64
        %v744 = vpop.permute.xlu0 %743
        %745 = vrot.lane.b32.xlu0 %v650, 64
        %v746 = vpop.permute.xlu0 %745
        %747 = vrot.lane.b32.xlu0 %v652, 64
        %v748 = vpop.permute.xlu0 %747
        %749 = vrot.lane.b32.xlu0 %v654, 64
        %v750 = vpop.permute.xlu0 %749
        %751 = vrot.lane.b32.xlu0 %v656, 64
        %v752 = vpop.permute.xlu0 %751
        %753 = vrot.lane.b32.xlu0 %v658, 64
        %v754 = vpop.permute.xlu0 %753
        %755 = vrot.lane.b32.xlu0 %v660, 64
        %v756 = vpop.permute.xlu0 %755
        %757 = vrot.lane.b32.xlu0 %v662, 64
        %v758 = vpop.permute.xlu0 %757
        %759 = vrot.lane.b32.xlu0 %v664, 64
        %v760 = vpop.permute.xlu0 %759
        %761 = vrot.lane.b32.xlu0 %v666, 64
        %v762 = vpop.permute.xlu0 %761
        %763 = vrot.lane.b32.xlu0 %v668, 64
        %v764 = vpop.permute.xlu0 %763
        %765 = vrot.lane.b32.xlu0 %v670, 64
        %v766 = vpop.permute.xlu0 %765
        %767 = vrot.lane.b32.xlu0 %v672, 64
        %v768 = vpop.permute.xlu0 %767
        %769 = vrot.lane.b32.xlu0 %v674, 64
        %v770 = vpop.permute.xlu0 %769
        %771 = vrot.lane.b32.xlu0 %v676, 64
        %v772 = vpop.permute.xlu0 %771
        %773 = vrot.lane.b32.xlu0 %v678, 64
        %v774 = vpop.permute.xlu0 %773
        %775 = vrot.lane.b32.xlu0 %v680, 64
        %v776 = vpop.permute.xlu0 %775
        %777 = vrot.lane.b32.xlu0 %v682, 64
        %v778 = vpop.permute.xlu0 %777
        %779 = vrot.lane.b32.xlu0 %v684, 64
        %v780 = vpop.permute.xlu0 %779
        %781 = vrot.lane.b32.xlu0 %v686, 64
        %v782 = vpop.permute.xlu0 %781
        %vm831 = vcmask 1045504
        %v832 = vrot.slane %v485, 2
        %v833 = vrot.slane %v486, 2
        %v834 = vsel %vm831, %v832, %v833
        %v835 = vrot.slane %v487, 2
        %v836 = vsel %vm831, %v833, %v835
        %v837 = vrot.slane %v488, 2
        %v838 = vsel %vm831, %v835, %v837
        %v839 = vrot.slane %v489, 2
        %v840 = vsel %vm831, %v837, %v839
        %v841 = vrot.slane %v490, 2
        %v842 = vsel %vm831, %v839, %v841
        %v843 = vrot.slane %v491, 2
        %v844 = vsel %vm831, %v841, %v843
        %v845 = vrot.slane %v492, 2
        %v846 = vsel %vm831, %v843, %v845
        %v847 = vrot.slane %v493, 2
        %v848 = vsel %vm831, %v845, %v847
        %v849 = vrot.slane %v494, 2
        %v850 = vsel %vm831, %v847, %v849
        %v851 = vrot.slane %v495, 2
        %v852 = vsel %vm831, %v849, %v851
        %v853 = vrot.slane %v496, 2
        %v854 = vsel %vm831, %v851, %v853
        %v855 = vrot.slane %v497, 2
        %v856 = vsel %vm831, %v853, %v855
        %v857 = vrot.slane %v498, 2
        %v858 = vsel %vm831, %v855, %v857
        %v859 = vrot.slane %v499, 2
        %v860 = vsel %vm831, %v857, %v859
        %v861 = vrot.slane %v500, 2
        %v862 = vsel %vm831, %v859, %v861
        %v863 = vrot.slane %v501, 2
        %v864 = vsel %vm831, %v861, %v863
        %v865 = vrot.slane %v502, 2
        %v866 = vsel %vm831, %v863, %v865
        %v867 = vrot.slane %v503, 2
        %v868 = vsel %vm831, %v865, %v867
        %v869 = vrot.slane %v504, 2
        %v870 = vsel %vm831, %v867, %v869
        %v871 = vrot.slane %v505, 2
        %v872 = vsel %vm831, %v869, %v871
        %v873 = vrot.slane %v506, 2
        %v874 = vsel %vm831, %v871, %v873
        %v875 = vrot.slane %v507, 2
        %v876 = vsel %vm831, %v873, %v875
        %v877 = vrot.slane %v508, 2
        %v878 = vsel %vm831, %v875, %v877
        %v879 = vrot.slane %v509, 2
        %v880 = vsel %vm831, %v877, %v879
        %v881 = vrot.slane %v510, 2
        %v882 = vsel %vm831, %v879, %v881
        %v883 = vrot.slane %v511, 2
        %v884 = vsel %vm831, %v881, %v883
        %v885 = vrot.slane %v512, 2
        %v886 = vsel %vm831, %v883, %v885
        %v887 = vrot.slane %v513, 2
        %v888 = vsel %vm831, %v885, %v887
        %v889 = vrot.slane %v514, 2
        %v890 = vsel %vm831, %v887, %v889
        %v891 = vrot.slane %v515, 2
        %v892 = vsel %vm831, %v889, %v891
        %v893 = vrot.slane %v516, 2
        %v894 = vsel %vm831, %v891, %v893
        %v895 = vrot.slane %v517, 2
        %v896 = vsel %vm831, %v893, %v895
        %v897 = vrot.slane %v518, 2
        %v898 = vsel %vm831, %v895, %v897
        %v899 = vrot.slane %v519, 2
        %v900 = vsel %vm831, %v897, %v899
        %v901 = vrot.slane %v520, 2
        %v902 = vsel %vm831, %v899, %v901
        %v903 = vrot.slane %v521, 2
        %v904 = vsel %vm831, %v901, %v903
        %v905 = vrot.slane %v522, 2
        %v906 = vsel %vm831, %v903, %v905
        %v907 = vrot.slane %v523, 2
        %v908 = vsel %vm831, %v905, %v907
        %v909 = vrot.slane %v524, 2
        %v910 = vsel %vm831, %v907, %v909
        %v911 = vrot.slane %v525, 2
        %v912 = vsel %vm831, %v909, %v911
        %v913 = vrot.slane %v526, 2
        %v914 = vsel %vm831, %v911, %v913
        %v915 = vrot.slane %v527, 2
        %v916 = vsel %vm831, %v913, %v915
        %v917 = vrot.slane %v528, 2
        %v918 = vsel %vm831, %v915, %v917
        %v919 = vrot.slane %v529, 2
        %v920 = vsel %vm831, %v917, %v919
        %v921 = vrot.slane %v530, 2
        %v922 = vsel %vm831, %v919, %v921
        %v923 = vrot.slane %v531, 2
        %v924 = vsel %vm831, %v921, %v923
        %v925 = vrot.slane %v532, 2
        %v926 = vsel %vm831, %v923, %v925
        %v927 = vrot.slane %v533, 2
        %v928 = vsel %vm831, %v925, %v927
        %v929 = vsel %vm376, %v485, %v688
        %v930 = vsel %vm376, %v486, %v690
        %v931 = vsel %vm376, %v487, %v692
        %v932 = vsel %vm376, %v488, %v694
        %v933 = vsel %vm376, %v489, %v696
        %v934 = vsel %vm376, %v490, %v698
        %v935 = vsel %vm376, %v491, %v700
        %v936 = vsel %vm376, %v492, %v702
        %v937 = vsel %vm376, %v493, %v704
        %v938 = vsel %vm376, %v494, %v706
        %v939 = vsel %vm376, %v495, %v708
        %v940 = vsel %vm376, %v496, %v710
        %v941 = vsel %vm376, %v497, %v712
        %v942 = vsel %vm376, %v498, %v714
        %v943 = vsel %vm376, %v499, %v716
        %v944 = vsel %vm376, %v500, %v718
        %v945 = vsel %vm376, %v501, %v720
        %v946 = vsel %vm376, %v502, %v722
        %v947 = vsel %vm376, %v503, %v724
        %v948 = vsel %vm376, %v504, %v726
        %v949 = vsel %vm376, %v505, %v728
        %v950 = vsel %vm376, %v506, %v730
        %v951 = vsel %vm376, %v507, %v732
        %v952 = vsel %vm376, %v508, %v734
        %v953 = vsel %vm376, %v509, %v736
        %v954 = vsel %vm376, %v510, %v738
        %v955 = vsel %vm376, %v511, %v740
        %v956 = vsel %vm376, %v512, %v742
        %v957 = vsel %vm376, %v513, %v744
        %v958 = vsel %vm376, %v514, %v746
        %v959 = vsel %vm376, %v515, %v748
        %v960 = vsel %vm376, %v516, %v750
        %v961 = vsel %vm376, %v517, %v752
        %v962 = vsel %vm376, %v518, %v754
        %v963 = vsel %vm376, %v519, %v756
        %v964 = vsel %vm376, %v520, %v758
        %v965 = vsel %vm376, %v521, %v760
        %v966 = vsel %vm376, %v522, %v762
        %v967 = vsel %vm376, %v523, %v764
        %v968 = vsel %vm376, %v524, %v766
        %v969 = vsel %vm376, %v525, %v768
        %v970 = vsel %vm376, %v526, %v770
        %v971 = vsel %vm376, %v527, %v772
        %v972 = vsel %vm376, %v528, %v774
        %v973 = vsel %vm376, %v529, %v776
        %v974 = vsel %vm376, %v530, %v778
        %v975 = vsel %vm376, %v531, %v780
        %v976 = vsel %vm376, %v532, %v782
        %v977 = vld [vmem:[#allocation6] sm:$0xff]
        %v978 = vld [vmem:[#allocation6 + $0x8] sm:$0xff]
        %v979 = vld [vmem:[#allocation6 + $0x10] sm:$0xff]
        %v980 = vld [vmem:[#allocation6 + $0x18] sm:$0xff]
        %v981 = vld [vmem:[#allocation6 + $0x20] sm:$0xff]
        %v982 = vld [vmem:[#allocation6 + $0x28] sm:$0xff]
        %v983 = vld [vmem:[#allocation6 + $0x30] sm:$0xff]
        %v984 = vld [vmem:[#allocation6 + $0x38] sm:$0xff]
        %v985 = vld [vmem:[#allocation6 + $0x40] sm:$0xff]
        %v986 = vld [vmem:[#allocation6 + $0x48] sm:$0xff]
        %v987 = vld [vmem:[#allocation6 + $0x50] sm:$0xff]
        %v988 = vld [vmem:[#allocation6 + $0x58] sm:$0xff]
        %v989 = vld [vmem:[#allocation6 + $0x60] sm:$0xff]
        %v990 = vld [vmem:[#allocation6 + $0x68] sm:$0xff]
        %v991 = vld [vmem:[#allocation6 + $0x70] sm:$0xff]
        %v992 = vld [vmem:[#allocation6 + $0x78] sm:$0xff]
        %v993 = vld [vmem:[#allocation6 + $0x80] sm:$0xff]
        %v994 = vld [vmem:[#allocation6 + $0x88] sm:$0xff]
        %v995 = vld [vmem:[#allocation6 + $0x90] sm:$0xff]
        %v996 = vld [vmem:[#allocation6 + $0x98] sm:$0xff]
        %v997 = vld [vmem:[#allocation6 + $0xa0] sm:$0xff]
        %v998 = vld [vmem:[#allocation6 + $0xa8] sm:$0xff]
        %v999 = vld [vmem:[#allocation6 + $0xb0] sm:$0xff]
        %v1000 = vld [vmem:[#allocation6 + $0xb8] sm:$0xff]
        %v1004 = vrot.slane %v534, 1
        %v1005 = vsel %vm589, %v685, %v1004
        %v1006 = vrot.slane %v535, 1
        %v1007 = vsel %vm589, %v1004, %v1006
        %v1008 = vrot.slane %v536, 1
        %v1009 = vsel %vm589, %v1006, %v1008
        %1010 = vrot.lane.b32.xlu0 %v1005, 64
        %v1011 = vpop.permute.xlu0 %1010
        %1012 = vrot.lane.b32.xlu0 %v1007, 64
        %v1013 = vpop.permute.xlu0 %1012
        %1014 = vrot.lane.b32.xlu0 %v1009, 64
        %v1015 = vpop.permute.xlu0 %1014
        %v1019 = vrot.slane %v534, 2
        %v1020 = vsel %vm831, %v927, %v1019
        %v1021 = vrot.slane %v535, 2
        %v1022 = vsel %vm831, %v1019, %v1021
        %v1023 = vrot.slane %v536, 2
        %v1024 = vsel %vm831, %v1021, %v1023
        %v1025 = vsel %vm376, %v533, %v1011
        %v1026 = vsel %vm376, %v534, %v1013
        %v1027 = vsel %vm376, %v535, %v1015
        %s1028 = scalar_lea.vmem [#allocation6], 192
        %v1029 = vld [vmem:[%s1028] sm:$0xff]
        %v1030 = vld [vmem:[%s1028 + $0x8] sm:$0xff]
        %v1031 = vld [vmem:[%s1028 + $0x10] sm:$0xff]
        %v1032 = vld [vmem:[%s1028 + $0x18] sm:$0xff]
        %v1033 = vld [vmem:[%s1028 + $0x20] sm:$0xff]
        %v1034 = vld [vmem:[%s1028 + $0x28] sm:$0xff]
        %v1035 = vld [vmem:[%s1028 + $0x30] sm:$0xff]
        %v1036 = vld [vmem:[%s1028 + $0x38] sm:$0xff]
        %v1037 = vld [vmem:[%s1028 + $0x40] sm:$0xff]
        %v1038 = vld [vmem:[%s1028 + $0x48] sm:$0xff]
        %v1039 = vld [vmem:[%s1028 + $0x50] sm:$0xff]
        %v1040 = vld [vmem:[%s1028 + $0x58] sm:$0xff]
        %v1041 = vld [vmem:[%s1028 + $0x60] sm:$0xff]
        %v1042 = vld [vmem:[%s1028 + $0x68] sm:$0xff]
        %v1043 = vld [vmem:[%s1028 + $0x70] sm:$0xff]
        %v1044 = vld [vmem:[%s1028 + $0x78] sm:$0xff]
        %v1045 = vld [vmem:[%s1028 + $0x80] sm:$0xff]
        %v1046 = vld [vmem:[%s1028 + $0x88] sm:$0xff]
        %v1047 = vld [vmem:[%s1028 + $0x90] sm:$0xff]
        %v1048 = vld [vmem:[%s1028 + $0x98] sm:$0xff]
        %v1049 = vld [vmem:[%s1028 + $0xa0] sm:$0xff]
        %v1050 = vld [vmem:[%s1028 + $0xa8] sm:$0xff]
        %v1051 = vld [vmem:[%s1028 + $0xb0] sm:$0xff]
        %v1052 = vld [vmem:[%s1028 + $0xb8] sm:$0xff]
        %v1053 = vsel %vm376, %v840, 0
        %v1055 = vsel %vm376, %v842, 0
        %v1057 = vsel %vm376, %v844, 0
        %v1059 = vsel %vm376, %v846, 0
        %v1061 = vsel %vm376, %v848, 0
        %v1063 = vsel %vm376, %v850, 0
        %v1065 = vsel %vm376, %v852, 0
        %v1067 = vsel %vm376, %v854, 0
        %v1069 = vsel %vm376, %v856, 0
        %v1071 = vsel %vm376, %v858, 0
        %v1073 = vsel %vm376, %v860, 0
        %v1075 = vsel %vm376, %v862, 0
        %v1077 = vsel %vm376, %v864, 0
        %v1079 = vsel %vm376, %v866, 0
        %v1081 = vsel %vm376, %v868, 0
        %v1083 = vsel %vm376, %v870, 0
        %v1085 = vsel %vm376, %v872, 0
        %v1087 = vsel %vm376, %v874, 0
        %v1089 = vsel %vm376, %v876, 0
        %v1091 = vsel %vm376, %v878, 0
        %v1093 = vsel %vm376, %v880, 0
        %v1095 = vsel %vm376, %v882, 0
        %v1097 = vsel %vm376, %v884, 0
        %v1099 = vsel %vm376, %v886, 0
        %v1101 = vsel %vm376, %v888, 0
        %v1103 = vsel %vm376, %v890, 0
        %v1105 = vsel %vm376, %v892, 0
        %v1107 = vsel %vm376, %v894, 0
        %v1109 = vsel %vm376, %v896, 0
        %v1111 = vsel %vm376, %v898, 0
        %v1113 = vsel %vm376, %v900, 0
        %v1115 = vsel %vm376, %v902, 0
        %v1117 = vsel %vm376, %v904, 0
        %v1119 = vsel %vm376, %v906, 0
        %v1121 = vsel %vm376, %v908, 0
        %v1123 = vsel %vm376, %v910, 0
        %v1125 = vsel %vm376, %v912, 0
        %v1127 = vsel %vm376, %v914, 0
        %v1129 = vsel %vm376, %v916, 0
        %v1131 = vsel %vm376, %v918, 0
        %v1133 = vsel %vm376, %v920, 0
        %v1135 = vsel %vm376, %v922, 0
        %v1137 = vsel %vm376, %v924, 0
        %v1139 = vsel %vm376, %v926, 0
        %v1141 = vsel %vm376, %v928, 0
        %v1143 = vsel %vm376, %v1020, 0
        %v1145 = vsel %vm376, %v1022, 0
        %v1147 = vsel %vm376, %v1024, 0
        %1149 = vmatprep.subr.mxu0 0.0
        %1150 = vmatpush1.msra.mxu0 %v1029
        %1151 = vmatprep.subr.mxu0 0.0
        %1152 = vmatpush1.msra.mxu0 %v1030
        %1153 = vmatprep.subr.mxu0 0.0
        %1154 = vmatpush1.msra.mxu0 %v1031
        %1155 = vmatprep.subr.mxu0 0.0
        %1156 = vmatpush1.msra.mxu0 %v1032
        %1157 = vmatprep.subr.mxu0 0.0
        %1158 = vmatpush1.msra.mxu0 %v1033
        %1159 = vmatprep.subr.mxu0 0.0
        %1160 = vmatpush1.msra.mxu0 %v1034
        %1161 = vmatprep.subr.mxu0 0.0
        %1162 = vmatpush1.msra.mxu0 %v1035
        %1163 = vmatprep.subr.mxu0 0.0
        %1164 = vmatpush1.msra.mxu0 %v1036
        %1165 = vmatprep.subr.mxu0 0.0
        %1166 = vmatpush1.msra.mxu0 %v1037
        %1167 = vmatprep.subr.mxu0 0.0
        %1168 = vmatpush1.msra.mxu0 %v1038
        %1169 = vmatprep.subr.mxu0 0.0
        %1170 = vmatpush1.msra.mxu0 %v1039
        %1171 = vmatprep.subr.mxu0 0.0
        %1172 = vmatpush1.msra.mxu0 %v1040
        %1173 = vmatprep.subr.mxu0 0.0
        %1174 = vmatpush1.msra.mxu0 %v1041
        %1175 = vmatprep.subr.mxu0 0.0
        %1176 = vmatpush1.msra.mxu0 %v1042
        %1177 = vmatprep.subr.mxu0 0.0
        %1178 = vmatpush1.msra.mxu0 %v1043
        %1179 = vmatprep.subr.mxu0 0.0
        %1180 = vmatpush1.msra.mxu0 %v1044
        %1181 = vmatprep.subr.mxu0 0.0
        %1182 = vmatpush1.msra.mxu0 %v1045
        %1183 = vmatprep.subr.mxu0 0.0
        %1184 = vmatpush1.msra.mxu0 %v1046
        %1185 = vmatprep.subr.mxu0 0.0
        %1186 = vmatpush1.msra.mxu0 %v1047
        %1187 = vmatprep.subr.mxu0 0.0
        %1188 = vmatpush1.msra.mxu0 %v1048
        %1189 = vmatprep.subr.mxu0 0.0
        %1190 = vmatpush1.msra.mxu0 %v1049
        %1191 = vmatprep.subr.mxu0 0.0
        %1192 = vmatpush1.msra.mxu0 %v1050
        %1193 = vmatprep.subr.mxu0 0.0
        %1194 = vmatpush1.msra.mxu0 %v1051
        %1195 = vmatprep.subr.mxu0 0.0
        %1196 = vmatpush1.msra.mxu0 %v1052
        %1197 = vmatprep.subr.mxu0 0.0
        %1198 = vmatpush1.msra.mxu0 0.0
        %1199 = vmatprep.subr.mxu0 0.0
        %1200 = vmatpush1.msra.mxu0 0.0
        %1201 = vmatprep.subr.mxu0 0.0
        %1202 = vmatpush1.msra.mxu0 0.0
        %1203 = vmatprep.subr.mxu0 0.0
        %1204 = vmatpush1.msra.mxu0 0.0
        %1205 = vmatprep.subr.mxu0 0.0
        %1206 = vmatpush1.msra.mxu0 0.0
        %1207 = vmatprep.subr.mxu0 0.0
        %1208 = vmatpush1.msra.mxu0 0.0
        %1209 = vmatprep.subr.mxu0 0.0
        %1210 = vmatpush1.msra.mxu0 0.0
        %1211 = vmatprep.subr.mxu0 0.0
        %1212 = vmatpush1.msra.mxu0 0.0
        %1213 = vmatprep.mubr.f32.mxu0 %v1053
        %1214 = vmatmul.mubr.f32.gmra.mrb[0].mxu0 %v932
        %v1215 = vpop.f32.mrb[0].mxu0
        %v1216 = vadd.f32 0.0, %v1215
        %v1217 = vpop.f32.mrb[0].mxu0
        %1218 = vmatprep.mubr.f32.mxu0 %v1055
        %1219 = vmatmul.mubr.f32.gmra.mrb[0].mxu0 %v933
        %v1220 = vpop.f32.mrb[0].mxu0
        %v1221 = vadd.f32 0.0, %v1220
        %v1222 = vpop.f32.mrb[0].mxu0
        %1223 = vmatprep.mubr.f32.mxu0 %v1057
        %1224 = vmatmul.mubr.f32.gmra.mrb[0].mxu0 %v934
        %v1225 = vpop.f32.mrb[0].mxu0
        %v1226 = vpop.f32.mrb[0].mxu0
        %1227 = vmatprep.mubr.f32.mxu0 %v1059
        %1228 = vmatmul.mubr.f32.gmra.mrb[0].mxu0 %v935
        %v1229 = vpop.f32.mrb[0].mxu0
        %v1230 = vadd.f32 0.0, %v1229
        %v1231 = vpop.f32.mrb[0].mxu0
        %1232 = vmatprep.mubr.f32.mxu0 %v1061
        %1233 = vmatmul.mubr.f32.gmra.mrb[0].mxu0 %v936
        %v1234 = vpop.f32.mrb[0].mxu0
        %v1235 = vadd.f32 0.0, %v1234
        %v1236 = vpop.f32.mrb[0].mxu0
        %1237 = vmatprep.mubr.f32.mxu0 %v1063
        %1238 = vmatmul.mubr.f32.gmra.mrb[0].mxu0 %v937
        %v1239 = vpop.f32.mrb[0].mxu0
        %v1240 = vpop.f32.mrb[0].mxu0
        %1241 = vmatprep.mubr.f32.mxu0 %v1065
        %1242 = vmatmul.mubr.f32.gmra.mrb[0].mxu0 %v938
        %v1243 = vpop.f32.mrb[0].mxu0
        %v1244 = vadd.f32 0.0, %v1243
        %v1245 = vpop.f32.mrb[0].mxu0
        %1246 = vmatprep.mubr.f32.mxu0 %v1067
        %1247 = vmatmul.mubr.f32.gmra.mrb[0].mxu0 %v939
        %v1248 = vpop.f32.mrb[0].mxu0
        %v1249 = vadd.f32 0.0, %v1248
        %v1250 = vpop.f32.mrb[0].mxu0
        %1251 = vmatprep.mubr.f32.mxu0 %v1069
        %1252 = vmatmul.mubr.f32.gmra.mrb[0].mxu0 %v940
        %v1253 = vpop.f32.mrb[0].mxu0
        %v1254 = vpop.f32.mrb[0].mxu0
        %1255 = vmatprep.mubr.f32.mxu0 %v1071
        %1256 = vmatmul.mubr.f32.gmra.mrb[0].mxu0 %v941
        %v1257 = vpop.f32.mrb[0].mxu0
        %v1258 = vadd.f32 0.0, %v1257
        %v1259 = vpop.f32.mrb[0].mxu0
        %1260 = vmatprep.mubr.f32.mxu0 %v1073
        %1261 = vmatmul.mubr.f32.gmra.mrb[0].mxu0 %v942
        %v1262 = vpop.f32.mrb[0].mxu0
        %v1263 = vadd.f32 0.0, %v1262
        %v1264 = vpop.f32.mrb[0].mxu0
        %1265 = vmatprep.mubr.f32.mxu0 %v1075
        %1266 = vmatmul.mubr.f32.gmra.mrb[0].mxu0 %v943
        %v1267 = vpop.f32.mrb[0].mxu0
        %v1268 = vpop.f32.mrb[0].mxu0
        %1269 = vmatprep.mubr.f32.mxu0 %v1077
        %1270 = vmatmul.mubr.f32.gmra.mrb[0].mxu0 %v944
        %v1271 = vpop.f32.mrb[0].mxu0
        %v1272 = vadd.f32 0.0, %v1271
        %v1273 = vpop.f32.mrb[0].mxu0
        %1274 = vmatprep.mubr.f32.mxu0 %v1079
        %1275 = vmatmul.mubr.f32.gmra.mrb[0].mxu0 %v945
        %v1276 = vpop.f32.mrb[0].mxu0
        %v1277 = vadd.f32 0.0, %v1276
        %v1278 = vpop.f32.mrb[0].mxu0
        %1279 = vmatprep.mubr.f32.mxu0 %v1081
        %1280 = vmatmul.mubr.f32.gmra.mrb[0].mxu0 %v946
        %v1281 = vpop.f32.mrb[0].mxu0
        %v1282 = vpop.f32.mrb[0].mxu0
        %1283 = vmatprep.mubr.f32.mxu0 %v1083
        %1284 = vmatmul.mubr.f32.gmra.mrb[0].mxu0 %v947
        %v1285 = vpop.f32.mrb[0].mxu0
        %v1286 = vadd.f32 0.0, %v1285
        %v1287 = vpop.f32.mrb[0].mxu0
        %1288 = vmatprep.mubr.f32.mxu0 %v1085
        %1289 = vmatmul.mubr.f32.gmra.mrb[0].mxu0 %v948
        %v1290 = vpop.f32.mrb[0].mxu0
        %v1291 = vadd.f32 0.0, %v1290
        %v1292 = vpop.f32.mrb[0].mxu0
        %1293 = vmatprep.mubr.f32.mxu0 %v1087
        %1294 = vmatmul.mubr.f32.gmra.mrb[0].mxu0 %v949
        %v1295 = vpop.f32.mrb[0].mxu0
        %v1296 = vpop.f32.mrb[0].mxu0
        %1297 = vmatprep.mubr.f32.mxu0 %v1089
        %1298 = vmatmul.mubr.f32.gmra.mrb[0].mxu0 %v950
        %v1299 = vpop.f32.mrb[0].mxu0
        %v1300 = vadd.f32 0.0, %v1299
        %v1301 = vpop.f32.mrb[0].mxu0
        %1302 = vmatprep.mubr.f32.mxu0 %v1091
        %1303 = vmatmul.mubr.f32.gmra.mrb[0].mxu0 %v951
        %v1304 = vpop.f32.mrb[0].mxu0
        %v1305 = vadd.f32 0.0, %v1304
        %v1306 = vpop.f32.mrb[0].mxu0
        %1307 = vmatprep.mubr.f32.mxu0 %v1093
        %1308 = vmatmul.mubr.f32.gmra.mrb[0].mxu0 %v952
        %v1309 = vpop.f32.mrb[0].mxu0
        %v1310 = vpop.f32.mrb[0].mxu0
        %1311 = vmatprep.mubr.f32.mxu0 %v1095
        %1312 = vmatmul.mubr.f32.gmra.mrb[0].mxu0 %v953
        %v1313 = vpop.f32.mrb[0].mxu0
        %v1314 = vadd.f32 0.0, %v1313
        %v1315 = vpop.f32.mrb[0].mxu0
        %1316 = vmatprep.mubr.f32.mxu0 %v1097
        %1317 = vmatmul.mubr.f32.gmra.mrb[0].mxu0 %v954
        %v1318 = vpop.f32.mrb[0].mxu0
        %v1319 = vadd.f32 0.0, %v1318
        %v1320 = vpop.f32.mrb[0].mxu0
        %1321 = vmatprep.mubr.f32.mxu0 %v1099
        %1322 = vmatmul.mubr.f32.gmra.mrb[0].mxu0 %v955
        %v1323 = vpop.f32.mrb[0].mxu0
        %v1324 = vpop.f32.mrb[0].mxu0
        %1325 = vmatprep.mubr.f32.mxu0 %v1101
        %1326 = vmatmul.mubr.f32.gmra.mrb[0].mxu0 %v956
        %v1327 = vpop.f32.mrb[0].mxu0
        %v1328 = vadd.f32 0.0, %v1327
        %v1329 = vpop.f32.mrb[0].mxu0
        %1330 = vmatprep.mubr.f32.mxu0 %v1103
        %1331 = vmatmul.mubr.f32.gmra.mrb[0].mxu0 %v957
        %v1332 = vpop.f32.mrb[0].mxu0
        %v1333 = vadd.f32 0.0, %v1332
        %v1334 = vpop.f32.mrb[0].mxu0
        %1335 = vmatprep.mubr.f32.mxu0 %v1105
        %1336 = vmatmul.mubr.f32.gmra.mrb[0].mxu0 %v958
        %v1337 = vpop.f32.mrb[0].mxu0
        %v1338 = vpop.f32.mrb[0].mxu0
        %1339 = vmatprep.mubr.f32.mxu0 %v1107
        %1340 = vmatmul.mubr.f32.gmra.mrb[0].mxu0 %v959
        %v1341 = vpop.f32.mrb[0].mxu0
        %v1342 = vadd.f32 0.0, %v1341
        %v1343 = vpop.f32.mrb[0].mxu0
        %1344 = vmatprep.mubr.f32.mxu0 %v1109
        %1345 = vmatmul.mubr.f32.gmra.mrb[0].mxu0 %v960
        %v1346 = vpop.f32.mrb[0].mxu0
        %v1347 = vadd.f32 0.0, %v1346
        %v1348 = vpop.f32.mrb[0].mxu0
        %1349 = vmatprep.mubr.f32.mxu0 %v1111
        %1350 = vmatmul.mubr.f32.gmra.mrb[0].mxu0 %v961
        %v1351 = vpop.f32.mrb[0].mxu0
        %v1352 = vpop.f32.mrb[0].mxu0
        %1353 = vmatprep.mubr.f32.mxu0 %v1113
        %1354 = vmatmul.mubr.f32.gmra.mrb[0].mxu0 %v962
        %v1355 = vpop.f32.mrb[0].mxu0
        %v1356 = vadd.f32 0.0, %v1355
        %v1357 = vpop.f32.mrb[0].mxu0
        %1358 = vmatprep.mubr.f32.mxu0 %v1115
        %1359 = vmatmul.mubr.f32.gmra.mrb[0].mxu0 %v963
        %v1360 = vpop.f32.mrb[0].mxu0
        %v1361 = vadd.f32 0.0, %v1360
        %v1362 = vpop.f32.mrb[0].mxu0
        %1363 = vmatprep.mubr.f32.mxu0 %v1117
        %1364 = vmatmul.mubr.f32.gmra.mrb[0].mxu0 %v964
        %v1365 = vpop.f32.mrb[0].mxu0
        %v1366 = vpop.f32.mrb[0].mxu0
        %1367 = vmatprep.mubr.f32.mxu0 %v1119
        %1368 = vmatmul.mubr.f32.gmra.mrb[0].mxu0 %v965
        %v1369 = vpop.f32.mrb[0].mxu0
        %v1370 = vadd.f32 0.0, %v1369
        %v1371 = vpop.f32.mrb[0].mxu0
        %1372 = vmatprep.mubr.f32.mxu0 %v1121
        %1373 = vmatmul.mubr.f32.gmra.mrb[0].mxu0 %v966
        %v1374 = vpop.f32.mrb[0].mxu0
        %v1375 = vadd.f32 0.0, %v1374
        %v1376 = vpop.f32.mrb[0].mxu0
        %1377 = vmatprep.mubr.f32.mxu0 %v1123
        %1378 = vmatmul.mubr.f32.gmra.mrb[0].mxu0 %v967
        %v1379 = vpop.f32.mrb[0].mxu0
        %v1380 = vpop.f32.mrb[0].mxu0
        %1381 = vmatprep.mubr.f32.mxu0 %v1125
        %1382 = vmatmul.mubr.f32.gmra.mrb[0].mxu0 %v968
        %v1383 = vpop.f32.mrb[0].mxu0
        %v1384 = vadd.f32 0.0, %v1383
        %v1385 = vpop.f32.mrb[0].mxu0
        %1386 = vmatprep.mubr.f32.mxu0 %v1127
        %1387 = vmatmul.mubr.f32.gmra.mrb[0].mxu0 %v969
        %v1388 = vpop.f32.mrb[0].mxu0
        %v1389 = vadd.f32 0.0, %v1388
        %v1390 = vpop.f32.mrb[0].mxu0
        %1391 = vmatprep.mubr.f32.mxu0 %v1129
        %1392 = vmatmul.mubr.f32.gmra.mrb[0].mxu0 %v970
        %v1393 = vpop.f32.mrb[0].mxu0
        %v1394 = vpop.f32.mrb[0].mxu0
        %1395 = vmatprep.mubr.f32.mxu0 %v1131
        %1396 = vmatmul.mubr.f32.gmra.mrb[0].mxu0 %v971
        %v1397 = vpop.f32.mrb[0].mxu0
        %v1398 = vadd.f32 0.0, %v1397
        %v1399 = vpop.f32.mrb[0].mxu0
        %1400 = vmatprep.mubr.f32.mxu0 %v1133
        %1401 = vmatmul.mubr.f32.gmra.mrb[0].mxu0 %v972
        %v1402 = vpop.f32.mrb[0].mxu0
        %v1403 = vadd.f32 0.0, %v1402
        %v1404 = vpop.f32.mrb[0].mxu0
        %1405 = vmatprep.mubr.f32.mxu0 %v1135
        %1406 = vmatmul.mubr.f32.gmra.mrb[0].mxu0 %v973
        %v1407 = vpop.f32.mrb[0].mxu0
        %v1408 = vpop.f32.mrb[0].mxu0
        %1409 = vmatprep.mubr.f32.mxu0 %v1137
        %1410 = vmatmul.mubr.f32.gmra.mrb[0].mxu0 %v974
        %v1411 = vpop.f32.mrb[0].mxu0
        %v1412 = vadd.f32 0.0, %v1411
        %v1413 = vpop.f32.mrb[0].mxu0
        %1414 = vmatprep.mubr.f32.mxu0 %v1139
        %1415 = vmatmul.mubr.f32.gmra.mrb[0].mxu0 %v975
        %v1416 = vpop.f32.mrb[0].mxu0
        %v1417 = vadd.f32 0.0, %v1416
        %v1418 = vpop.f32.mrb[0].mxu0
        %1419 = vmatprep.mubr.f32.mxu0 %v1141
        %1420 = vmatmul.mubr.f32.gmra.mrb[0].mxu0 %v976
        %v1421 = vpop.f32.mrb[0].mxu0
        %v1422 = vpop.f32.mrb[0].mxu0
        %1423 = vmatprep.mubr.f32.mxu0 %v1143
        %1424 = vmatmul.mubr.f32.gmra.mrb[0].mxu0 %v1025
        %v1425 = vpop.f32.mrb[0].mxu0
        %v1426 = vadd.f32 0.0, %v1425
        %v1427 = vpop.f32.mrb[0].mxu0
        %1428 = vmatprep.mubr.f32.mxu0 %v1145
        %1429 = vmatmul.mubr.f32.gmra.mrb[0].mxu0 %v1026
        %v1430 = vpop.f32.mrb[0].mxu0
        %v1431 = vadd.f32 0.0, %v1430
        %v1432 = vpop.f32.mrb[0].mxu0
        %1433 = vmatprep.mubr.f32.mxu0 %v1147
        %1434 = vmatmul.mubr.f32.gmra.mrb[0].mxu0 %v1027
        %v1435 = vpop.f32.mrb[0].mxu0
        %v1436 = vpop.f32.mrb[0].mxu0
        %1437 = vdwg.mxu0
        %v1438 = vsel %vm376, %v834, 0
        %v1440 = vsel %vm376, %v836, 0
        %v1442 = vsel %vm376, %v838, 0
        %1444 = vmatprep.subr.mxu0 0.0
        %1445 = vmatpush1.msra.mxu0 %v977
        %1446 = vmatprep.subr.mxu0 0.0
        %1447 = vmatpush1.msra.mxu0 %v978
        %1448 = vmatprep.subr.mxu0 0.0
        %1449 = vmatpush1.msra.mxu0 %v979
        %1450 = vmatprep.subr.mxu0 0.0
        %1451 = vmatpush1.msra.mxu0 %v980
        %1452 = vmatprep.subr.mxu0 0.0
        %1453 = vmatpush1.msra.mxu0 %v981
        %1454 = vmatprep.subr.mxu0 0.0
        %1455 = vmatpush1.msra.mxu0 %v982
        %1456 = vmatprep.subr.mxu0 0.0
        %1457 = vmatpush1.msra.mxu0 %v983
        %1458 = vmatprep.subr.mxu0 0.0
        %1459 = vmatpush1.msra.mxu0 %v984
        %1460 = vmatprep.subr.mxu0 0.0
        %1461 = vmatpush1.msra.mxu0 %v985
        %1462 = vmatprep.subr.mxu0 0.0
        %1463 = vmatpush1.msra.mxu0 %v986
        %1464 = vmatprep.subr.mxu0 0.0
        %1465 = vmatpush1.msra.mxu0 %v987
        %1466 = vmatprep.subr.mxu0 0.0
        %1467 = vmatpush1.msra.mxu0 %v988
        %1468 = vmatprep.subr.mxu0 0.0
        %1469 = vmatpush1.msra.mxu0 %v989
        %1470 = vmatprep.subr.mxu0 0.0
        %1471 = vmatpush1.msra.mxu0 %v990
        %1472 = vmatprep.subr.mxu0 0.0
        %1473 = vmatpush1.msra.mxu0 %v991
        %1474 = vmatprep.subr.mxu0 0.0
        %1475 = vmatpush1.msra.mxu0 %v992
        %1476 = vmatprep.subr.mxu0 0.0
        %1477 = vmatpush1.msra.mxu0 %v993
        %1478 = vmatprep.subr.mxu0 0.0
        %1479 = vmatpush1.msra.mxu0 %v994
        %1480 = vmatprep.subr.mxu0 0.0
        %1481 = vmatpush1.msra.mxu0 %v995
        %1482 = vmatprep.subr.mxu0 0.0
        %1483 = vmatpush1.msra.mxu0 %v996
        %1484 = vmatprep.subr.mxu0 0.0
        %1485 = vmatpush1.msra.mxu0 %v997
        %1486 = vmatprep.subr.mxu0 0.0
        %1487 = vmatpush1.msra.mxu0 %v998
        %1488 = vmatprep.subr.mxu0 0.0
        %1489 = vmatpush1.msra.mxu0 %v999
        %1490 = vmatprep.subr.mxu0 0.0
        %1491 = vmatpush1.msra.mxu0 %v1000
        %1492 = vmatprep.subr.mxu0 0.0
        %1493 = vmatpush1.msra.mxu0 0.0
        %1494 = vmatprep.subr.mxu0 0.0
        %1495 = vmatpush1.msra.mxu0 0.0
        %1496 = vmatprep.subr.mxu0 0.0
        %1497 = vmatpush1.msra.mxu0 0.0
        %1498 = vmatprep.subr.mxu0 0.0
        %1499 = vmatpush1.msra.mxu0 0.0
        %1500 = vmatprep.subr.mxu0 0.0
        %1501 = vmatpush1.msra.mxu0 0.0
        %1502 = vmatprep.subr.mxu0 0.0
        %1503 = vmatpush1.msra.mxu0 0.0
        %1504 = vmatprep.subr.mxu0 0.0
        %1505 = vmatpush1.msra.mxu0 0.0
        %1506 = vmatprep.subr.mxu0 0.0
        %1507 = vmatpush1.msra.mxu0 0.0
        %1508 = vmatprep.mubr.f32.mxu0 %v1438
        %1509 = vmatmul.mubr.f32.gmra.mrb[0].mxu0 %v929
        %v1510 = vpop.f32.mrb[0].mxu0
        %v1511 = vadd.f32 %v1216, %v1510
        %v1512 = vpop.f32.mrb[0].mxu0
        %1513 = vmatprep.mubr.f32.mxu0 %v1440
        %1514 = vmatmul.mubr.f32.gmra.mrb[0].mxu0 %v930
        %v1515 = vpop.f32.mrb[0].mxu0
        %v1516 = vadd.f32 %v1221, %v1515
        %v1517 = vpop.f32.mrb[0].mxu0
        %1518 = vmatprep.mubr.f32.mxu0 %v1442
        %1519 = vmatmul.mubr.f32.gmra.mrb[0].mxu0 %v931
        %v1520 = vpop.f32.mrb[0].mxu0
        %v1521 = vpop.f32.mrb[0].mxu0
        %1522 = vmatprep.mubr.f32.mxu0 %v1053
        %1523 = vmatmul.mubr.f32.gmra.mrb[0].mxu0 %v932
        %v1524 = vpop.f32.mrb[0].mxu0
        %v1525 = vadd.f32 %v1230, %v1524
        %v1526 = vpop.f32.mrb[0].mxu0
        %1527 = vmatprep.mubr.f32.mxu0 %v1055
        %1528 = vmatmul.mubr.f32.gmra.mrb[0].mxu0 %v933
        %v1529 = vpop.f32.mrb[0].mxu0
        %v1530 = vadd.f32 %v1235, %v1529
        %v1531 = vpop.f32.mrb[0].mxu0
        %1532 = vmatprep.mubr.f32.mxu0 %v1057
        %1533 = vmatmul.mubr.f32.gmra.mrb[0].mxu0 %v934
        %v1534 = vpop.f32.mrb[0].mxu0
        %v1535 = vpop.f32.mrb[0].mxu0
        %1536 = vmatprep.mubr.f32.mxu0 %v1059
        %1537 = vmatmul.mubr.f32.gmra.mrb[0].mxu0 %v935
        %v1538 = vpop.f32.mrb[0].mxu0
        %v1539 = vadd.f32 %v1244, %v1538
        %v1540 = vpop.f32.mrb[0].mxu0
        %1541 = vmatprep.mubr.f32.mxu0 %v1061
        %1542 = vmatmul.mubr.f32.gmra.mrb[0].mxu0 %v936
        %v1543 = vpop.f32.mrb[0].mxu0
        %v1544 = vadd.f32 %v1249, %v1543
        %v1545 = vpop.f32.mrb[0].mxu0
        %1546 = vmatprep.mubr.f32.mxu0 %v1063
        %1547 = vmatmul.mubr.f32.gmra.mrb[0].mxu0 %v937
        %v1548 = vpop.f32.mrb[0].mxu0
        %v1549 = vpop.f32.mrb[0].mxu0
        %1550 = vmatprep.mubr.f32.mxu0 %v1065
        %1551 = vmatmul.mubr.f32.gmra.mrb[0].mxu0 %v938
        %v1552 = vpop.f32.mrb[0].mxu0
        %v1553 = vadd.f32 %v1258, %v1552
        %v1554 = vpop.f32.mrb[0].mxu0
        %1555 = vmatprep.mubr.f32.mxu0 %v1067
        %1556 = vmatmul.mubr.f32.gmra.mrb[0].mxu0 %v939
        %v1557 = vpop.f32.mrb[0].mxu0
        %v1558 = vadd.f32 %v1263, %v1557
        %v1559 = vpop.f32.mrb[0].mxu0
        %1560 = vmatprep.mubr.f32.mxu0 %v1069
        %1561 = vmatmul.mubr.f32.gmra.mrb[0].mxu0 %v940
        %v1562 = vpop.f32.mrb[0].mxu0
        %v1563 = vpop.f32.mrb[0].mxu0
        %1564 = vmatprep.mubr.f32.mxu0 %v1071
        %1565 = vmatmul.mubr.f32.gmra.mrb[0].mxu0 %v941
        %v1566 = vpop.f32.mrb[0].mxu0
        %v1567 = vadd.f32 %v1272, %v1566
        %v1568 = vpop.f32.mrb[0].mxu0
        %1569 = vmatprep.mubr.f32.mxu0 %v1073
        %1570 = vmatmul.mubr.f32.gmra.mrb[0].mxu0 %v942
        %v1571 = vpop.f32.mrb[0].mxu0
        %v1572 = vadd.f32 %v1277, %v1571
        %v1573 = vpop.f32.mrb[0].mxu0
        %1574 = vmatprep.mubr.f32.mxu0 %v1075
        %1575 = vmatmul.mubr.f32.gmra.mrb[0].mxu0 %v943
        %v1576 = vpop.f32.mrb[0].mxu0
        %v1577 = vpop.f32.mrb[0].mxu0
        %1578 = vmatprep.mubr.f32.mxu0 %v1077
        %1579 = vmatmul.mubr.f32.gmra.mrb[0].mxu0 %v944
        %v1580 = vpop.f32.mrb[0].mxu0
        %v1581 = vadd.f32 %v1286, %v1580
        %v1582 = vpop.f32.mrb[0].mxu0
        %1583 = vmatprep.mubr.f32.mxu0 %v1079
        %1584 = vmatmul.mubr.f32.gmra.mrb[0].mxu0 %v945
        %v1585 = vpop.f32.mrb[0].mxu0
        %v1586 = vadd.f32 %v1291, %v1585
        %v1587 = vpop.f32.mrb[0].mxu0
        %1588 = vmatprep.mubr.f32.mxu0 %v1081
        %1589 = vmatmul.mubr.f32.gmra.mrb[0].mxu0 %v946
        %v1590 = vpop.f32.mrb[0].mxu0
        %v1591 = vpop.f32.mrb[0].mxu0
        %1592 = vmatprep.mubr.f32.mxu0 %v1083
        %1593 = vmatmul.mubr.f32.gmra.mrb[0].mxu0 %v947
        %v1594 = vpop.f32.mrb[0].mxu0
        %v1595 = vadd.f32 %v1300, %v1594
        %v1596 = vpop.f32.mrb[0].mxu0
        %1597 = vmatprep.mubr.f32.mxu0 %v1085
        %1598 = vmatmul.mubr.f32.gmra.mrb[0].mxu0 %v948
        %v1599 = vpop.f32.mrb[0].mxu0
        %v1600 = vadd.f32 %v1305, %v1599
        %v1601 = vpop.f32.mrb[0].mxu0
        %1602 = vmatprep.mubr.f32.mxu0 %v1087
        %1603 = vmatmul.mubr.f32.gmra.mrb[0].mxu0 %v949
        %v1604 = vpop.f32.mrb[0].mxu0
        %v1605 = vpop.f32.mrb[0].mxu0
        %1606 = vmatprep.mubr.f32.mxu0 %v1089
        %1607 = vmatmul.mubr.f32.gmra.mrb[0].mxu0 %v950
        %v1608 = vpop.f32.mrb[0].mxu0
        %v1609 = vadd.f32 %v1314, %v1608
        %v1610 = vpop.f32.mrb[0].mxu0
        %1611 = vmatprep.mubr.f32.mxu0 %v1091
        %1612 = vmatmul.mubr.f32.gmra.mrb[0].mxu0 %v951
        %v1613 = vpop.f32.mrb[0].mxu0
        %v1614 = vadd.f32 %v1319, %v1613
        %v1615 = vpop.f32.mrb[0].mxu0
        %1616 = vmatprep.mubr.f32.mxu0 %v1093
        %1617 = vmatmul.mubr.f32.gmra.mrb[0].mxu0 %v952
        %v1618 = vpop.f32.mrb[0].mxu0
        %v1619 = vpop.f32.mrb[0].mxu0
        %1620 = vmatprep.mubr.f32.mxu0 %v1095
        %1621 = vmatmul.mubr.f32.gmra.mrb[0].mxu0 %v953
        %v1622 = vpop.f32.mrb[0].mxu0
        %v1623 = vadd.f32 %v1328, %v1622
        %v1624 = vpop.f32.mrb[0].mxu0
        %1625 = vmatprep.mubr.f32.mxu0 %v1097
        %1626 = vmatmul.mubr.f32.gmra.mrb[0].mxu0 %v954
        %v1627 = vpop.f32.mrb[0].mxu0
        %v1628 = vadd.f32 %v1333, %v1627
        %v1629 = vpop.f32.mrb[0].mxu0
        %1630 = vmatprep.mubr.f32.mxu0 %v1099
        %1631 = vmatmul.mubr.f32.gmra.mrb[0].mxu0 %v955
        %v1632 = vpop.f32.mrb[0].mxu0
        %v1633 = vpop.f32.mrb[0].mxu0
        %1634 = vmatprep.mubr.f32.mxu0 %v1101
        %1635 = vmatmul.mubr.f32.gmra.mrb[0].mxu0 %v956
        %v1636 = vpop.f32.mrb[0].mxu0
        %v1637 = vadd.f32 %v1342, %v1636
        %v1638 = vpop.f32.mrb[0].mxu0
        %1639 = vmatprep.mubr.f32.mxu0 %v1103
        %1640 = vmatmul.mubr.f32.gmra.mrb[0].mxu0 %v957
        %v1641 = vpop.f32.mrb[0].mxu0
        %v1642 = vadd.f32 %v1347, %v1641
        %v1643 = vpop.f32.mrb[0].mxu0
        %1644 = vmatprep.mubr.f32.mxu0 %v1105
        %1645 = vmatmul.mubr.f32.gmra.mrb[0].mxu0 %v958
        %v1646 = vpop.f32.mrb[0].mxu0
        %v1647 = vpop.f32.mrb[0].mxu0
        %1648 = vmatprep.mubr.f32.mxu0 %v1107
        %1649 = vmatmul.mubr.f32.gmra.mrb[0].mxu0 %v959
        %v1650 = vpop.f32.mrb[0].mxu0
        %v1651 = vadd.f32 %v1356, %v1650
        %v1652 = vpop.f32.mrb[0].mxu0
        %1653 = vmatprep.mubr.f32.mxu0 %v1109
        %1654 = vmatmul.mubr.f32.gmra.mrb[0].mxu0 %v960
        %v1655 = vpop.f32.mrb[0].mxu0
        %v1656 = vadd.f32 %v1361, %v1655
        %v1657 = vpop.f32.mrb[0].mxu0
        %1658 = vmatprep.mubr.f32.mxu0 %v1111
        %1659 = vmatmul.mubr.f32.gmra.mrb[0].mxu0 %v961
        %v1660 = vpop.f32.mrb[0].mxu0
        %v1661 = vpop.f32.mrb[0].mxu0
        %1662 = vmatprep.mubr.f32.mxu0 %v1113
        %1663 = vmatmul.mubr.f32.gmra.mrb[0].mxu0 %v962
        %v1664 = vpop.f32.mrb[0].mxu0
        %v1665 = vadd.f32 %v1370, %v1664
        %v1666 = vpop.f32.mrb[0].mxu0
        %1667 = vmatprep.mubr.f32.mxu0 %v1115
        %1668 = vmatmul.mubr.f32.gmra.mrb[0].mxu0 %v963
        %v1669 = vpop.f32.mrb[0].mxu0
        %v1670 = vadd.f32 %v1375, %v1669
        %v1671 = vpop.f32.mrb[0].mxu0
        %1672 = vmatprep.mubr.f32.mxu0 %v1117
        %1673 = vmatmul.mubr.f32.gmra.mrb[0].mxu0 %v964
        %v1674 = vpop.f32.mrb[0].mxu0
        %v1675 = vpop.f32.mrb[0].mxu0
        %1676 = vmatprep.mubr.f32.mxu0 %v1119
        %1677 = vmatmul.mubr.f32.gmra.mrb[0].mxu0 %v965
        %v1678 = vpop.f32.mrb[0].mxu0
        %v1679 = vadd.f32 %v1384, %v1678
        %v1680 = vpop.f32.mrb[0].mxu0
        %1681 = vmatprep.mubr.f32.mxu0 %v1121
        %1682 = vmatmul.mubr.f32.gmra.mrb[0].mxu0 %v966
        %v1683 = vpop.f32.mrb[0].mxu0
        %v1684 = vadd.f32 %v1389, %v1683
        %v1685 = vpop.f32.mrb[0].mxu0
        %1686 = vmatprep.mubr.f32.mxu0 %v1123
        %1687 = vmatmul.mubr.f32.gmra.mrb[0].mxu0 %v967
        %v1688 = vpop.f32.mrb[0].mxu0
        %v1689 = vpop.f32.mrb[0].mxu0
        %1690 = vmatprep.mubr.f32.mxu0 %v1125
        %1691 = vmatmul.mubr.f32.gmra.mrb[0].mxu0 %v968
        %v1692 = vpop.f32.mrb[0].mxu0
        %v1693 = vadd.f32 %v1398, %v1692
        %v1694 = vpop.f32.mrb[0].mxu0
        %1695 = vmatprep.mubr.f32.mxu0 %v1127
        %1696 = vmatmul.mubr.f32.gmra.mrb[0].mxu0 %v969
        %v1697 = vpop.f32.mrb[0].mxu0
        %v1698 = vadd.f32 %v1403, %v1697
        %v1699 = vpop.f32.mrb[0].mxu0
        %1700 = vmatprep.mubr.f32.mxu0 %v1129
        %1701 = vmatmul.mubr.f32.gmra.mrb[0].mxu0 %v970
        %v1702 = vpop.f32.mrb[0].mxu0
        %v1703 = vpop.f32.mrb[0].mxu0
        %1704 = vmatprep.mubr.f32.mxu0 %v1131
        %1705 = vmatmul.mubr.f32.gmra.mrb[0].mxu0 %v971
        %v1706 = vpop.f32.mrb[0].mxu0
        %v1707 = vadd.f32 %v1412, %v1706
        %v1708 = vpop.f32.mrb[0].mxu0
        %1709 = vmatprep.mubr.f32.mxu0 %v1133
        %1710 = vmatmul.mubr.f32.gmra.mrb[0].mxu0 %v972
        %v1711 = vpop.f32.mrb[0].mxu0
        %v1712 = vadd.f32 %v1417, %v1711
        %v1713 = vpop.f32.mrb[0].mxu0
        %1714 = vmatprep.mubr.f32.mxu0 %v1135
        %1715 = vmatmul.mubr.f32.gmra.mrb[0].mxu0 %v973
        %v1716 = vpop.f32.mrb[0].mxu0
        %v1717 = vpop.f32.mrb[0].mxu0
        %1718 = vmatprep.mubr.f32.mxu0 %v1137
        %1719 = vmatmul.mubr.f32.gmra.mrb[0].mxu0 %v974
        %v1720 = vpop.f32.mrb[0].mxu0
        %v1721 = vadd.f32 %v1426, %v1720
        %v1722 = vpop.f32.mrb[0].mxu0
        %1723 = vmatprep.mubr.f32.mxu0 %v1139
        %1724 = vmatmul.mubr.f32.gmra.mrb[0].mxu0 %v975
        %v1725 = vpop.f32.mrb[0].mxu0
        %v1726 = vadd.f32 %v1431, %v1725
        %v1727 = vpop.f32.mrb[0].mxu0
        %1728 = vmatprep.mubr.f32.mxu0 %v1141
        %1729 = vmatmul.mubr.f32.gmra.mrb[0].mxu0 %v976
        %v1730 = vpop.f32.mrb[0].mxu0
        %v1731 = vpop.f32.mrb[0].mxu0
        %1732 = vdwg.mxu0
        %v1736 = vrot.slane %v537, 1
        %v1737 = vsel %vm589, %v1008, %v1736
        %v1738 = vrot.slane %v538, 1
        %v1739 = vsel %vm589, %v1736, %v1738
        %v1740 = vrot.slane %v539, 1
        %v1741 = vsel %vm589, %v1738, %v1740
        %1742 = vrot.lane.b32.xlu0 %v1737, 64
        %v1743 = vpop.permute.xlu0 %1742
        %1744 = vrot.lane.b32.xlu0 %v1739, 64
        %v1745 = vpop.permute.xlu0 %1744
        %1746 = vrot.lane.b32.xlu0 %v1741, 64
        %v1747 = vpop.permute.xlu0 %1746
        %v1751 = vrot.slane %v537, 2
        %v1752 = vsel %vm831, %v1023, %v1751
        %v1753 = vrot.slane %v538, 2
        %v1754 = vsel %vm831, %v1751, %v1753
        %v1755 = vrot.slane %v539, 2
        %v1756 = vsel %vm831, %v1753, %v1755
        %v1757 = vsel %vm376, %v536, %v1743
        %v1758 = vsel %vm376, %v537, %v1745
        %v1759 = vsel %vm376, %v538, %v1747
        %s1760 = scalar_lea.vmem [#allocation6], 384
        %v1761 = vld [vmem:[%s1760] sm:$0xff]
        %v1762 = vld [vmem:[%s1760 + $0x8] sm:$0xff]
        %v1763 = vld [vmem:[%s1760 + $0x10] sm:$0xff]
        %v1764 = vld [vmem:[%s1760 + $0x18] sm:$0xff]
        %v1765 = vld [vmem:[%s1760 + $0x20] sm:$0xff]
        %v1766 = vld [vmem:[%s1760 + $0x28] sm:$0xff]
        %v1767 = vld [vmem:[%s1760 + $0x30] sm:$0xff]
        %v1768 = vld [vmem:[%s1760 + $0x38] sm:$0xff]
        %v1769 = vld [vmem:[%s1760 + $0x40] sm:$0xff]
        %v1770 = vld [vmem:[%s1760 + $0x48] sm:$0xff]
        %v1771 = vld [vmem:[%s1760 + $0x50] sm:$0xff]
        %v1772 = vld [vmem:[%s1760 + $0x58] sm:$0xff]
        %v1773 = vld [vmem:[%s1760 + $0x60] sm:$0xff]
        %v1774 = vld [vmem:[%s1760 + $0x68] sm:$0xff]
        %v1775 = vld [vmem:[%s1760 + $0x70] sm:$0xff]
        %v1776 = vld [vmem:[%s1760 + $0x78] sm:$0xff]
        %v1777 = vld [vmem:[%s1760 + $0x80] sm:$0xff]
        %v1778 = vld [vmem:[%s1760 + $0x88] sm:$0xff]
        %v1779 = vld [vmem:[%s1760 + $0x90] sm:$0xff]
        %v1780 = vld [vmem:[%s1760 + $0x98] sm:$0xff]
        %v1781 = vld [vmem:[%s1760 + $0xa0] sm:$0xff]
        %v1782 = vld [vmem:[%s1760 + $0xa8] sm:$0xff]
        %v1783 = vld [vmem:[%s1760 + $0xb0] sm:$0xff]
        %v1784 = vld [vmem:[%s1760 + $0xb8] sm:$0xff]
        %v1785 = vsel %vm376, %v1752, 0
        %v1787 = vsel %vm376, %v1754, 0
        %v1789 = vsel %vm376, %v1756, 0
        %1791 = vmatprep.subr.mxu0 0.0
        %1792 = vmatpush1.msra.mxu0 %v1761
        %1793 = vmatprep.subr.mxu0 0.0
        %1794 = vmatpush1.msra.mxu0 %v1762
        %1795 = vmatprep.subr.mxu0 0.0
        %1796 = vmatpush1.msra.mxu0 %v1763
        %1797 = vmatprep.subr.mxu0 0.0
        %1798 = vmatpush1.msra.mxu0 %v1764
        %1799 = vmatprep.subr.mxu0 0.0
        %1800 = vmatpush1.msra.mxu0 %v1765
        %1801 = vmatprep.subr.mxu0 0.0
        %1802 = vmatpush1.msra.mxu0 %v1766
        %1803 = vmatprep.subr.mxu0 0.0
        %1804 = vmatpush1.msra.mxu0 %v1767
        %1805 = vmatprep.subr.mxu0 0.0
        %1806 = vmatpush1.msra.mxu0 %v1768
        %1807 = vmatprep.subr.mxu0 0.0
        %1808 = vmatpush1.msra.mxu0 %v1769
        %1809 = vmatprep.subr.mxu0 0.0
        %1810 = vmatpush1.msra.mxu0 %v1770
        %1811 = vmatprep.subr.mxu0 0.0
        %1812 = vmatpush1.msra.mxu0 %v1771
        %1813 = vmatprep.subr.mxu0 0.0
        %1814 = vmatpush1.msra.mxu0 %v1772
        %1815 = vmatprep.subr.mxu0 0.0
        %1816 = vmatpush1.msra.mxu0 %v1773
        %1817 = vmatprep.subr.mxu0 0.0
        %1818 = vmatpush1.msra.mxu0 %v1774
        %1819 = vmatprep.subr.mxu0 0.0
        %1820 = vmatpush1.msra.mxu0 %v1775
        %1821 = vmatprep.subr.mxu0 0.0
        %1822 = vmatpush1.msra.mxu0 %v1776
        %1823 = vmatprep.subr.mxu0 0.0
        %1824 = vmatpush1.msra.mxu0 %v1777
        %1825 = vmatprep.subr.mxu0 0.0
        %1826 = vmatpush1.msra.mxu0 %v1778
        %1827 = vmatprep.subr.mxu0 0.0
        %1828 = vmatpush1.msra.mxu0 %v1779
        %1829 = vmatprep.subr.mxu0 0.0
        %1830 = vmatpush1.msra.mxu0 %v1780
        %1831 = vmatprep.subr.mxu0 0.0
        %1832 = vmatpush1.msra.mxu0 %v1781
        %1833 = vmatprep.subr.mxu0 0.0
        %1834 = vmatpush1.msra.mxu0 %v1782
        %1835 = vmatprep.subr.mxu0 0.0
        %1836 = vmatpush1.msra.mxu0 %v1783
        %1837 = vmatprep.subr.mxu0 0.0
        %1838 = vmatpush1.msra.mxu0 %v1784
        %1839 = vmatprep.subr.mxu0 0.0
        %1840 = vmatpush1.msra.mxu0 0.0
        %1841 = vmatprep.subr.mxu0 0.0
        %1842 = vmatpush1.msra.mxu0 0.0
        %1843 = vmatprep.subr.mxu0 0.0
        %1844 = vmatpush1.msra.mxu0 0.0
        %1845 = vmatprep.subr.mxu0 0.0
        %1846 = vmatpush1.msra.mxu0 0.0
        %1847 = vmatprep.subr.mxu0 0.0
        %1848 = vmatpush1.msra.mxu0 0.0
        %1849 = vmatprep.subr.mxu0 0.0
        %1850 = vmatpush1.msra.mxu0 0.0
        %1851 = vmatprep.subr.mxu0 0.0
        %1852 = vmatpush1.msra.mxu0 0.0
        %1853 = vmatprep.subr.mxu0 0.0
        %1854 = vmatpush1.msra.mxu0 0.0
        %1855 = vmatprep.mubr.f32.mxu0 %v1059
        %1856 = vmatmul.mubr.f32.gmra.mrb[0].mxu0 %v935
        %v1857 = vpop.f32.mrb[0].mxu0
        %v1858 = vadd.f32 0.0, %v1857
        %v1859 = vpop.f32.mrb[0].mxu0
        %1860 = vmatprep.mubr.f32.mxu0 %v1061
        %1861 = vmatmul.mubr.f32.gmra.mrb[0].mxu0 %v936
        %v1862 = vpop.f32.mrb[0].mxu0
        %v1863 = vadd.f32 0.0, %v1862
        %v1864 = vpop.f32.mrb[0].mxu0
        %1865 = vmatprep.mubr.f32.mxu0 %v1063
        %1866 = vmatmul.mubr.f32.gmra.mrb[0].mxu0 %v937
        %v1867 = vpop.f32.mrb[0].mxu0
        %v1868 = vpop.f32.mrb[0].mxu0
        %1869 = vmatprep.mubr.f32.mxu0 %v1065
        %1870 = vmatmul.mubr.f32.gmra.mrb[0].mxu0 %v938
        %v1871 = vpop.f32.mrb[0].mxu0
        %v1872 = vadd.f32 0.0, %v1871
        %v1873 = vpop.f32.mrb[0].mxu0
        %1874 = vmatprep.mubr.f32.mxu0 %v1067
        %1875 = vmatmul.mubr.f32.gmra.mrb[0].mxu0 %v939
        %v1876 = vpop.f32.mrb[0].mxu0
        %v1877 = vadd.f32 0.0, %v1876
        %v1878 = vpop.f32.mrb[0].mxu0
        %1879 = vmatprep.mubr.f32.mxu0 %v1069
        %1880 = vmatmul.mubr.f32.gmra.mrb[0].mxu0 %v940
        %v1881 = vpop.f32.mrb[0].mxu0
        %v1882 = vpop.f32.mrb[0].mxu0
        %1883 = vmatprep.mubr.f32.mxu0 %v1071
        %1884 = vmatmul.mubr.f32.gmra.mrb[0].mxu0 %v941
        %v1885 = vpop.f32.mrb[0].mxu0
        %v1886 = vadd.f32 0.0, %v1885
        %v1887 = vpop.f32.mrb[0].mxu0
        %1888 = vmatprep.mubr.f32.mxu0 %v1073
        %1889 = vmatmul.mubr.f32.gmra.mrb[0].mxu0 %v942
        %v1890 = vpop.f32.mrb[0].mxu0
        %v1891 = vadd.f32 0.0, %v1890
        %v1892 = vpop.f32.mrb[0].mxu0
        %1893 = vmatprep.mubr.f32.mxu0 %v1075
        %1894 = vmatmul.mubr.f32.gmra.mrb[0].mxu0 %v943
        %v1895 = vpop.f32.mrb[0].mxu0
        %v1896 = vpop.f32.mrb[0].mxu0
        %1897 = vmatprep.mubr.f32.mxu0 %v1077
        %1898 = vmatmul.mubr.f32.gmra.mrb[0].mxu0 %v944
        %v1899 = vpop.f32.mrb[0].mxu0
        %v1900 = vadd.f32 0.0, %v1899
        %v1901 = vpop.f32.mrb[0].mxu0
        %1902 = vmatprep.mubr.f32.mxu0 %v1079
        %1903 = vmatmul.mubr.f32.gmra.mrb[0].mxu0 %v945
        %v1904 = vpop.f32.mrb[0].mxu0
        %v1905 = vadd.f32 0.0, %v1904
        %v1906 = vpop.f32.mrb[0].mxu0
        %1907 = vmatprep.mubr.f32.mxu0 %v1081
        %1908 = vmatmul.mubr.f32.gmra.mrb[0].mxu0 %v946
        %v1909 = vpop.f32.mrb[0].mxu0
        %v1910 = vpop.f32.mrb[0].mxu0
        %1911 = vmatprep.mubr.f32.mxu0 %v1083
        %1912 = vmatmul.mubr.f32.gmra.mrb[0].mxu0 %v947
        %v1913 = vpop.f32.mrb[0].mxu0
        %v1914 = vadd.f32 0.0, %v1913
        %v1915 = vpop.f32.mrb[0].mxu0
        %1916 = vmatprep.mubr.f32.mxu0 %v1085
        %1917 = vmatmul.mubr.f32.gmra.mrb[0].mxu0 %v948
        %v1918 = vpop.f32.mrb[0].mxu0
        %v1919 = vadd.f32 0.0, %v1918
        %v1920 = vpop.f32.mrb[0].mxu0
        %1921 = vmatprep.mubr.f32.mxu0 %v1087
        %1922 = vmatmul.mubr.f32.gmra.mrb[0].mxu0 %v949
        %v1923 = vpop.f32.mrb[0].mxu0
        %v1924 = vpop.f32.mrb[0].mxu0
        %1925 = vmatprep.mubr.f32.mxu0 %v1089
        %1926 = vmatmul.mubr.f32.gmra.mrb[0].mxu0 %v950
        %v1927 = vpop.f32.mrb[0].mxu0
        %v1928 = vadd.f32 0.0, %v1927
        %v1929 = vpop.f32.mrb[0].mxu0
        %1930 = vmatprep.mubr.f32.mxu0 %v1091
        %1931 = vmatmul.mubr.f32.gmra.mrb[0].mxu0 %v951
        %v1932 = vpop.f32.mrb[0].mxu0
        %v1933 = vadd.f32 0.0, %v1932
        %v1934 = vpop.f32.mrb[0].mxu0
        %1935 = vmatprep.mubr.f32.mxu0 %v1093
        %1936 = vmatmul.mubr.f32.gmra.mrb[0].mxu0 %v952
        %v1937 = vpop.f32.mrb[0].mxu0
        %v1938 = vpop.f32.mrb[0].mxu0
        %1939 = vmatprep.mubr.f32.mxu0 %v1095
        %1940 = vmatmul.mubr.f32.gmra.mrb[0].mxu0 %v953
        %v1941 = vpop.f32.mrb[0].mxu0
        %v1942 = vadd.f32 0.0, %v1941
        %v1943 = vpop.f32.mrb[0].mxu0
        %1944 = vmatprep.mubr.f32.mxu0 %v1097
        %1945 = vmatmul.mubr.f32.gmra.mrb[0].mxu0 %v954
        %v1946 = vpop.f32.mrb[0].mxu0
        %v1947 = vadd.f32 0.0, %v1946
        %v1948 = vpop.f32.mrb[0].mxu0
        %1949 = vmatprep.mubr.f32.mxu0 %v1099
        %1950 = vmatmul.mubr.f32.gmra.mrb[0].mxu0 %v955
        %v1951 = vpop.f32.mrb[0].mxu0
        %v1952 = vpop.f32.mrb[0].mxu0
        %1953 = vmatprep.mubr.f32.mxu0 %v1101
        %1954 = vmatmul.mubr.f32.gmra.mrb[0].mxu0 %v956
        %v1955 = vpop.f32.mrb[0].mxu0
        %v1956 = vadd.f32 0.0, %v1955
        %v1957 = vpop.f32.mrb[0].mxu0
        %1958 = vmatprep.mubr.f32.mxu0 %v1103
        %1959 = vmatmul.mubr.f32.gmra.mrb[0].mxu0 %v957
        %v1960 = vpop.f32.mrb[0].mxu0
        %v1961 = vadd.f32 0.0, %v1960
        %v1962 = vpop.f32.mrb[0].mxu0
        %1963 = vmatprep.mubr.f32.mxu0 %v1105
        %1964 = vmatmul.mubr.f32.gmra.mrb[0].mxu0 %v958
        %v1965 = vpop.f32.mrb[0].mxu0
        %v1966 = vpop.f32.mrb[0].mxu0
        %1967 = vmatprep.mubr.f32.mxu0 %v1107
        %1968 = vmatmul.mubr.f32.gmra.mrb[0].mxu0 %v959
        %v1969 = vpop.f32.mrb[0].mxu0
        %v1970 = vadd.f32 0.0, %v1969
        %v1971 = vpop.f32.mrb[0].mxu0
        %1972 = vmatprep.mubr.f32.mxu0 %v1109
        %1973 = vmatmul.mubr.f32.gmra.mrb[0].mxu0 %v960
        %v1974 = vpop.f32.mrb[0].mxu0
        %v1975 = vadd.f32 0.0, %v1974
        %v1976 = vpop.f32.mrb[0].mxu0
        %1977 = vmatprep.mubr.f32.mxu0 %v1111
        %1978 = vmatmul.mubr.f32.gmra.mrb[0].mxu0 %v961
        %v1979 = vpop.f32.mrb[0].mxu0
        %v1980 = vpop.f32.mrb[0].mxu0
        %1981 = vmatprep.mubr.f32.mxu0 %v1113
        %1982 = vmatmul.mubr.f32.gmra.mrb[0].mxu0 %v962
        %v1983 = vpop.f32.mrb[0].mxu0
        %v1984 = vadd.f32 0.0, %v1983
        %v1985 = vpop.f32.mrb[0].mxu0
        %1986 = vmatprep.mubr.f32.mxu0 %v1115
        %1987 = vmatmul.mubr.f32.gmra.mrb[0].mxu0 %v963
        %v1988 = vpop.f32.mrb[0].mxu0
        %v1989 = vadd.f32 0.0, %v1988
        %v1990 = vpop.f32.mrb[0].mxu0
        %1991 = vmatprep.mubr.f32.mxu0 %v1117
        %1992 = vmatmul.mubr.f32.gmra.mrb[0].mxu0 %v964
        %v1993 = vpop.f32.mrb[0].mxu0
        %v1994 = vpop.f32.mrb[0].mxu0
        %1995 = vmatprep.mubr.f32.mxu0 %v1119
        %1996 = vmatmul.mubr.f32.gmra.mrb[0].mxu0 %v965
        %v1997 = vpop.f32.mrb[0].mxu0
        %v1998 = vadd.f32 0.0, %v1997
        %v1999 = vpop.f32.mrb[0].mxu0
        %2000 = vmatprep.mubr.f32.mxu0 %v1121
        %2001 = vmatmul.mubr.f32.gmra.mrb[0].mxu0 %v966
        %v2002 = vpop.f32.mrb[0].mxu0
        %v2003 = vadd.f32 0.0, %v2002
        %v2004 = vpop.f32.mrb[0].mxu0
        %2005 = vmatprep.mubr.f32.mxu0 %v1123
        %2006 = vmatmul.mubr.f32.gmra.mrb[0].mxu0 %v967
        %v2007 = vpop.f32.mrb[0].mxu0
        %v2008 = vpop.f32.mrb[0].mxu0
        %2009 = vmatprep.mubr.f32.mxu0 %v1125
        %2010 = vmatmul.mubr.f32.gmra.mrb[0].mxu0 %v968
        %v2011 = vpop.f32.mrb[0].mxu0
        %v2012 = vadd.f32 0.0, %v2011
        %v2013 = vpop.f32.mrb[0].mxu0
        %2014 = vmatprep.mubr.f32.mxu0 %v1127
        %2015 = vmatmul.mubr.f32.gmra.mrb[0].mxu0 %v969
        %v2016 = vpop.f32.mrb[0].mxu0
        %v2017 = vadd.f32 0.0, %v2016
        %v2018 = vpop.f32.mrb[0].mxu0
        %2019 = vmatprep.mubr.f32.mxu0 %v1129
        %2020 = vmatmul.mubr.f32.gmra.mrb[0].mxu0 %v970
        %v2021 = vpop.f32.mrb[0].mxu0
        %v2022 = vpop.f32.mrb[0].mxu0
        %2023 = vmatprep.mubr.f32.mxu0 %v1131
        %2024 = vmatmul.mubr.f32.gmra.mrb[0].mxu0 %v971
        %v2025 = vpop.f32.mrb[0].mxu0
        %v2026 = vadd.f32 0.0, %v2025
        %v2027 = vpop.f32.mrb[0].mxu0
        %2028 = vmatprep.mubr.f32.mxu0 %v1133
        %2029 = vmatmul.mubr.f32.gmra.mrb[0].mxu0 %v972
        %v2030 = vpop.f32.mrb[0].mxu0
        %v2031 = vadd.f32 0.0, %v2030
        %v2032 = vpop.f32.mrb[0].mxu0
        %2033 = vmatprep.mubr.f32.mxu0 %v1135
        %2034 = vmatmul.mubr.f32.gmra.mrb[0].mxu0 %v973
        %v2035 = vpop.f32.mrb[0].mxu0
        %v2036 = vpop.f32.mrb[0].mxu0
        %2037 = vmatprep.mubr.f32.mxu0 %v1137
        %2038 = vmatmul.mubr.f32.gmra.mrb[0].mxu0 %v974
        %v2039 = vpop.f32.mrb[0].mxu0
        %v2040 = vadd.f32 0.0, %v2039
        %v2041 = vpop.f32.mrb[0].mxu0
        %2042 = vmatprep.mubr.f32.mxu0 %v1139
        %2043 = vmatmul.mubr.f32.gmra.mrb[0].mxu0 %v975
        %v2044 = vpop.f32.mrb[0].mxu0
        %v2045 = vadd.f32 0.0, %v2044
        %v2046 = vpop.f32.mrb[0].mxu0
        %2047 = vmatprep.mubr.f32.mxu0 %v1141
        %2048 = vmatmul.mubr.f32.gmra.mrb[0].mxu0 %v976
        %v2049 = vpop.f32.mrb[0].mxu0
        %v2050 = vpop.f32.mrb[0].mxu0
        %2051 = vmatprep.mubr.f32.mxu0 %v1143
        %2052 = vmatmul.mubr.f32.gmra.mrb[0].mxu0 %v1025
        %v2053 = vpop.f32.mrb[0].mxu0
        %v2054 = vadd.f32 0.0, %v2053
        %v2055 = vpop.f32.mrb[0].mxu0
        %2056 = vmatprep.mubr.f32.mxu0 %v1145
        %2057 = vmatmul.mubr.f32.gmra.mrb[0].mxu0 %v1026
        %v2058 = vpop.f32.mrb[0].mxu0
        %v2059 = vadd.f32 0.0, %v2058
        %v2060 = vpop.f32.mrb[0].mxu0
        %2061 = vmatprep.mubr.f32.mxu0 %v1147
        %2062 = vmatmul.mubr.f32.gmra.mrb[0].mxu0 %v1027
        %v2063 = vpop.f32.mrb[0].mxu0
        %v2064 = vpop.f32.mrb[0].mxu0
        %2065 = vmatprep.mubr.f32.mxu0 %v1785
        %2066 = vmatmul.mubr.f32.gmra.mrb[0].mxu0 %v1757
        %v2067 = vpop.f32.mrb[0].mxu0
        %v2068 = vadd.f32 0.0, %v2067
        %v2069 = vpop.f32.mrb[0].mxu0
        %2070 = vmatprep.mubr.f32.mxu0 %v1787
        %2071 = vmatmul.mubr.f32.gmra.mrb[0].mxu0 %v1758
        %v2072 = vpop.f32.mrb[0].mxu0
        %v2073 = vadd.f32 0.0, %v2072
        %v2074 = vpop.f32.mrb[0].mxu0
        %2075 = vmatprep.mubr.f32.mxu0 %v1789
        %2076 = vmatmul.mubr.f32.gmra.mrb[0].mxu0 %v1759
        %v2077 = vpop.f32.mrb[0].mxu0
        %v2078 = vpop.f32.mrb[0].mxu0
        %2079 = vdwg.mxu0
        %v2080 = vadd.f32 %v1511, %v1858
        %v2081 = vadd.f32 %v1516, %v1863
        %v2082 = vadd.f32 %v1525, %v1872
        %v2083 = vadd.f32 %v1530, %v1877
        %v2084 = vadd.f32 %v1539, %v1886
        %v2085 = vadd.f32 %v1544, %v1891
        %v2086 = vadd.f32 %v1553, %v1900
        %v2087 = vadd.f32 %v1558, %v1905
        %v2088 = vadd.f32 %v1567, %v1914
        %v2089 = vadd.f32 %v1572, %v1919
        %v2090 = vadd.f32 %v1581, %v1928
        %v2091 = vadd.f32 %v1586, %v1933
        %v2092 = vadd.f32 %v1595, %v1942
        %v2093 = vadd.f32 %v1600, %v1947
        %v2094 = vadd.f32 %v1609, %v1956
        %v2095 = vadd.f32 %v1614, %v1961
        %v2096 = vadd.f32 %v1623, %v1970
        %v2097 = vadd.f32 %v1628, %v1975
        %v2098 = vadd.f32 %v1637, %v1984
        %v2099 = vadd.f32 %v1642, %v1989
        %v2100 = vadd.f32 %v1651, %v1998
        %v2101 = vadd.f32 %v1656, %v2003
        %v2102 = vadd.f32 %v1665, %v2012
        %v2103 = vadd.f32 %v1670, %v2017
        %v2104 = vadd.f32 %v1679, %v2026
        %v2105 = vadd.f32 %v1684, %v2031
        %v2106 = vadd.f32 %v1693, %v2040
        %v2107 = vadd.f32 %v1698, %v2045
        %v2108 = vadd.f32 %v1707, %v2054
        %v2109 = vadd.f32 %v1712, %v2059
        %v2110 = vadd.f32 %v1721, %v2068
        %v2111 = vadd.f32 %v1726, %v2073
        %v2112 = vsel %vm376, %v2080, 0.0
        %v2113 = vsel %vm376, %v2082, 0.0
        %v2114 = vadd.f32 %v2112, %v2113
        %v2115 = vsel %vm376, %v2084, 0.0
        %v2116 = vadd.f32 %v2114, %v2115
        %v2117 = vsel %vm376, %v2086, 0.0
        %v2118 = vadd.f32 %v2116, %v2117
        %v2119 = vsel %vm376, %v2088, 0.0
        %v2120 = vadd.f32 %v2118, %v2119
        %v2121 = vsel %vm376, %v2090, 0.0
        %v2122 = vadd.f32 %v2120, %v2121
        %v2123 = vsel %vm376, %v2092, 0.0
        %v2124 = vadd.f32 %v2122, %v2123
        %v2125 = vsel %vm376, %v2094, 0.0
        %v2126 = vadd.f32 %v2124, %v2125
        %v2127 = vsel %vm376, %v2096, 0.0
        %v2128 = vadd.f32 %v2126, %v2127
        %v2129 = vsel %vm376, %v2098, 0.0
        %v2130 = vadd.f32 %v2128, %v2129
        %v2131 = vsel %vm376, %v2100, 0.0
        %v2132 = vadd.f32 %v2130, %v2131
        %v2133 = vsel %vm376, %v2102, 0.0
        %v2134 = vadd.f32 %v2132, %v2133
        %v2135 = vsel %vm376, %v2104, 0.0
        %v2136 = vadd.f32 %v2134, %v2135
        %v2137 = vsel %vm376, %v2106, 0.0
        %v2138 = vadd.f32 %v2136, %v2137
        %v2139 = vsel %vm376, %v2108, 0.0
        %v2140 = vadd.f32 %v2138, %v2139
        %v2141 = vsel %vm376, %v2110, 0.0
        %v2142 = vadd.f32 %v2140, %v2141
        %v2143 = vsel %vm376, %v2081, 0.0
        %v2144 = vsel %vm376, %v2083, 0.0
        %v2145 = vadd.f32 %v2143, %v2144
        %v2146 = vsel %vm376, %v2085, 0.0
        %v2147 = vadd.f32 %v2145, %v2146
        %v2148 = vsel %vm376, %v2087, 0.0
        %v2149 = vadd.f32 %v2147, %v2148
        %v2150 = vsel %vm376, %v2089, 0.0
        %v2151 = vadd.f32 %v2149, %v2150
        %v2152 = vsel %vm376, %v2091, 0.0
        %v2153 = vadd.f32 %v2151, %v2152
        %v2154 = vsel %vm376, %v2093, 0.0
        %v2155 = vadd.f32 %v2153, %v2154
        %v2156 = vsel %vm376, %v2095, 0.0
        %v2157 = vadd.f32 %v2155, %v2156
        %v2158 = vsel %vm376, %v2097, 0.0
        %v2159 = vadd.f32 %v2157, %v2158
        %v2160 = vsel %vm376, %v2099, 0.0
        %v2161 = vadd.f32 %v2159, %v2160
        %v2162 = vsel %vm376, %v2101, 0.0
        %v2163 = vadd.f32 %v2161, %v2162
        %v2164 = vsel %vm376, %v2103, 0.0
        %v2165 = vadd.f32 %v2163, %v2164
        %v2166 = vsel %vm376, %v2105, 0.0
        %v2167 = vadd.f32 %v2165, %v2166
        %v2168 = vsel %vm376, %v2107, 0.0
        %v2169 = vadd.f32 %v2167, %v2168
        %v2170 = vsel %vm376, %v2109, 0.0
        %v2171 = vadd.f32 %v2169, %v2170
        %v2172 = vsel %vm376, %v2111, 0.0
        %v2173 = vadd.f32 %v2171, %v2172
        %v2174 = vsel %vm376, %v2142, 0.0
        %v2175 = vsel %vm376, %v2173, 0.0
        %v2176 = vadd.f32 %v2174, %v2175
        %v2177 = vrot.slane %v2176, 4
        %v2178 = vadd.f32 %v2176, %v2177
        %v2179 = vrot.slane %v2178, 2
        %v2180 = vadd.f32 %v2178, %v2179
        %v2181 = vrot.slane %v2180, 1
        %v2182 = vadd.f32 %v2180, %v2181
        %v2183 = vmul.f32 %v2080, %v2080
        %v2184 = vmul.f32 %v2081, %v2081
        %v2185 = vmul.f32 %v2082, %v2082
        %v2186 = vmul.f32 %v2083, %v2083
        %v2187 = vmul.f32 %v2084, %v2084
        %v2188 = vmul.f32 %v2085, %v2085
        %v2189 = vmul.f32 %v2086, %v2086
        %v2190 = vmul.f32 %v2087, %v2087
        %v2191 = vmul.f32 %v2088, %v2088
        %v2192 = vmul.f32 %v2089, %v2089
        %v2193 = vmul.f32 %v2090, %v2090
        %v2194 = vmul.f32 %v2091, %v2091
        %v2195 = vmul.f32 %v2092, %v2092
        %v2196 = vmul.f32 %v2093, %v2093
        %v2197 = vmul.f32 %v2094, %v2094
        %v2198 = vmul.f32 %v2095, %v2095
        %v2199 = vmul.f32 %v2096, %v2096
        %v2200 = vmul.f32 %v2097, %v2097
        %v2201 = vmul.f32 %v2098, %v2098
        %v2202 = vmul.f32 %v2099, %v2099
        %v2203 = vmul.f32 %v2100, %v2100
        %v2204 = vmul.f32 %v2101, %v2101
        %v2205 = vmul.f32 %v2102, %v2102
        %v2206 = vmul.f32 %v2103, %v2103
        %v2207 = vmul.f32 %v2104, %v2104
        %v2208 = vmul.f32 %v2105, %v2105
        %v2209 = vmul.f32 %v2106, %v2106
        %v2210 = vmul.f32 %v2107, %v2107
        %v2211 = vmul.f32 %v2108, %v2108
        %v2212 = vmul.f32 %v2109, %v2109
        %v2213 = vmul.f32 %v2110, %v2110
        %v2214 = vmul.f32 %v2111, %v2111
        %v2215 = vsel %vm376, %v2183, 0.0
        %v2216 = vsel %vm376, %v2185, 0.0
        %v2217 = vadd.f32 %v2215, %v2216
        %v2218 = vsel %vm376, %v2187, 0.0
        %v2219 = vadd.f32 %v2217, %v2218
        %v2220 = vsel %vm376, %v2189, 0.0
        %v2221 = vadd.f32 %v2219, %v2220
        %v2222 = vsel %vm376, %v2191, 0.0
        %v2223 = vadd.f32 %v2221, %v2222
        %v2224 = vsel %vm376, %v2193, 0.0
        %v2225 = vadd.f32 %v2223, %v2224
        %v2226 = vsel %vm376, %v2195, 0.0
        %v2227 = vadd.f32 %v2225, %v2226
        %v2228 = vsel %vm376, %v2197, 0.0
        %v2229 = vadd.f32 %v2227, %v2228
        %v2230 = vsel %vm376, %v2199, 0.0
        %v2231 = vadd.f32 %v2229, %v2230
        %v2232 = vsel %vm376, %v2201, 0.0
        %v2233 = vadd.f32 %v2231, %v2232
        %v2234 = vsel %vm376, %v2203, 0.0
        %v2235 = vadd.f32 %v2233, %v2234
        %v2236 = vsel %vm376, %v2205, 0.0
        %v2237 = vadd.f32 %v2235, %v2236
        %v2238 = vsel %vm376, %v2207, 0.0
        %v2239 = vadd.f32 %v2237, %v2238
        %v2240 = vsel %vm376, %v2209, 0.0
        %v2241 = vadd.f32 %v2239, %v2240
        %v2242 = vsel %vm376, %v2211, 0.0
        %v2243 = vadd.f32 %v2241, %v2242
        %v2244 = vsel %vm376, %v2213, 0.0
        %v2245 = vadd.f32 %v2243, %v2244
        %v2246 = vsel %vm376, %v2184, 0.0
        %v2247 = vsel %vm376, %v2186, 0.0
        %v2248 = vadd.f32 %v2246, %v2247
        %v2249 = vsel %vm376, %v2188, 0.0
        %v2250 = vadd.f32 %v2248, %v2249
        %v2251 = vsel %vm376, %v2190, 0.0
        %v2252 = vadd.f32 %v2250, %v2251
        %v2253 = vsel %vm376, %v2192, 0.0
        %v2254 = vadd.f32 %v2252, %v2253
        %v2255 = vsel %vm376, %v2194, 0.0
        %v2256 = vadd.f32 %v2254, %v2255
        %v2257 = vsel %vm376, %v2196, 0.0
        %v2258 = vadd.f32 %v2256, %v2257
        %v2259 = vsel %vm376, %v2198, 0.0
        %v2260 = vadd.f32 %v2258, %v2259
        %v2261 = vsel %vm376, %v2200, 0.0
        %v2262 = vadd.f32 %v2260, %v2261
        %v2263 = vsel %vm376, %v2202, 0.0
        %v2264 = vadd.f32 %v2262, %v2263
        %v2265 = vsel %vm376, %v2204, 0.0
        %v2266 = vadd.f32 %v2264, %v2265
        %v2267 = vsel %vm376, %v2206, 0.0
        %v2268 = vadd.f32 %v2266, %v2267
        %v2269 = vsel %vm376, %v2208, 0.0
        %v2270 = vadd.f32 %v2268, %v2269
        %v2271 = vsel %vm376, %v2210, 0.0
        %v2272 = vadd.f32 %v2270, %v2271
        %v2273 = vsel %vm376, %v2212, 0.0
        %v2274 = vadd.f32 %v2272, %v2273
        %v2275 = vsel %vm376, %v2214, 0.0
        %v2276 = vadd.f32 %v2274, %v2275
        %v2277 = vsel %vm376, %v2245, 0.0
        %v2278 = vsel %vm376, %v2276, 0.0
        %v2279 = vadd.f32 %v2277, %v2278
        %v2280 = vrot.slane %v2279, 4
        %v2281 = vadd.f32 %v2279, %v2280
        %v2282 = vrot.slane %v2281, 2
        %v2283 = vadd.f32 %v2281, %v2282
        %v2284 = vrot.slane %v2283, 1
        %v2285 = vadd.f32 %v2283, %v2284
        %v2286 = vmul.f32 %v2182, 0.00390625
        %v2287 = vmul.f32 %v2285, 0.00390625
        %v2288 = vmul.f32 %v2286, %v2286
        %v2289 = vsub.f32 %v2287, %v2288
        %v2290 = vld [vmem:[#allocation9] sm:$0x1]
        %v2291 = vadd.f32 %v2289, 1e-05
        %v2292 = vrsqrt.pop %v2291
        %v2293 = vmul.f32 %v2290, %v2292
        %v2294 = vld [vmem:[#allocation11] sm:$0x1]
        %v2295 = vmul.f32 %v2286, %v2293
        %v2296 = vsub.f32 %v2294, %v2295
        %v2298 = vlaneseq
        %v2299 = vshrl.u32 %v2298, 7
        %v2300 = vsub.s32 0, %v2299
        %v2301 = vrot.slane %v2293, %v2300
        %v2303 = vmul.f32 %v2080, %v2301
        %v2304 = vmul.f32 %v2081, %v2301
        %v2305 = vmul.f32 %v2082, %v2301
        %v2306 = vmul.f32 %v2083, %v2301
        %v2307 = vmul.f32 %v2084, %v2301
        %v2308 = vmul.f32 %v2085, %v2301
        %v2309 = vmul.f32 %v2086, %v2301
        %v2310 = vmul.f32 %v2087, %v2301
        %v2311 = vmul.f32 %v2088, %v2301
        %v2312 = vmul.f32 %v2089, %v2301
        %v2313 = vmul.f32 %v2090, %v2301
        %v2314 = vmul.f32 %v2091, %v2301
        %v2315 = vmul.f32 %v2092, %v2301
        %v2316 = vmul.f32 %v2093, %v2301
        %v2317 = vmul.f32 %v2094, %v2301
        %v2318 = vmul.f32 %v2095, %v2301
        %v2319 = vmul.f32 %v2096, %v2301
        %v2320 = vmul.f32 %v2097, %v2301
        %v2321 = vmul.f32 %v2098, %v2301
        %v2322 = vmul.f32 %v2099, %v2301
        %v2323 = vmul.f32 %v2100, %v2301
        %v2324 = vmul.f32 %v2101, %v2301
        %v2325 = vmul.f32 %v2102, %v2301
        %v2326 = vmul.f32 %v2103, %v2301
        %v2327 = vmul.f32 %v2104, %v2301
        %v2328 = vmul.f32 %v2105, %v2301
        %v2329 = vmul.f32 %v2106, %v2301
        %v2330 = vmul.f32 %v2107, %v2301
        %v2331 = vmul.f32 %v2108, %v2301
        %v2332 = vmul.f32 %v2109, %v2301
        %v2333 = vmul.f32 %v2110, %v2301
        %v2334 = vmul.f32 %v2111, %v2301
        %v2336 = vlaneseq
        %v2337 = vshrl.u32 %v2336, 7
        %v2338 = vsub.s32 0, %v2337
        %v2339 = vrot.slane %v2296, %v2338
        %v2341 = vadd.f32 %v2303, %v2339
        %v2342 = vadd.f32 %v2304, %v2339
        %v2343 = vadd.f32 %v2305, %v2339
        %v2344 = vadd.f32 %v2306, %v2339
        %v2345 = vadd.f32 %v2307, %v2339
        %v2346 = vadd.f32 %v2308, %v2339
        %v2347 = vadd.f32 %v2309, %v2339
        %v2348 = vadd.f32 %v2310, %v2339
        %v2349 = vadd.f32 %v2311, %v2339
        %v2350 = vadd.f32 %v2312, %v2339
        %v2351 = vadd.f32 %v2313, %v2339
        %v2352 = vadd.f32 %v2314, %v2339
        %v2353 = vadd.f32 %v2315, %v2339
        %v2354 = vadd.f32 %v2316, %v2339
        %v2355 = vadd.f32 %v2317, %v2339
        %v2356 = vadd.f32 %v2318, %v2339
        %v2357 = vadd.f32 %v2319, %v2339
        %v2358 = vadd.f32 %v2320, %v2339
        %v2359 = vadd.f32 %v2321, %v2339
        %v2360 = vadd.f32 %v2322, %v2339
        %v2361 = vadd.f32 %v2323, %v2339
        %v2362 = vadd.f32 %v2324, %v2339
        %v2363 = vadd.f32 %v2325, %v2339
        %v2364 = vadd.f32 %v2326, %v2339
        %v2365 = vadd.f32 %v2327, %v2339
        %v2366 = vadd.f32 %v2328, %v2339
        %v2367 = vadd.f32 %v2329, %v2339
        %v2368 = vadd.f32 %v2330, %v2339
        %v2369 = vadd.f32 %v2331, %v2339
        %v2370 = vadd.f32 %v2332, %v2339
        %v2371 = vadd.f32 %v2333, %v2339
        %v2372 = vadd.f32 %v2334, %v2339
        %v2373 = vmul.f32 %v2341, 0.2
        %v2374 = vmul.f32 %v2342, 0.2
        %v2375 = vmul.f32 %v2343, 0.2
        %v2376 = vmul.f32 %v2344, 0.2
        %v2377 = vmul.f32 %v2345, 0.2
        %v2378 = vmul.f32 %v2346, 0.2
        %v2379 = vmul.f32 %v2347, 0.2
        %v2380 = vmul.f32 %v2348, 0.2
        %v2381 = vmul.f32 %v2349, 0.2
        %v2382 = vmul.f32 %v2350, 0.2
        %v2383 = vmul.f32 %v2351, 0.2
        %v2384 = vmul.f32 %v2352, 0.2
        %v2385 = vmul.f32 %v2353, 0.2
        %v2386 = vmul.f32 %v2354, 0.2
        %v2387 = vmul.f32 %v2355, 0.2
        %v2388 = vmul.f32 %v2356, 0.2
        %v2389 = vmul.f32 %v2357, 0.2
        %v2390 = vmul.f32 %v2358, 0.2
        %v2391 = vmul.f32 %v2359, 0.2
        %v2392 = vmul.f32 %v2360, 0.2
        %v2393 = vmul.f32 %v2361, 0.2
        %v2394 = vmul.f32 %v2362, 0.2
        %v2395 = vmul.f32 %v2363, 0.2
        %v2396 = vmul.f32 %v2364, 0.2
        %v2397 = vmul.f32 %v2365, 0.2
        %v2398 = vmul.f32 %v2366, 0.2
        %v2399 = vmul.f32 %v2367, 0.2
        %v2400 = vmul.f32 %v2368, 0.2
        %v2401 = vmul.f32 %v2369, 0.2
        %v2402 = vmul.f32 %v2370, 0.2
        %v2403 = vmul.f32 %v2371, 0.2
        %v2404 = vmul.f32 %v2372, 0.2
        %v2405 = vmax.f32 %v2341, %v2373
        %v2406 = vmax.f32 %v2342, %v2374
        %v2407 = vmax.f32 %v2343, %v2375
        %v2408 = vmax.f32 %v2344, %v2376
        %v2409 = vmax.f32 %v2345, %v2377
        %v2410 = vmax.f32 %v2346, %v2378
        %v2411 = vmax.f32 %v2347, %v2379
        %v2412 = vmax.f32 %v2348, %v2380
        %v2413 = vmax.f32 %v2349, %v2381
        %v2414 = vmax.f32 %v2350, %v2382
        %v2415 = vmax.f32 %v2351, %v2383
        %v2416 = vmax.f32 %v2352, %v2384
        %v2417 = vmax.f32 %v2353, %v2385
        %v2418 = vmax.f32 %v2354, %v2386
        %v2419 = vmax.f32 %v2355, %v2387
        %v2420 = vmax.f32 %v2356, %v2388
        %v2421 = vmax.f32 %v2357, %v2389
        %v2422 = vmax.f32 %v2358, %v2390
        %v2423 = vmax.f32 %v2359, %v2391
        %v2424 = vmax.f32 %v2360, %v2392
        %v2425 = vmax.f32 %v2361, %v2393
        %v2426 = vmax.f32 %v2362, %v2394
        %v2427 = vmax.f32 %v2363, %v2395
        %v2428 = vmax.f32 %v2364, %v2396
        %v2429 = vmax.f32 %v2365, %v2397
        %v2430 = vmax.f32 %v2366, %v2398
        %v2431 = vmax.f32 %v2367, %v2399
        %v2432 = vmax.f32 %v2368, %v2400
        %v2433 = vmax.f32 %v2369, %v2401
        %v2434 = vmax.f32 %v2370, %v2402
        %v2435 = vmax.f32 %v2371, %v2403
        %v2436 = vmax.f32 %v2372, %v2404
        %2437 = vst.msk [vmem:[%s387 + $0x1] sm:$0xff] %vm376, %v2405
        %2438 = vst.msk [vmem:[%s387 + $0x9] sm:$0xff] %vm376, %v2406
        %2439 = vst.msk [vmem:[%s387 + $0x19] sm:$0xff] %vm376, %v2407
        %2440 = vst.msk [vmem:[%s387 + $0x21] sm:$0xff] %vm376, %v2408
        %2441 = vst.msk [vmem:[%s387 + $0x31] sm:$0xff] %vm376, %v2409
        %2442 = vst.msk [vmem:[%s387 + $0x39] sm:$0xff] %vm376, %v2410
        %2443 = vst.msk [vmem:[%s387 + $0x49] sm:$0xff] %vm376, %v2411
        %2444 = vst.msk [vmem:[%s387 + $0x51] sm:$0xff] %vm376, %v2412
        %2445 = vst.msk [vmem:[%s387 + $0x61] sm:$0xff] %vm376, %v2413
        %2446 = vst.msk [vmem:[%s387 + $0x69] sm:$0xff] %vm376, %v2414
        %2447 = vst.msk [vmem:[%s387 + $0x79] sm:$0xff] %vm376, %v2415
        %2448 = vst.msk [vmem:[%s387 + $0x81] sm:$0xff] %vm376, %v2416
        %2449 = vst.msk [vmem:[%s387 + $0x91] sm:$0xff] %vm376, %v2417
        %2450 = vst.msk [vmem:[%s387 + $0x99] sm:$0xff] %vm376, %v2418
        %2451 = vst.msk [vmem:[%s387 + $0xa9] sm:$0xff] %vm376, %v2419
        %2452 = vst.msk [vmem:[%s387 + $0xb1] sm:$0xff] %vm376, %v2420
        %2453 = vst.msk [vmem:[%s387 + $0xc1] sm:$0xff] %vm376, %v2421
        %2454 = vst.msk [vmem:[%s387 + $0xc9] sm:$0xff] %vm376, %v2422
        %2455 = vst.msk [vmem:[%s387 + $0xd9] sm:$0xff] %vm376, %v2423
        %2456 = vst.msk [vmem:[%s387 + $0xe1] sm:$0xff] %vm376, %v2424
        %2457 = vst.msk [vmem:[%s387 + $0xf1] sm:$0xff] %vm376, %v2425
        %2458 = vst.msk [vmem:[%s387 + $0xf9] sm:$0xff] %vm376, %v2426
        %2459 = vst.msk [vmem:[%s387 + $0x109] sm:$0xff] %vm376, %v2427
        %2460 = vst.msk [vmem:[%s387 + $0x111] sm:$0xff] %vm376, %v2428
        %2461 = vst.msk [vmem:[%s387 + $0x121] sm:$0xff] %vm376, %v2429
        %2462 = vst.msk [vmem:[%s387 + $0x129] sm:$0xff] %vm376, %v2430
        %2463 = vst.msk [vmem:[%s387 + $0x139] sm:$0xff] %vm376, %v2431
        %2464 = vst.msk [vmem:[%s387 + $0x141] sm:$0xff] %vm376, %v2432
        %2465 = vst.msk [vmem:[%s387 + $0x151] sm:$0xff] %vm376, %v2433
        %2466 = vst.msk [vmem:[%s387 + $0x159] sm:$0xff] %vm376, %v2434
        %2467 = vst.msk [vmem:[%s387 + $0x169] sm:$0xff] %vm376, %v2435
        %2468 = vst.msk [vmem:[%s387 + $0x171] sm:$0xff] %vm376, %v2436
        %v2469 = vld [vmem:[#allocation2] sm:$0xff]
        %v2470 = vld [vmem:[#allocation2 + $0x8] sm:$0xff]
        %v2471 = vld [vmem:[#allocation2 + $0x10] sm:$0xff]
        %v2472 = vld [vmem:[#allocation2 + $0x18] sm:$0xff]
        %v2473 = vld [vmem:[#allocation2 + $0x20] sm:$0xff]
        %v2474 = vld [vmem:[#allocation2 + $0x28] sm:$0xff]
        %v2475 = vld [vmem:[#allocation2 + $0x30] sm:$0xff]
        %v2476 = vld [vmem:[#allocation2 + $0x38] sm:$0xff]
        %v2477 = vld [vmem:[#allocation2 + $0x40] sm:$0xff]
        %v2478 = vld [vmem:[#allocation2 + $0x48] sm:$0xff]
        %v2479 = vld [vmem:[#allocation2 + $0x50] sm:$0xff]
        %v2480 = vld [vmem:[#allocation2 + $0x58] sm:$0xff]
        %v2481 = vld [vmem:[#allocation2 + $0x60] sm:$0xff]
        %v2482 = vld [vmem:[#allocation2 + $0x68] sm:$0xff]
        %v2483 = vld [vmem:[#allocation2 + $0x70] sm:$0xff]
        %v2484 = vld [vmem:[#allocation2 + $0x78] sm:$0xff]
        %v2485 = vld [vmem:[#allocation2 + $0x80] sm:$0xff]
        %v2486 = vld [vmem:[#allocation2 + $0x88] sm:$0xff]
        %v2487 = vld [vmem:[#allocation2 + $0x90] sm:$0xff]
        %v2488 = vld [vmem:[#allocation2 + $0x98] sm:$0xff]
        %v2489 = vld [vmem:[#allocation2 + $0xa0] sm:$0xff]
        %v2490 = vld [vmem:[#allocation2 + $0xa8] sm:$0xff]
        %v2491 = vld [vmem:[#allocation2 + $0xb0] sm:$0xff]
        %v2492 = vld [vmem:[#allocation2 + $0xb8] sm:$0xff]
        %v2493 = vld [vmem:[#allocation2 + $0xc0] sm:$0xff]
        %v2494 = vld [vmem:[#allocation2 + $0xc8] sm:$0xff]
        %v2495 = vld [vmem:[#allocation2 + $0xd0] sm:$0xff]
        %v2496 = vld [vmem:[#allocation2 + $0xd8] sm:$0xff]
        %v2497 = vld [vmem:[#allocation2 + $0xe0] sm:$0xff]
        %v2498 = vld [vmem:[#allocation2 + $0xe8] sm:$0xff]
        %v2499 = vld [vmem:[#allocation2 + $0xf0] sm:$0xff]
        %v2500 = vld [vmem:[#allocation2 + $0xf8] sm:$0xff]
        %v2501 = vld [vmem:[#allocation2 + $0x100] sm:$0xff]
        %v2502 = vld [vmem:[#allocation2 + $0x108] sm:$0xff]
        %v2503 = vld [vmem:[#allocation2 + $0x110] sm:$0xff]
        %v2504 = vld [vmem:[#allocation2 + $0x118] sm:$0xff]
        %v2505 = vld [vmem:[#allocation2 + $0x120] sm:$0xff]
        %v2506 = vld [vmem:[#allocation2 + $0x128] sm:$0xff]
        %v2507 = vld [vmem:[#allocation2 + $0x130] sm:$0xff]
        %v2508 = vld [vmem:[#allocation2 + $0x138] sm:$0xff]
        %v2509 = vld [vmem:[#allocation2 + $0x140] sm:$0xff]
        %v2510 = vld [vmem:[#allocation2 + $0x148] sm:$0xff]
        %v2511 = vld [vmem:[#allocation2 + $0x150] sm:$0xff]
        %v2512 = vld [vmem:[#allocation2 + $0x158] sm:$0xff]
        %v2513 = vld [vmem:[#allocation2 + $0x160] sm:$0xff]
        %v2514 = vld [vmem:[#allocation2 + $0x168] sm:$0xff]
        %v2515 = vld [vmem:[#allocation2 + $0x170] sm:$0xff]
        %v2516 = vld [vmem:[#allocation2 + $0x178] sm:$0xff]
        %v2517 = vld [vmem:[#allocation2 + $0x180] sm:$0xff]
        %v2518 = vld [vmem:[#allocation2 + $0x188] sm:$0xff]
        %v2519 = vld [vmem:[#allocation2 + $0x190] sm:$0xff]
        %v2520 = vld [vmem:[#allocation2 + $0x198] sm:$0xff]
        %v2521 = vld [vmem:[#allocation2 + $0x1a0] sm:$0xff]
        %v2522 = vld [vmem:[#allocation2 + $0x1a8] sm:$0xff]
        %v2523 = vld [vmem:[#allocation2 + $0x1b0] sm:$0xff]
        %v2573 = vrot.slane %v2469, 1
        %v2574 = vrot.slane %v2470, 1
        %v2575 = vsel %vm589, %v2573, %v2574
        %v2576 = vrot.slane %v2471, 1
        %v2577 = vsel %vm589, %v2574, %v2576
        %v2578 = vrot.slane %v2472, 1
        %v2579 = vsel %vm589, %v2576, %v2578
        %v2580 = vrot.slane %v2473, 1
        %v2581 = vsel %vm589, %v2578, %v2580
        %v2582 = vrot.slane %v2474, 1
        %v2583 = vsel %vm589, %v2580, %v2582
        %v2584 = vrot.slane %v2475, 1
        %v2585 = vsel %vm589, %v2582, %v2584
        %v2586 = vrot.slane %v2476, 1
        %v2587 = vsel %vm589, %v2584, %v2586
        %v2588 = vrot.slane %v2477, 1
        %v2589 = vsel %vm589, %v2586, %v2588
        %v2590 = vrot.slane %v2478, 1
        %v2591 = vsel %vm589, %v2588, %v2590
        %v2592 = vrot.slane %v2479, 1
        %v2593 = vsel %vm589, %v2590, %v2592
        %v2594 = vrot.slane %v2480, 1
        %v2595 = vsel %vm589, %v2592, %v2594
        %v2596 = vrot.slane %v2481, 1
        %v2597 = vsel %vm589, %v2594, %v2596
        %v2598 = vrot.slane %v2482, 1
        %v2599 = vsel %vm589, %v2596, %v2598
        %v2600 = vrot.slane %v2483, 1
        %v2601 = vsel %vm589, %v2598, %v2600
        %v2602 = vrot.slane %v2484, 1
        %v2603 = vsel %vm589, %v2600, %v2602
        %v2604 = vrot.slane %v2485, 1
        %v2605 = vsel %vm589, %v2602, %v2604
        %v2606 = vrot.slane %v2486, 1
        %v2607 = vsel %vm589, %v2604, %v2606
        %v2608 = vrot.slane %v2487, 1
        %v2609 = vsel %vm589, %v2606, %v2608
        %v2610 = vrot.slane %v2488, 1
        %v2611 = vsel %vm589, %v2608, %v2610
        %v2612 = vrot.slane %v2489, 1
        %v2613 = vsel %vm589, %v2610, %v2612
        %v2614 = vrot.slane %v2490, 1
        %v2615 = vsel %vm589, %v2612, %v2614
        %v2616 = vrot.slane %v2491, 1
        %v2617 = vsel %vm589, %v2614, %v2616
        %v2618 = vrot.slane %v2492, 1
        %v2619 = vsel %vm589, %v2616, %v2618
        %v2620 = vrot.slane %v2493, 1
        %v2621 = vsel %vm589, %v2618, %v2620
        %v2622 = vrot.slane %v2494, 1
        %v2623 = vsel %vm589, %v2620, %v2622
        %v2624 = vrot.slane %v2495, 1
        %v2625 = vsel %vm589, %v2622, %v2624
        %v2626 = vrot.slane %v2496, 1
        %v2627 = vsel %vm589, %v2624, %v2626
        %v2628 = vrot.slane %v2497, 1
        %v2629 = vsel %vm589, %v2626, %v2628
        %v2630 = vrot.slane %v2498, 1
        %v2631 = vsel %vm589, %v2628, %v2630
        %v2632 = vrot.slane %v2499, 1
        %v2633 = vsel %vm589, %v2630, %v2632
        %v2634 = vrot.slane %v2500, 1
        %v2635 = vsel %vm589, %v2632, %v2634
        %v2636 = vrot.slane %v2501, 1
        %v2637 = vsel %vm589, %v2634, %v2636
        %v2638 = vrot.slane %v2502, 1
        %v2639 = vsel %vm589, %v2636, %v2638
        %v2640 = vrot.slane %v2503, 1
        %v2641 = vsel %vm589, %v2638, %v2640
        %v2642 = vrot.slane %v2504, 1
        %v2643 = vsel %vm589, %v2640, %v2642
        %v2644 = vrot.slane %v2505, 1
        %v2645 = vsel %vm589, %v2642, %v2644
        %v2646 = vrot.slane %v2506, 1
        %v2647 = vsel %vm589, %v2644, %v2646
        %v2648 = vrot.slane %v2507, 1
        %v2649 = vsel %vm589, %v2646, %v2648
        %v2650 = vrot.slane %v2508, 1
        %v2651 = vsel %vm589, %v2648, %v2650
        %v2652 = vrot.slane %v2509, 1
        %v2653 = vsel %vm589, %v2650, %v2652
        %v2654 = vrot.slane %v2510, 1
        %v2655 = vsel %vm589, %v2652, %v2654
        %v2656 = vrot.slane %v2511, 1
        %v2657 = vsel %vm589, %v2654, %v2656
        %v2658 = vrot.slane %v2512, 1
        %v2659 = vsel %vm589, %v2656, %v2658
        %v2660 = vrot.slane %v2513, 1
        %v2661 = vsel %vm589, %v2658, %v2660
        %v2662 = vrot.slane %v2514, 1
        %v2663 = vsel %vm589, %v2660, %v2662
        %v2664 = vrot.slane %v2515, 1
        %v2665 = vsel %vm589, %v2662, %v2664
        %v2666 = vrot.slane %v2516, 1
        %v2667 = vsel %vm589, %v2664, %v2666
        %v2668 = vrot.slane %v2517, 1
        %v2669 = vsel %vm589, %v2666, %v2668
        %2670 = vrot.lane.b32.xlu0 %v2575, 64
        %v2671 = vpop.permute.xlu0 %2670
        %2672 = vrot.lane.b32.xlu0 %v2577, 64
        %v2673 = vpop.permute.xlu0 %2672
        %2674 = vrot.lane.b32.xlu0 %v2579, 64
        %v2675 = vpop.permute.xlu0 %2674
        %2676 = vrot.lane.b32.xlu0 %v2581, 64
        %v2677 = vpop.permute.xlu0 %2676
        %2678 = vrot.lane.b32.xlu0 %v2583, 64
        %v2679 = vpop.permute.xlu0 %2678
        %2680 = vrot.lane.b32.xlu0 %v2585, 64
        %v2681 = vpop.permute.xlu0 %2680
        %2682 = vrot.lane.b32.xlu0 %v2587, 64
        %v2683 = vpop.permute.xlu0 %2682
        %2684 = vrot.lane.b32.xlu0 %v2589, 64
        %v2685 = vpop.permute.xlu0 %2684
        %2686 = vrot.lane.b32.xlu0 %v2591, 64
        %v2687 = vpop.permute.xlu0 %2686
        %2688 = vrot.lane.b32.xlu0 %v2593, 64
        %v2689 = vpop.permute.xlu0 %2688
        %2690 = vrot.lane.b32.xlu0 %v2595, 64
        %v2691 = vpop.permute.xlu0 %2690
        %2692 = vrot.lane.b32.xlu0 %v2597, 64
        %v2693 = vpop.permute.xlu0 %2692
        %2694 = vrot.lane.b32.xlu0 %v2599, 64
        %v2695 = vpop.permute.xlu0 %2694
        %2696 = vrot.lane.b32.xlu0 %v2601, 64
        %v2697 = vpop.permute.xlu0 %2696
        %2698 = vrot.lane.b32.xlu0 %v2603, 64
        %v2699 = vpop.permute.xlu0 %2698
        %2700 = vrot.lane.b32.xlu0 %v2605, 64
        %v2701 = vpop.permute.xlu0 %2700
        %2702 = vrot.lane.b32.xlu0 %v2607, 64
        %v2703 = vpop.permute.xlu0 %2702
        %2704 = vrot.lane.b32.xlu0 %v2609, 64
        %v2705 = vpop.permute.xlu0 %2704
        %2706 = vrot.lane.b32.xlu0 %v2611, 64
        %v2707 = vpop.permute.xlu0 %2706
        %2708 = vrot.lane.b32.xlu0 %v2613, 64
        %v2709 = vpop.permute.xlu0 %2708
        %2710 = vrot.lane.b32.xlu0 %v2615, 64
        %v2711 = vpop.permute.xlu0 %2710
        %2712 = vrot.lane.b32.xlu0 %v2617, 64
        %v2713 = vpop.permute.xlu0 %2712
        %2714 = vrot.lane.b32.xlu0 %v2619, 64
        %v2715 = vpop.permute.xlu0 %2714
        %2716 = vrot.lane.b32.xlu0 %v2621, 64
        %v2717 = vpop.permute.xlu0 %2716
        %2718 = vrot.lane.b32.xlu0 %v2623, 64
        %v2719 = vpop.permute.xlu0 %2718
        %2720 = vrot.lane.b32.xlu0 %v2625, 64
        %v2721 = vpop.permute.xlu0 %2720
        %2722 = vrot.lane.b32.xlu0 %v2627, 64
        %v2723 = vpop.permute.xlu0 %2722
        %2724 = vrot.lane.b32.xlu0 %v2629, 64
        %v2725 = vpop.permute.xlu0 %2724
        %2726 = vrot.lane.b32.xlu0 %v2631, 64
        %v2727 = vpop.permute.xlu0 %2726
        %2728 = vrot.lane.b32.xlu0 %v2633, 64
        %v2729 = vpop.permute.xlu0 %2728
        %2730 = vrot.lane.b32.xlu0 %v2635, 64
        %v2731 = vpop.permute.xlu0 %2730
        %2732 = vrot.lane.b32.xlu0 %v2637, 64
        %v2733 = vpop.permute.xlu0 %2732
        %2734 = vrot.lane.b32.xlu0 %v2639, 64
        %v2735 = vpop.permute.xlu0 %2734
        %2736 = vrot.lane.b32.xlu0 %v2641, 64
        %v2737 = vpop.permute.xlu0 %2736
        %2738 = vrot.lane.b32.xlu0 %v2643, 64
        %v2739 = vpop.permute.xlu0 %2738
        %2740 = vrot.lane.b32.xlu0 %v2645, 64
        %v2741 = vpop.permute.xlu0 %2740
        %2742 = vrot.lane.b32.xlu0 %v2647, 64
        %v2743 = vpop.permute.xlu0 %2742
        %2744 = vrot.lane.b32.xlu0 %v2649, 64
        %v2745 = vpop.permute.xlu0 %2744
        %2746 = vrot.lane.b32.xlu0 %v2651, 64
        %v2747 = vpop.permute.xlu0 %2746
        %2748 = vrot.lane.b32.xlu0 %v2653, 64
        %v2749 = vpop.permute.xlu0 %2748
        %2750 = vrot.lane.b32.xlu0 %v2655, 64
        %v2751 = vpop.permute.xlu0 %2750
        %2752 = vrot.lane.b32.xlu0 %v2657, 64
        %v2753 = vpop.permute.xlu0 %2752
        %2754 = vrot.lane.b32.xlu0 %v2659, 64
        %v2755 = vpop.permute.xlu0 %2754
        %2756 = vrot.lane.b32.xlu0 %v2661, 64
        %v2757 = vpop.permute.xlu0 %2756
        %2758 = vrot.lane.b32.xlu0 %v2663, 64
        %v2759 = vpop.permute.xlu0 %2758
        %2760 = vrot.lane.b32.xlu0 %v2665, 64
        %v2761 = vpop.permute.xlu0 %2760
        %2762 = vrot.lane.b32.xlu0 %v2667, 64
        %v2763 = vpop.permute.xlu0 %2762
        %2764 = vrot.lane.b32.xlu0 %v2669, 64
        %v2765 = vpop.permute.xlu0 %2764
        %v2814 = vrot.slane %v2469, 2
        %v2815 = vrot.slane %v2470, 2
        %v2816 = vsel %vm831, %v2814, %v2815
        %v2817 = vrot.slane %v2471, 2
        %v2818 = vsel %vm831, %v2815, %v2817
        %v2819 = vrot.slane %v2472, 2
        %v2820 = vsel %vm831, %v2817, %v2819
        %v2821 = vrot.slane %v2473, 2
        %v2822 = vsel %vm831, %v2819, %v2821
        %v2823 = vrot.slane %v2474, 2
        %v2824 = vsel %vm831, %v2821, %v2823
        %v2825 = vrot.slane %v2475, 2
        %v2826 = vsel %vm831, %v2823, %v2825
        %v2827 = vrot.slane %v2476, 2
        %v2828 = vsel %vm831, %v2825, %v2827
        %v2829 = vrot.slane %v2477, 2
        %v2830 = vsel %vm831, %v2827, %v2829
        %v2831 = vrot.slane %v2478, 2
        %v2832 = vsel %vm831, %v2829, %v2831
        %v2833 = vrot.slane %v2479, 2
        %v2834 = vsel %vm831, %v2831, %v2833
        %v2835 = vrot.slane %v2480, 2
        %v2836 = vsel %vm831, %v2833, %v2835
        %v2837 = vrot.slane %v2481, 2
        %v2838 = vsel %vm831, %v2835, %v2837
        %v2839 = vrot.slane %v2482, 2
        %v2840 = vsel %vm831, %v2837, %v2839
        %v2841 = vrot.slane %v2483, 2
        %v2842 = vsel %vm831, %v2839, %v2841
        %v2843 = vrot.slane %v2484, 2
        %v2844 = vsel %vm831, %v2841, %v2843
        %v2845 = vrot.slane %v2485, 2
        %v2846 = vsel %vm831, %v2843, %v2845
        %v2847 = vrot.slane %v2486, 2
        %v2848 = vsel %vm831, %v2845, %v2847
        %v2849 = vrot.slane %v2487, 2
        %v2850 = vsel %vm831, %v2847, %v2849
        %v2851 = vrot.slane %v2488, 2
        %v2852 = vsel %vm831, %v2849, %v2851
        %v2853 = vrot.slane %v2489, 2
        %v2854 = vsel %vm831, %v2851, %v2853
        %v2855 = vrot.slane %v2490, 2
        %v2856 = vsel %vm831, %v2853, %v2855
        %v2857 = vrot.slane %v2491, 2
        %v2858 = vsel %vm831, %v2855, %v2857
        %v2859 = vrot.slane %v2492, 2
        %v2860 = vsel %vm831, %v2857, %v2859
        %v2861 = vrot.slane %v2493, 2
        %v2862 = vsel %vm831, %v2859, %v2861
        %v2863 = vrot.slane %v2494, 2
        %v2864 = vsel %vm831, %v2861, %v2863
        %v2865 = vrot.slane %v2495, 2
        %v2866 = vsel %vm831, %v2863, %v2865
        %v2867 = vrot.slane %v2496, 2
        %v2868 = vsel %vm831, %v2865, %v2867
        %v2869 = vrot.slane %v2497, 2
        %v2870 = vsel %vm831, %v2867, %v2869
        %v2871 = vrot.slane %v2498, 2
        %v2872 = vsel %vm831, %v2869, %v2871
        %v2873 = vrot.slane %v2499, 2
        %v2874 = vsel %vm831, %v2871, %v2873
        %v2875 = vrot.slane %v2500, 2
        %v2876 = vsel %vm831, %v2873, %v2875
        %v2877 = vrot.slane %v2501, 2
        %v2878 = vsel %vm831, %v2875, %v2877
        %v2879 = vrot.slane %v2502, 2
        %v2880 = vsel %vm831, %v2877, %v2879
        %v2881 = vrot.slane %v2503, 2
        %v2882 = vsel %vm831, %v2879, %v2881
        %v2883 = vrot.slane %v2504, 2
        %v2884 = vsel %vm831, %v2881, %v2883
        %v2885 = vrot.slane %v2505, 2
        %v2886 = vsel %vm831, %v2883, %v2885
        %v2887 = vrot.slane %v2506, 2
        %v2888 = vsel %vm831, %v2885, %v2887
        %v2889 = vrot.slane %v2507, 2
        %v2890 = vsel %vm831, %v2887, %v2889
        %v2891 = vrot.slane %v2508, 2
        %v2892 = vsel %vm831, %v2889, %v2891
        %v2893 = vrot.slane %v2509, 2
        %v2894 = vsel %vm831, %v2891, %v2893
        %v2895 = vrot.slane %v2510, 2
        %v2896 = vsel %vm831, %v2893, %v2895
        %v2897 = vrot.slane %v2511, 2
        %v2898 = vsel %vm831, %v2895, %v2897
        %v2899 = vrot.slane %v2512, 2
        %v2900 = vsel %vm831, %v2897, %v2899
        %v2901 = vrot.slane %v2513, 2
        %v2902 = vsel %vm831, %v2899, %v2901
        %v2903 = vrot.slane %v2514, 2
        %v2904 = vsel %vm831, %v2901, %v2903
        %v2905 = vrot.slane %v2515, 2
        %v2906 = vsel %vm831, %v2903, %v2905
        %v2907 = vrot.slane %v2516, 2
        %v2908 = vsel %vm831, %v2905, %v2907
        %v2909 = vrot.slane %v2517, 2
        %v2910 = vsel %vm831, %v2907, %v2909
        %v2911 = vsel %vm376, %v2469, %v2671
        %v2912 = vsel %vm376, %v2470, %v2673
        %v2913 = vsel %vm376, %v2471, %v2675
        %v2914 = vsel %vm376, %v2472, %v2677
        %v2915 = vsel %vm376, %v2473, %v2679
        %v2916 = vsel %vm376, %v2474, %v2681
        %v2917 = vsel %vm376, %v2475, %v2683
        %v2918 = vsel %vm376, %v2476, %v2685
        %v2919 = vsel %vm376, %v2477, %v2687
        %v2920 = vsel %vm376, %v2478, %v2689
        %v2921 = vsel %vm376, %v2479, %v2691
        %v2922 = vsel %vm376, %v2480, %v2693
        %v2923 = vsel %vm376, %v2481, %v2695
        %v2924 = vsel %vm376, %v2482, %v2697
        %v2925 = vsel %vm376, %v2483, %v2699
        %v2926 = vsel %vm376, %v2484, %v2701
        %v2927 = vsel %vm376, %v2485, %v2703
        %v2928 = vsel %vm376, %v2486, %v2705
        %v2929 = vsel %vm376, %v2487, %v2707
        %v2930 = vsel %vm376, %v2488, %v2709
        %v2931 = vsel %vm376, %v2489, %v2711
        %v2932 = vsel %vm376, %v2490, %v2713
        %v2933 = vsel %vm376, %v2491, %v2715
        %v2934 = vsel %vm376, %v2492, %v2717
        %v2935 = vsel %vm376, %v2493, %v2719
        %v2936 = vsel %vm376, %v2494, %v2721
        %v2937 = vsel %vm376, %v2495, %v2723
        %v2938 = vsel %vm376, %v2496, %v2725
        %v2939 = vsel %vm376, %v2497, %v2727
        %v2940 = vsel %vm376, %v2498, %v2729
        %v2941 = vsel %vm376, %v2499, %v2731
        %v2942 = vsel %vm376, %v2500, %v2733
        %v2943 = vsel %vm376, %v2501, %v2735
        %v2944 = vsel %vm376, %v2502, %v2737
        %v2945 = vsel %vm376, %v2503, %v2739
        %v2946 = vsel %vm376, %v2504, %v2741
        %v2947 = vsel %vm376, %v2505, %v2743
        %v2948 = vsel %vm376, %v2506, %v2745
        %v2949 = vsel %vm376, %v2507, %v2747
        %v2950 = vsel %vm376, %v2508, %v2749
        %v2951 = vsel %vm376, %v2509, %v2751
        %v2952 = vsel %vm376, %v2510, %v2753
        %v2953 = vsel %vm376, %v2511, %v2755
        %v2954 = vsel %vm376, %v2512, %v2757
        %v2955 = vsel %vm376, %v2513, %v2759
        %v2956 = vsel %vm376, %v2514, %v2761
        %v2957 = vsel %vm376, %v2515, %v2763
        %v2958 = vsel %vm376, %v2516, %v2765
        %v2959 = vld [vmem:[#allocation8] sm:$0xff]
        %v2960 = vld [vmem:[#allocation8 + $0x8] sm:$0xff]
        %v2961 = vld [vmem:[#allocation8 + $0x10] sm:$0xff]
        %v2962 = vld [vmem:[#allocation8 + $0x18] sm:$0xff]
        %v2963 = vld [vmem:[#allocation8 + $0x20] sm:$0xff]
        %v2964 = vld [vmem:[#allocation8 + $0x28] sm:$0xff]
        %v2965 = vld [vmem:[#allocation8 + $0x30] sm:$0xff]
        %v2966 = vld [vmem:[#allocation8 + $0x38] sm:$0xff]
        %v2967 = vld [vmem:[#allocation8 + $0x40] sm:$0xff]
        %v2968 = vld [vmem:[#allocation8 + $0x48] sm:$0xff]
        %v2969 = vld [vmem:[#allocation8 + $0x50] sm:$0xff]
        %v2970 = vld [vmem:[#allocation8 + $0x58] sm:$0xff]
        %v2971 = vld [vmem:[#allocation8 + $0x60] sm:$0xff]
        %v2972 = vld [vmem:[#allocation8 + $0x68] sm:$0xff]
        %v2973 = vld [vmem:[#allocation8 + $0x70] sm:$0xff]
        %v2974 = vld [vmem:[#allocation8 + $0x78] sm:$0xff]
        %v2975 = vld [vmem:[#allocation8 + $0x80] sm:$0xff]
        %v2976 = vld [vmem:[#allocation8 + $0x88] sm:$0xff]
        %v2977 = vld [vmem:[#allocation8 + $0x90] sm:$0xff]
        %v2978 = vld [vmem:[#allocation8 + $0x98] sm:$0xff]
        %v2979 = vld [vmem:[#allocation8 + $0xa0] sm:$0xff]
        %v2980 = vld [vmem:[#allocation8 + $0xa8] sm:$0xff]
        %v2981 = vld [vmem:[#allocation8 + $0xb0] sm:$0xff]
        %v2982 = vld [vmem:[#allocation8 + $0xb8] sm:$0xff]
        %v2986 = vrot.slane %v2518, 1
        %v2987 = vsel %vm589, %v2668, %v2986
        %v2988 = vrot.slane %v2519, 1
        %v2989 = vsel %vm589, %v2986, %v2988
        %v2990 = vrot.slane %v2520, 1
        %v2991 = vsel %vm589, %v2988, %v2990
        %2992 = vrot.lane.b32.xlu0 %v2987, 64
        %v2993 = vpop.permute.xlu0 %2992
        %2994 = vrot.lane.b32.xlu0 %v2989, 64
        %v2995 = vpop.permute.xlu0 %2994
        %2996 = vrot.lane.b32.xlu0 %v2991, 64
        %v2997 = vpop.permute.xlu0 %2996
        %v3001 = vrot.slane %v2518, 2
        %v3002 = vsel %vm831, %v2909, %v3001
        %v3003 = vrot.slane %v2519, 2
        %v3004 = vsel %vm831, %v3001, %v3003
        %v3005 = vrot.slane %v2520, 2
        %v3006 = vsel %vm831, %v3003, %v3005
        %v3007 = vsel %vm376, %v2517, %v2993
        %v3008 = vsel %vm376, %v2518, %v2995
        %v3009 = vsel %vm376, %v2519, %v2997
        %s3010 = scalar_lea.vmem [#allocation8], 192
        %v3011 = vld [vmem:[%s3010] sm:$0xff]
        %v3012 = vld [vmem:[%s3010 + $0x8] sm:$0xff]
        %v3013 = vld [vmem:[%s3010 + $0x10] sm:$0xff]
        %v3014 = vld [vmem:[%s3010 + $0x18] sm:$0xff]
        %v3015 = vld [vmem:[%s3010 + $0x20] sm:$0xff]
        %v3016 = vld [vmem:[%s3010 + $0x28] sm:$0xff]
        %v3017 = vld [vmem:[%s3010 + $0x30] sm:$0xff]
        %v3018 = vld [vmem:[%s3010 + $0x38] sm:$0xff]
        %v3019 = vld [vmem:[%s3010 + $0x40] sm:$0xff]
        %v3020 = vld [vmem:[%s3010 + $0x48] sm:$0xff]
        %v3021 = vld [vmem:[%s3010 + $0x50] sm:$0xff]
        %v3022 = vld [vmem:[%s3010 + $0x58] sm:$0xff]
        %v3023 = vld [vmem:[%s3010 + $0x60] sm:$0xff]
        %v3024 = vld [vmem:[%s3010 + $0x68] sm:$0xff]
        %v3025 = vld [vmem:[%s3010 + $0x70] sm:$0xff]
        %v3026 = vld [vmem:[%s3010 + $0x78] sm:$0xff]
        %v3027 = vld [vmem:[%s3010 + $0x80] sm:$0xff]
        %v3028 = vld [vmem:[%s3010 + $0x88] sm:$0xff]
        %v3029 = vld [vmem:[%s3010 + $0x90] sm:$0xff]
        %v3030 = vld [vmem:[%s3010 + $0x98] sm:$0xff]
        %v3031 = vld [vmem:[%s3010 + $0xa0] sm:$0xff]
        %v3032 = vld [vmem:[%s3010 + $0xa8] sm:$0xff]
        %v3033 = vld [vmem:[%s3010 + $0xb0] sm:$0xff]
        %v3034 = vld [vmem:[%s3010 + $0xb8] sm:$0xff]
        %v3035 = vsel %vm376, %v2822, 0
        %v3037 = vsel %vm376, %v2824, 0
        %v3039 = vsel %vm376, %v2826, 0
        %v3041 = vsel %vm376, %v2828, 0
        %v3043 = vsel %vm376, %v2830, 0
        %v3045 = vsel %vm376, %v2832, 0
        %v3047 = vsel %vm376, %v2834, 0
        %v3049 = vsel %vm376, %v2836, 0
        %v3051 = vsel %vm376, %v2838, 0
        %v3053 = vsel %vm376, %v2840, 0
        %v3055 = vsel %vm376, %v2842, 0
        %v3057 = vsel %vm376, %v2844, 0
        %v3059 = vsel %vm376, %v2846, 0
        %v3061 = vsel %vm376, %v2848, 0
        %v3063 = vsel %vm376, %v2850, 0
        %v3065 = vsel %vm376, %v2852, 0
        %v3067 = vsel %vm376, %v2854, 0
        %v3069 = vsel %vm376, %v2856, 0
        %v3071 = vsel %vm376, %v2858, 0
        %v3073 = vsel %vm376, %v2860, 0
        %v3075 = vsel %vm376, %v2862, 0
        %v3077 = vsel %vm376, %v2864, 0
        %v3079 = vsel %vm376, %v2866, 0
        %v3081 = vsel %vm376, %v2868, 0
        %v3083 = vsel %vm376, %v2870, 0
        %v3085 = vsel %vm376, %v2872, 0
        %v3087 = vsel %vm376, %v2874, 0
        %v3089 = vsel %vm376, %v2876, 0
        %v3091 = vsel %vm376, %v2878, 0
        %v3093 = vsel %vm376, %v2880, 0
        %v3095 = vsel %vm376, %v2882, 0
        %v3097 = vsel %vm376, %v2884, 0
        %v3099 = vsel %vm376, %v2886, 0
        %v3101 = vsel %vm376, %v2888, 0
        %v3103 = vsel %vm376, %v2890, 0
        %v3105 = vsel %vm376, %v2892, 0
        %v3107 = vsel %vm376, %v2894, 0
        %v3109 = vsel %vm376, %v2896, 0
        %v3111 = vsel %vm376, %v2898, 0
        %v3113 = vsel %vm376, %v2900, 0
        %v3115 = vsel %vm376, %v2902, 0
        %v3117 = vsel %vm376, %v2904, 0
        %v3119 = vsel %vm376, %v2906, 0
        %v3121 = vsel %vm376, %v2908, 0
        %v3123 = vsel %vm376, %v2910, 0
        %v3125 = vsel %vm376, %v3002, 0
        %v3127 = vsel %vm376, %v3004, 0
        %v3129 = vsel %vm376, %v3006, 0
        %3131 = vmatprep.subr.mxu0 0.0
        %3132 = vmatpush1.msra.mxu0 %v3011
        %3133 = vmatprep.subr.mxu0 0.0
        %3134 = vmatpush1.msra.mxu0 %v3012
        %3135 = vmatprep.subr.mxu0 0.0
        %3136 = vmatpush1.msra.mxu0 %v3013
        %3137 = vmatprep.subr.mxu0 0.0
        %3138 = vmatpush1.msra.mxu0 %v3014
        %3139 = vmatprep.subr.mxu0 0.0
        %3140 = vmatpush1.msra.mxu0 %v3015
        %3141 = vmatprep.subr.mxu0 0.0
        %3142 = vmatpush1.msra.mxu0 %v3016
        %3143 = vmatprep.subr.mxu0 0.0
        %3144 = vmatpush1.msra.mxu0 %v3017
        %3145 = vmatprep.subr.mxu0 0.0
        %3146 = vmatpush1.msra.mxu0 %v3018
        %3147 = vmatprep.subr.mxu0 0.0
        %3148 = vmatpush1.msra.mxu0 %v3019
        %3149 = vmatprep.subr.mxu0 0.0
        %3150 = vmatpush1.msra.mxu0 %v3020
        %3151 = vmatprep.subr.mxu0 0.0
        %3152 = vmatpush1.msra.mxu0 %v3021
        %3153 = vmatprep.subr.mxu0 0.0
        %3154 = vmatpush1.msra.mxu0 %v3022
        %3155 = vmatprep.subr.mxu0 0.0
        %3156 = vmatpush1.msra.mxu0 %v3023
        %3157 = vmatprep.subr.mxu0 0.0
        %3158 = vmatpush1.msra.mxu0 %v3024
        %3159 = vmatprep.subr.mxu0 0.0
        %3160 = vmatpush1.msra.mxu0 %v3025
        %3161 = vmatprep.subr.mxu0 0.0
        %3162 = vmatpush1.msra.mxu0 %v3026
        %3163 = vmatprep.subr.mxu0 0.0
        %3164 = vmatpush1.msra.mxu0 %v3027
        %3165 = vmatprep.subr.mxu0 0.0
        %3166 = vmatpush1.msra.mxu0 %v3028
        %3167 = vmatprep.subr.mxu0 0.0
        %3168 = vmatpush1.msra.mxu0 %v3029
        %3169 = vmatprep.subr.mxu0 0.0
        %3170 = vmatpush1.msra.mxu0 %v3030
        %3171 = vmatprep.subr.mxu0 0.0
        %3172 = vmatpush1.msra.mxu0 %v3031
        %3173 = vmatprep.subr.mxu0 0.0
        %3174 = vmatpush1.msra.mxu0 %v3032
        %3175 = vmatprep.subr.mxu0 0.0
        %3176 = vmatpush1.msra.mxu0 %v3033
        %3177 = vmatprep.subr.mxu0 0.0
        %3178 = vmatpush1.msra.mxu0 %v3034
        %3179 = vmatprep.subr.mxu0 0.0
        %3180 = vmatpush1.msra.mxu0 0.0
        %3181 = vmatprep.subr.mxu0 0.0
        %3182 = vmatpush1.msra.mxu0 0.0
        %3183 = vmatprep.subr.mxu0 0.0
        %3184 = vmatpush1.msra.mxu0 0.0
        %3185 = vmatprep.subr.mxu0 0.0
        %3186 = vmatpush1.msra.mxu0 0.0
        %3187 = vmatprep.subr.mxu0 0.0
        %3188 = vmatpush1.msra.mxu0 0.0
        %3189 = vmatprep.subr.mxu0 0.0
        %3190 = vmatpush1.msra.mxu0 0.0
        %3191 = vmatprep.subr.mxu0 0.0
        %3192 = vmatpush1.msra.mxu0 0.0
        %3193 = vmatprep.subr.mxu0 0.0
        %3194 = vmatpush1.msra.mxu0 0.0
        %3195 = vmatprep.mubr.f32.mxu0 %v3035
        %3196 = vmatmul.mubr.f32.gmra.mrb[0].mxu0 %v2914
        %v3197 = vpop.f32.mrb[0].mxu0
        %v3198 = vadd.f32 0.0, %v3197
        %v3199 = vpop.f32.mrb[0].mxu0
        %3200 = vmatprep.mubr.f32.mxu0 %v3037
        %3201 = vmatmul.mubr.f32.gmra.mrb[0].mxu0 %v2915
        %v3202 = vpop.f32.mrb[0].mxu0
        %v3203 = vadd.f32 0.0, %v3202
        %v3204 = vpop.f32.mrb[0].mxu0
        %3205 = vmatprep.mubr.f32.mxu0 %v3039
        %3206 = vmatmul.mubr.f32.gmra.mrb[0].mxu0 %v2916
        %v3207 = vpop.f32.mrb[0].mxu0
        %v3208 = vpop.f32.mrb[0].mxu0
        %3209 = vmatprep.mubr.f32.mxu0 %v3041
        %3210 = vmatmul.mubr.f32.gmra.mrb[0].mxu0 %v2917
        %v3211 = vpop.f32.mrb[0].mxu0
        %v3212 = vadd.f32 0.0, %v3211
        %v3213 = vpop.f32.mrb[0].mxu0
        %3214 = vmatprep.mubr.f32.mxu0 %v3043
        %3215 = vmatmul.mubr.f32.gmra.mrb[0].mxu0 %v2918
        %v3216 = vpop.f32.mrb[0].mxu0
        %v3217 = vadd.f32 0.0, %v3216
        %v3218 = vpop.f32.mrb[0].mxu0
        %3219 = vmatprep.mubr.f32.mxu0 %v3045
        %3220 = vmatmul.mubr.f32.gmra.mrb[0].mxu0 %v2919
        %v3221 = vpop.f32.mrb[0].mxu0
        %v3222 = vpop.f32.mrb[0].mxu0
        %3223 = vmatprep.mubr.f32.mxu0 %v3047
        %3224 = vmatmul.mubr.f32.gmra.mrb[0].mxu0 %v2920
        %v3225 = vpop.f32.mrb[0].mxu0
        %v3226 = vadd.f32 0.0, %v3225
        %v3227 = vpop.f32.mrb[0].mxu0
        %3228 = vmatprep.mubr.f32.mxu0 %v3049
        %3229 = vmatmul.mubr.f32.gmra.mrb[0].mxu0 %v2921
        %v3230 = vpop.f32.mrb[0].mxu0
        %v3231 = vadd.f32 0.0, %v3230
        %v3232 = vpop.f32.mrb[0].mxu0
        %3233 = vmatprep.mubr.f32.mxu0 %v3051
        %3234 = vmatmul.mubr.f32.gmra.mrb[0].mxu0 %v2922
        %v3235 = vpop.f32.mrb[0].mxu0
        %v3236 = vpop.f32.mrb[0].mxu0
        %3237 = vmatprep.mubr.f32.mxu0 %v3053
        %3238 = vmatmul.mubr.f32.gmra.mrb[0].mxu0 %v2923
        %v3239 = vpop.f32.mrb[0].mxu0
        %v3240 = vadd.f32 0.0, %v3239
        %v3241 = vpop.f32.mrb[0].mxu0
        %3242 = vmatprep.mubr.f32.mxu0 %v3055
        %3243 = vmatmul.mubr.f32.gmra.mrb[0].mxu0 %v2924
        %v3244 = vpop.f32.mrb[0].mxu0
        %v3245 = vadd.f32 0.0, %v3244
        %v3246 = vpop.f32.mrb[0].mxu0
        %3247 = vmatprep.mubr.f32.mxu0 %v3057
        %3248 = vmatmul.mubr.f32.gmra.mrb[0].mxu0 %v2925
        %v3249 = vpop.f32.mrb[0].mxu0
        %v3250 = vpop.f32.mrb[0].mxu0
        %3251 = vmatprep.mubr.f32.mxu0 %v3059
        %3252 = vmatmul.mubr.f32.gmra.mrb[0].mxu0 %v2926
        %v3253 = vpop.f32.mrb[0].mxu0
        %v3254 = vadd.f32 0.0, %v3253
        %v3255 = vpop.f32.mrb[0].mxu0
        %3256 = vmatprep.mubr.f32.mxu0 %v3061
        %3257 = vmatmul.mubr.f32.gmra.mrb[0].mxu0 %v2927
        %v3258 = vpop.f32.mrb[0].mxu0
        %v3259 = vadd.f32 0.0, %v3258
        %v3260 = vpop.f32.mrb[0].mxu0
        %3261 = vmatprep.mubr.f32.mxu0 %v3063
        %3262 = vmatmul.mubr.f32.gmra.mrb[0].mxu0 %v2928
        %v3263 = vpop.f32.mrb[0].mxu0
        %v3264 = vpop.f32.mrb[0].mxu0
        %3265 = vmatprep.mubr.f32.mxu0 %v3065
        %3266 = vmatmul.mubr.f32.gmra.mrb[0].mxu0 %v2929
        %v3267 = vpop.f32.mrb[0].mxu0
        %v3268 = vadd.f32 0.0, %v3267
        %v3269 = vpop.f32.mrb[0].mxu0
        %3270 = vmatprep.mubr.f32.mxu0 %v3067
        %3271 = vmatmul.mubr.f32.gmra.mrb[0].mxu0 %v2930
        %v3272 = vpop.f32.mrb[0].mxu0
        %v3273 = vadd.f32 0.0, %v3272
        %v3274 = vpop.f32.mrb[0].mxu0
        %3275 = vmatprep.mubr.f32.mxu0 %v3069
        %3276 = vmatmul.mubr.f32.gmra.mrb[0].mxu0 %v2931
        %v3277 = vpop.f32.mrb[0].mxu0
        %v3278 = vpop.f32.mrb[0].mxu0
        %3279 = vmatprep.mubr.f32.mxu0 %v3071
        %3280 = vmatmul.mubr.f32.gmra.mrb[0].mxu0 %v2932
        %v3281 = vpop.f32.mrb[0].mxu0
        %v3282 = vadd.f32 0.0, %v3281
        %v3283 = vpop.f32.mrb[0].mxu0
        %3284 = vmatprep.mubr.f32.mxu0 %v3073
        %3285 = vmatmul.mubr.f32.gmra.mrb[0].mxu0 %v2933
        %v3286 = vpop.f32.mrb[0].mxu0
        %v3287 = vadd.f32 0.0, %v3286
        %v3288 = vpop.f32.mrb[0].mxu0
        %3289 = vmatprep.mubr.f32.mxu0 %v3075
        %3290 = vmatmul.mubr.f32.gmra.mrb[0].mxu0 %v2934
        %v3291 = vpop.f32.mrb[0].mxu0
        %v3292 = vpop.f32.mrb[0].mxu0
        %3293 = vmatprep.mubr.f32.mxu0 %v3077
        %3294 = vmatmul.mubr.f32.gmra.mrb[0].mxu0 %v2935
        %v3295 = vpop.f32.mrb[0].mxu0
        %v3296 = vadd.f32 0.0, %v3295
        %v3297 = vpop.f32.mrb[0].mxu0
        %3298 = vmatprep.mubr.f32.mxu0 %v3079
        %3299 = vmatmul.mubr.f32.gmra.mrb[0].mxu0 %v2936
        %v3300 = vpop.f32.mrb[0].mxu0
        %v3301 = vadd.f32 0.0, %v3300
        %v3302 = vpop.f32.mrb[0].mxu0
        %3303 = vmatprep.mubr.f32.mxu0 %v3081
        %3304 = vmatmul.mubr.f32.gmra.mrb[0].mxu0 %v2937
        %v3305 = vpop.f32.mrb[0].mxu0
        %v3306 = vpop.f32.mrb[0].mxu0
        %3307 = vmatprep.mubr.f32.mxu0 %v3083
        %3308 = vmatmul.mubr.f32.gmra.mrb[0].mxu0 %v2938
        %v3309 = vpop.f32.mrb[0].mxu0
        %v3310 = vadd.f32 0.0, %v3309
        %v3311 = vpop.f32.mrb[0].mxu0
        %3312 = vmatprep.mubr.f32.mxu0 %v3085
        %3313 = vmatmul.mubr.f32.gmra.mrb[0].mxu0 %v2939
        %v3314 = vpop.f32.mrb[0].mxu0
        %v3315 = vadd.f32 0.0, %v3314
        %v3316 = vpop.f32.mrb[0].mxu0
        %3317 = vmatprep.mubr.f32.mxu0 %v3087
        %3318 = vmatmul.mubr.f32.gmra.mrb[0].mxu0 %v2940
        %v3319 = vpop.f32.mrb[0].mxu0
        %v3320 = vpop.f32.mrb[0].mxu0
        %3321 = vmatprep.mubr.f32.mxu0 %v3089
        %3322 = vmatmul.mubr.f32.gmra.mrb[0].mxu0 %v2941
        %v3323 = vpop.f32.mrb[0].mxu0
        %v3324 = vadd.f32 0.0, %v3323
        %v3325 = vpop.f32.mrb[0].mxu0
        %3326 = vmatprep.mubr.f32.mxu0 %v3091
        %3327 = vmatmul.mubr.f32.gmra.mrb[0].mxu0 %v2942
        %v3328 = vpop.f32.mrb[0].mxu0
        %v3329 = vadd.f32 0.0, %v3328
        %v3330 = vpop.f32.mrb[0].mxu0
        %3331 = vmatprep.mubr.f32.mxu0 %v3093
        %3332 = vmatmul.mubr.f32.gmra.mrb[0].mxu0 %v2943
        %v3333 = vpop.f32.mrb[0].mxu0
        %v3334 = vpop.f32.mrb[0].mxu0
        %3335 = vmatprep.mubr.f32.mxu0 %v3095
        %3336 = vmatmul.mubr.f32.gmra.mrb[0].mxu0 %v2944
        %v3337 = vpop.f32.mrb[0].mxu0
        %v3338 = vadd.f32 0.0, %v3337
        %v3339 = vpop.f32.mrb[0].mxu0
        %3340 = vmatprep.mubr.f32.mxu0 %v3097
        %3341 = vmatmul.mubr.f32.gmra.mrb[0].mxu0 %v2945
        %v3342 = vpop.f32.mrb[0].mxu0
        %v3343 = vadd.f32 0.0, %v3342
        %v3344 = vpop.f32.mrb[0].mxu0
        %3345 = vmatprep.mubr.f32.mxu0 %v3099
        %3346 = vmatmul.mubr.f32.gmra.mrb[0].mxu0 %v2946
        %v3347 = vpop.f32.mrb[0].mxu0
        %v3348 = vpop.f32.mrb[0].mxu0
        %3349 = vmatprep.mubr.f32.mxu0 %v3101
        %3350 = vmatmul.mubr.f32.gmra.mrb[0].mxu0 %v2947
        %v3351 = vpop.f32.mrb[0].mxu0
        %v3352 = vadd.f32 0.0, %v3351
        %v3353 = vpop.f32.mrb[0].mxu0
        %3354 = vmatprep.mubr.f32.mxu0 %v3103
        %3355 = vmatmul.mubr.f32.gmra.mrb[0].mxu0 %v2948
        %v3356 = vpop.f32.mrb[0].mxu0
        %v3357 = vadd.f32 0.0, %v3356
        %v3358 = vpop.f32.mrb[0].mxu0
        %3359 = vmatprep.mubr.f32.mxu0 %v3105
        %3360 = vmatmul.mubr.f32.gmra.mrb[0].mxu0 %v2949
        %v3361 = vpop.f32.mrb[0].mxu0
        %v3362 = vpop.f32.mrb[0].mxu0
        %3363 = vmatprep.mubr.f32.mxu0 %v3107
        %3364 = vmatmul.mubr.f32.gmra.mrb[0].mxu0 %v2950
        %v3365 = vpop.f32.mrb[0].mxu0
        %v3366 = vadd.f32 0.0, %v3365
        %v3367 = vpop.f32.mrb[0].mxu0
        %3368 = vmatprep.mubr.f32.mxu0 %v3109
        %3369 = vmatmul.mubr.f32.gmra.mrb[0].mxu0 %v2951
        %v3370 = vpop.f32.mrb[0].mxu0
        %v3371 = vadd.f32 0.0, %v3370
        %v3372 = vpop.f32.mrb[0].mxu0
        %3373 = vmatprep.mubr.f32.mxu0 %v3111
        %3374 = vmatmul.mubr.f32.gmra.mrb[0].mxu0 %v2952
        %v3375 = vpop.f32.mrb[0].mxu0
        %v3376 = vpop.f32.mrb[0].mxu0
        %3377 = vmatprep.mubr.f32.mxu0 %v3113
        %3378 = vmatmul.mubr.f32.gmra.mrb[0].mxu0 %v2953
        %v3379 = vpop.f32.mrb[0].mxu0
        %v3380 = vadd.f32 0.0, %v3379
        %v3381 = vpop.f32.mrb[0].mxu0
        %3382 = vmatprep.mubr.f32.mxu0 %v3115
        %3383 = vmatmul.mubr.f32.gmra.mrb[0].mxu0 %v2954
        %v3384 = vpop.f32.mrb[0].mxu0
        %v3385 = vadd.f32 0.0, %v3384
        %v3386 = vpop.f32.mrb[0].mxu0
        %3387 = vmatprep.mubr.f32.mxu0 %v3117
        %3388 = vmatmul.mubr.f32.gmra.mrb[0].mxu0 %v2955
        %v3389 = vpop.f32.mrb[0].mxu0
        %v3390 = vpop.f32.mrb[0].mxu0
        %3391 = vmatprep.mubr.f32.mxu0 %v3119
        %3392 = vmatmul.mubr.f32.gmra.mrb[0].mxu0 %v2956
        %v3393 = vpop.f32.mrb[0].mxu0
        %v3394 = vadd.f32 0.0, %v3393
        %v3395 = vpop.f32.mrb[0].mxu0
        %3396 = vmatprep.mubr.f32.mxu0 %v3121
        %3397 = vmatmul.mubr.f32.gmra.mrb[0].mxu0 %v2957
        %v3398 = vpop.f32.mrb[0].mxu0
        %v3399 = vadd.f32 0.0, %v3398
        %v3400 = vpop.f32.mrb[0].mxu0
        %3401 = vmatprep.mubr.f32.mxu0 %v3123
        %3402 = vmatmul.mubr.f32.gmra.mrb[0].mxu0 %v2958
        %v3403 = vpop.f32.mrb[0].mxu0
        %v3404 = vpop.f32.mrb[0].mxu0
        %3405 = vmatprep.mubr.f32.mxu0 %v3125
        %3406 = vmatmul.mubr.f32.gmra.mrb[0].mxu0 %v3007
        %v3407 = vpop.f32.mrb[0].mxu0
        %v3408 = vadd.f32 0.0, %v3407
        %v3409 = vpop.f32.mrb[0].mxu0
        %3410 = vmatprep.mubr.f32.mxu0 %v3127
        %3411 = vmatmul.mubr.f32.gmra.mrb[0].mxu0 %v3008
        %v3412 = vpop.f32.mrb[0].mxu0
        %v3413 = vadd.f32 0.0, %v3412
        %v3414 = vpop.f32.mrb[0].mxu0
        %3415 = vmatprep.mubr.f32.mxu0 %v3129
        %3416 = vmatmul.mubr.f32.gmra.mrb[0].mxu0 %v3009
        %v3417 = vpop.f32.mrb[0].mxu0
        %v3418 = vpop.f32.mrb[0].mxu0
        %3419 = vdwg.mxu0
        %v3420 = vsel %vm376, %v2816, 0
        %v3422 = vsel %vm376, %v2818, 0
        %v3424 = vsel %vm376, %v2820, 0
        %3426 = vmatprep.subr.mxu0 0.0
        %3427 = vmatpush1.msra.mxu0 %v2959
        %3428 = vmatprep.subr.mxu0 0.0
        %3429 = vmatpush1.msra.mxu0 %v2960
        %3430 = vmatprep.subr.mxu0 0.0
        %3431 = vmatpush1.msra.mxu0 %v2961
        %3432 = vmatprep.subr.mxu0 0.0
        %3433 = vmatpush1.msra.mxu0 %v2962
        %3434 = vmatprep.subr.mxu0 0.0
        %3435 = vmatpush1.msra.mxu0 %v2963
        %3436 = vmatprep.subr.mxu0 0.0
        %3437 = vmatpush1.msra.mxu0 %v2964
        %3438 = vmatprep.subr.mxu0 0.0
        %3439 = vmatpush1.msra.mxu0 %v2965
        %3440 = vmatprep.subr.mxu0 0.0
        %3441 = vmatpush1.msra.mxu0 %v2966
        %3442 = vmatprep.subr.mxu0 0.0
        %3443 = vmatpush1.msra.mxu0 %v2967
        %3444 = vmatprep.subr.mxu0 0.0
        %3445 = vmatpush1.msra.mxu0 %v2968
        %3446 = vmatprep.subr.mxu0 0.0
        %3447 = vmatpush1.msra.mxu0 %v2969
        %3448 = vmatprep.subr.mxu0 0.0
        %3449 = vmatpush1.msra.mxu0 %v2970
        %3450 = vmatprep.subr.mxu0 0.0
        %3451 = vmatpush1.msra.mxu0 %v2971
        %3452 = vmatprep.subr.mxu0 0.0
        %3453 = vmatpush1.msra.mxu0 %v2972
        %3454 = vmatprep.subr.mxu0 0.0
        %3455 = vmatpush1.msra.mxu0 %v2973
        %3456 = vmatprep.subr.mxu0 0.0
        %3457 = vmatpush1.msra.mxu0 %v2974
        %3458 = vmatprep.subr.mxu0 0.0
        %3459 = vmatpush1.msra.mxu0 %v2975
        %3460 = vmatprep.subr.mxu0 0.0
        %3461 = vmatpush1.msra.mxu0 %v2976
        %3462 = vmatprep.subr.mxu0 0.0
        %3463 = vmatpush1.msra.mxu0 %v2977
        %3464 = vmatprep.subr.mxu0 0.0
        %3465 = vmatpush1.msra.mxu0 %v2978
        %3466 = vmatprep.subr.mxu0 0.0
        %3467 = vmatpush1.msra.mxu0 %v2979
        %3468 = vmatprep.subr.mxu0 0.0
        %3469 = vmatpush1.msra.mxu0 %v2980
        %3470 = vmatprep.subr.mxu0 0.0
        %3471 = vmatpush1.msra.mxu0 %v2981
        %3472 = vmatprep.subr.mxu0 0.0
        %3473 = vmatpush1.msra.mxu0 %v2982
        %3474 = vmatprep.subr.mxu0 0.0
        %3475 = vmatpush1.msra.mxu0 0.0
        %3476 = vmatprep.subr.mxu0 0.0
        %3477 = vmatpush1.msra.mxu0 0.0
        %3478 = vmatprep.subr.mxu0 0.0
        %3479 = vmatpush1.msra.mxu0 0.0
        %3480 = vmatprep.subr.mxu0 0.0
        %3481 = vmatpush1.msra.mxu0 0.0
        %3482 = vmatprep.subr.mxu0 0.0
        %3483 = vmatpush1.msra.mxu0 0.0
        %3484 = vmatprep.subr.mxu0 0.0
        %3485 = vmatpush1.msra.mxu0 0.0
        %3486 = vmatprep.subr.mxu0 0.0
        %3487 = vmatpush1.msra.mxu0 0.0
        %3488 = vmatprep.subr.mxu0 0.0
        %3489 = vmatpush1.msra.mxu0 0.0
        %3490 = vmatprep.mubr.f32.mxu0 %v3420
        %3491 = vmatmul.mubr.f32.gmra.mrb[0].mxu0 %v2911
        %v3492 = vpop.f32.mrb[0].mxu0
        %v3493 = vadd.f32 %v3198, %v3492
        %v3494 = vpop.f32.mrb[0].mxu0
        %3495 = vmatprep.mubr.f32.mxu0 %v3422
        %3496 = vmatmul.mubr.f32.gmra.mrb[0].mxu0 %v2912
        %v3497 = vpop.f32.mrb[0].mxu0
        %v3498 = vadd.f32 %v3203, %v3497
        %v3499 = vpop.f32.mrb[0].mxu0
        %3500 = vmatprep.mubr.f32.mxu0 %v3424
        %3501 = vmatmul.mubr.f32.gmra.mrb[0].mxu0 %v2913
        %v3502 = vpop.f32.mrb[0].mxu0
        %v3503 = vpop.f32.mrb[0].mxu0
        %3504 = vmatprep.mubr.f32.mxu0 %v3035
        %3505 = vmatmul.mubr.f32.gmra.mrb[0].mxu0 %v2914
        %v3506 = vpop.f32.mrb[0].mxu0
        %v3507 = vadd.f32 %v3212, %v3506
        %v3508 = vpop.f32.mrb[0].mxu0
        %3509 = vmatprep.mubr.f32.mxu0 %v3037
        %3510 = vmatmul.mubr.f32.gmra.mrb[0].mxu0 %v2915
        %v3511 = vpop.f32.mrb[0].mxu0
        %v3512 = vadd.f32 %v3217, %v3511
        %v3513 = vpop.f32.mrb[0].mxu0
        %3514 = vmatprep.mubr.f32.mxu0 %v3039
        %3515 = vmatmul.mubr.f32.gmra.mrb[0].mxu0 %v2916
        %v3516 = vpop.f32.mrb[0].mxu0
        %v3517 = vpop.f32.mrb[0].mxu0
        %3518 = vmatprep.mubr.f32.mxu0 %v3041
        %3519 = vmatmul.mubr.f32.gmra.mrb[0].mxu0 %v2917
        %v3520 = vpop.f32.mrb[0].mxu0
        %v3521 = vadd.f32 %v3226, %v3520
        %v3522 = vpop.f32.mrb[0].mxu0
        %3523 = vmatprep.mubr.f32.mxu0 %v3043
        %3524 = vmatmul.mubr.f32.gmra.mrb[0].mxu0 %v2918
        %v3525 = vpop.f32.mrb[0].mxu0
        %v3526 = vadd.f32 %v3231, %v3525
        %v3527 = vpop.f32.mrb[0].mxu0
        %3528 = vmatprep.mubr.f32.mxu0 %v3045
        %3529 = vmatmul.mubr.f32.gmra.mrb[0].mxu0 %v2919
        %v3530 = vpop.f32.mrb[0].mxu0
        %v3531 = vpop.f32.mrb[0].mxu0
        %3532 = vmatprep.mubr.f32.mxu0 %v3047
        %3533 = vmatmul.mubr.f32.gmra.mrb[0].mxu0 %v2920
        %v3534 = vpop.f32.mrb[0].mxu0
        %v3535 = vadd.f32 %v3240, %v3534
        %v3536 = vpop.f32.mrb[0].mxu0
        %3537 = vmatprep.mubr.f32.mxu0 %v3049
        %3538 = vmatmul.mubr.f32.gmra.mrb[0].mxu0 %v2921
        %v3539 = vpop.f32.mrb[0].mxu0
        %v3540 = vadd.f32 %v3245, %v3539
        %v3541 = vpop.f32.mrb[0].mxu0
        %3542 = vmatprep.mubr.f32.mxu0 %v3051
        %3543 = vmatmul.mubr.f32.gmra.mrb[0].mxu0 %v2922
        %v3544 = vpop.f32.mrb[0].mxu0
        %v3545 = vpop.f32.mrb[0].mxu0
        %3546 = vmatprep.mubr.f32.mxu0 %v3053
        %3547 = vmatmul.mubr.f32.gmra.mrb[0].mxu0 %v2923
        %v3548 = vpop.f32.mrb[0].mxu0
        %v3549 = vadd.f32 %v3254, %v3548
        %v3550 = vpop.f32.mrb[0].mxu0
        %3551 = vmatprep.mubr.f32.mxu0 %v3055
        %3552 = vmatmul.mubr.f32.gmra.mrb[0].mxu0 %v2924
        %v3553 = vpop.f32.mrb[0].mxu0
        %v3554 = vadd.f32 %v3259, %v3553
        %v3555 = vpop.f32.mrb[0].mxu0
        %3556 = vmatprep.mubr.f32.mxu0 %v3057
        %3557 = vmatmul.mubr.f32.gmra.mrb[0].mxu0 %v2925
        %v3558 = vpop.f32.mrb[0].mxu0
        %v3559 = vpop.f32.mrb[0].mxu0
        %3560 = vmatprep.mubr.f32.mxu0 %v3059
        %3561 = vmatmul.mubr.f32.gmra.mrb[0].mxu0 %v2926
        %v3562 = vpop.f32.mrb[0].mxu0
        %v3563 = vadd.f32 %v3268, %v3562
        %v3564 = vpop.f32.mrb[0].mxu0
        %3565 = vmatprep.mubr.f32.mxu0 %v3061
        %3566 = vmatmul.mubr.f32.gmra.mrb[0].mxu0 %v2927
        %v3567 = vpop.f32.mrb[0].mxu0
        %v3568 = vadd.f32 %v3273, %v3567
        %v3569 = vpop.f32.mrb[0].mxu0
        %3570 = vmatprep.mubr.f32.mxu0 %v3063
        %3571 = vmatmul.mubr.f32.gmra.mrb[0].mxu0 %v2928
        %v3572 = vpop.f32.mrb[0].mxu0
        %v3573 = vpop.f32.mrb[0].mxu0
        %3574 = vmatprep.mubr.f32.mxu0 %v3065
        %3575 = vmatmul.mubr.f32.gmra.mrb[0].mxu0 %v2929
        %v3576 = vpop.f32.mrb[0].mxu0
        %v3577 = vadd.f32 %v3282, %v3576
        %v3578 = vpop.f32.mrb[0].mxu0
        %3579 = vmatprep.mubr.f32.mxu0 %v3067
        %3580 = vmatmul.mubr.f32.gmra.mrb[0].mxu0 %v2930
        %v3581 = vpop.f32.mrb[0].mxu0
        %v3582 = vadd.f32 %v3287, %v3581
        %v3583 = vpop.f32.mrb[0].mxu0
        %3584 = vmatprep.mubr.f32.mxu0 %v3069
        %3585 = vmatmul.mubr.f32.gmra.mrb[0].mxu0 %v2931
        %v3586 = vpop.f32.mrb[0].mxu0
        %v3587 = vpop.f32.mrb[0].mxu0
        %3588 = vmatprep.mubr.f32.mxu0 %v3071
        %3589 = vmatmul.mubr.f32.gmra.mrb[0].mxu0 %v2932
        %v3590 = vpop.f32.mrb[0].mxu0
        %v3591 = vadd.f32 %v3296, %v3590
        %v3592 = vpop.f32.mrb[0].mxu0
        %3593 = vmatprep.mubr.f32.mxu0 %v3073
        %3594 = vmatmul.mubr.f32.gmra.mrb[0].mxu0 %v2933
        %v3595 = vpop.f32.mrb[0].mxu0
        %v3596 = vadd.f32 %v3301, %v3595
        %v3597 = vpop.f32.mrb[0].mxu0
        %3598 = vmatprep.mubr.f32.mxu0 %v3075
        %3599 = vmatmul.mubr.f32.gmra.mrb[0].mxu0 %v2934
        %v3600 = vpop.f32.mrb[0].mxu0
        %v3601 = vpop.f32.mrb[0].mxu0
        %3602 = vmatprep.mubr.f32.mxu0 %v3077
        %3603 = vmatmul.mubr.f32.gmra.mrb[0].mxu0 %v2935
        %v3604 = vpop.f32.mrb[0].mxu0
        %v3605 = vadd.f32 %v3310, %v3604
        %v3606 = vpop.f32.mrb[0].mxu0
        %3607 = vmatprep.mubr.f32.mxu0 %v3079
        %3608 = vmatmul.mubr.f32.gmra.mrb[0].mxu0 %v2936
        %v3609 = vpop.f32.mrb[0].mxu0
        %v3610 = vadd.f32 %v3315, %v3609
        %v3611 = vpop.f32.mrb[0].mxu0
        %3612 = vmatprep.mubr.f32.mxu0 %v3081
        %3613 = vmatmul.mubr.f32.gmra.mrb[0].mxu0 %v2937
        %v3614 = vpop.f32.mrb[0].mxu0
        %v3615 = vpop.f32.mrb[0].mxu0
        %3616 = vmatprep.mubr.f32.mxu0 %v3083
        %3617 = vmatmul.mubr.f32.gmra.mrb[0].mxu0 %v2938
        %v3618 = vpop.f32.mrb[0].mxu0
        %v3619 = vadd.f32 %v3324, %v3618
        %v3620 = vpop.f32.mrb[0].mxu0
        %3621 = vmatprep.mubr.f32.mxu0 %v3085
        %3622 = vmatmul.mubr.f32.gmra.mrb[0].mxu0 %v2939
        %v3623 = vpop.f32.mrb[0].mxu0
        %v3624 = vadd.f32 %v3329, %v3623
        %v3625 = vpop.f32.mrb[0].mxu0
        %3626 = vmatprep.mubr.f32.mxu0 %v3087
        %3627 = vmatmul.mubr.f32.gmra.mrb[0].mxu0 %v2940
        %v3628 = vpop.f32.mrb[0].mxu0
        %v3629 = vpop.f32.mrb[0].mxu0
        %3630 = vmatprep.mubr.f32.mxu0 %v3089
        %3631 = vmatmul.mubr.f32.gmra.mrb[0].mxu0 %v2941
        %v3632 = vpop.f32.mrb[0].mxu0
        %v3633 = vadd.f32 %v3338, %v3632
        %v3634 = vpop.f32.mrb[0].mxu0
        %3635 = vmatprep.mubr.f32.mxu0 %v3091
        %3636 = vmatmul.mubr.f32.gmra.mrb[0].mxu0 %v2942
        %v3637 = vpop.f32.mrb[0].mxu0
        %v3638 = vadd.f32 %v3343, %v3637
        %v3639 = vpop.f32.mrb[0].mxu0
        %3640 = vmatprep.mubr.f32.mxu0 %v3093
        %3641 = vmatmul.mubr.f32.gmra.mrb[0].mxu0 %v2943
        %v3642 = vpop.f32.mrb[0].mxu0
        %v3643 = vpop.f32.mrb[0].mxu0
        %3644 = vmatprep.mubr.f32.mxu0 %v3095
        %3645 = vmatmul.mubr.f32.gmra.mrb[0].mxu0 %v2944
        %v3646 = vpop.f32.mrb[0].mxu0
        %v3647 = vadd.f32 %v3352, %v3646
        %v3648 = vpop.f32.mrb[0].mxu0
        %3649 = vmatprep.mubr.f32.mxu0 %v3097
        %3650 = vmatmul.mubr.f32.gmra.mrb[0].mxu0 %v2945
        %v3651 = vpop.f32.mrb[0].mxu0
        %v3652 = vadd.f32 %v3357, %v3651
        %v3653 = vpop.f32.mrb[0].mxu0
        %3654 = vmatprep.mubr.f32.mxu0 %v3099
        %3655 = vmatmul.mubr.f32.gmra.mrb[0].mxu0 %v2946
        %v3656 = vpop.f32.mrb[0].mxu0
        %v3657 = vpop.f32.mrb[0].mxu0
        %3658 = vmatprep.mubr.f32.mxu0 %v3101
        %3659 = vmatmul.mubr.f32.gmra.mrb[0].mxu0 %v2947
        %v3660 = vpop.f32.mrb[0].mxu0
        %v3661 = vadd.f32 %v3366, %v3660
        %v3662 = vpop.f32.mrb[0].mxu0
        %3663 = vmatprep.mubr.f32.mxu0 %v3103
        %3664 = vmatmul.mubr.f32.gmra.mrb[0].mxu0 %v2948
        %v3665 = vpop.f32.mrb[0].mxu0
        %v3666 = vadd.f32 %v3371, %v3665
        %v3667 = vpop.f32.mrb[0].mxu0
        %3668 = vmatprep.mubr.f32.mxu0 %v3105
        %3669 = vmatmul.mubr.f32.gmra.mrb[0].mxu0 %v2949
        %v3670 = vpop.f32.mrb[0].mxu0
        %v3671 = vpop.f32.mrb[0].mxu0
        %3672 = vmatprep.mubr.f32.mxu0 %v3107
        %3673 = vmatmul.mubr.f32.gmra.mrb[0].mxu0 %v2950
        %v3674 = vpop.f32.mrb[0].mxu0
        %v3675 = vadd.f32 %v3380, %v3674
        %v3676 = vpop.f32.mrb[0].mxu0
        %3677 = vmatprep.mubr.f32.mxu0 %v3109
        %3678 = vmatmul.mubr.f32.gmra.mrb[0].mxu0 %v2951
        %v3679 = vpop.f32.mrb[0].mxu0
        %v3680 = vadd.f32 %v3385, %v3679
        %v3681 = vpop.f32.mrb[0].mxu0
        %3682 = vmatprep.mubr.f32.mxu0 %v3111
        %3683 = vmatmul.mubr.f32.gmra.mrb[0].mxu0 %v2952
        %v3684 = vpop.f32.mrb[0].mxu0
        %v3685 = vpop.f32.mrb[0].mxu0
        %3686 = vmatprep.mubr.f32.mxu0 %v3113
        %3687 = vmatmul.mubr.f32.gmra.mrb[0].mxu0 %v2953
        %v3688 = vpop.f32.mrb[0].mxu0
        %v3689 = vadd.f32 %v3394, %v3688
        %v3690 = vpop.f32.mrb[0].mxu0
        %3691 = vmatprep.mubr.f32.mxu0 %v3115
        %3692 = vmatmul.mubr.f32.gmra.mrb[0].mxu0 %v2954
        %v3693 = vpop.f32.mrb[0].mxu0
        %v3694 = vadd.f32 %v3399, %v3693
        %v3695 = vpop.f32.mrb[0].mxu0
        %3696 = vmatprep.mubr.f32.mxu0 %v3117
        %3697 = vmatmul.mubr.f32.gmra.mrb[0].mxu0 %v2955
        %v3698 = vpop.f32.mrb[0].mxu0
        %v3699 = vpop.f32.mrb[0].mxu0
        %3700 = vmatprep.mubr.f32.mxu0 %v3119
        %3701 = vmatmul.mubr.f32.gmra.mrb[0].mxu0 %v2956
        %v3702 = vpop.f32.mrb[0].mxu0
        %v3703 = vadd.f32 %v3408, %v3702
        %v3704 = vpop.f32.mrb[0].mxu0
        %3705 = vmatprep.mubr.f32.mxu0 %v3121
        %3706 = vmatmul.mubr.f32.gmra.mrb[0].mxu0 %v2957
        %v3707 = vpop.f32.mrb[0].mxu0
        %v3708 = vadd.f32 %v3413, %v3707
        %v3709 = vpop.f32.mrb[0].mxu0
        %3710 = vmatprep.mubr.f32.mxu0 %v3123
        %3711 = vmatmul.mubr.f32.gmra.mrb[0].mxu0 %v2958
        %v3712 = vpop.f32.mrb[0].mxu0
        %v3713 = vpop.f32.mrb[0].mxu0
        %3714 = vdwg.mxu0
        %v3718 = vrot.slane %v2521, 1
        %v3719 = vsel %vm589, %v2990, %v3718
        %v3720 = vrot.slane %v2522, 1
        %v3721 = vsel %vm589, %v3718, %v3720
        %v3722 = vrot.slane %v2523, 1
        %v3723 = vsel %vm589, %v3720, %v3722
        %3724 = vrot.lane.b32.xlu0 %v3719, 64
        %v3725 = vpop.permute.xlu0 %3724
        %3726 = vrot.lane.b32.xlu0 %v3721, 64
        %v3727 = vpop.permute.xlu0 %3726
        %3728 = vrot.lane.b32.xlu0 %v3723, 64
        %v3729 = vpop.permute.xlu0 %3728
        %v3733 = vrot.slane %v2521, 2
        %v3734 = vsel %vm831, %v3005, %v3733
        %v3735 = vrot.slane %v2522, 2
        %v3736 = vsel %vm831, %v3733, %v3735
        %v3737 = vrot.slane %v2523, 2
        %v3738 = vsel %vm831, %v3735, %v3737
        %v3739 = vsel %vm376, %v2520, %v3725
        %v3740 = vsel %vm376, %v2521, %v3727
        %v3741 = vsel %vm376, %v2522, %v3729
        %s3742 = scalar_lea.vmem [#allocation8], 384
        %v3743 = vld [vmem:[%s3742] sm:$0xff]
        %v3744 = vld [vmem:[%s3742 + $0x8] sm:$0xff]
        %v3745 = vld [vmem:[%s3742 + $0x10] sm:$0xff]
        %v3746 = vld [vmem:[%s3742 + $0x18] sm:$0xff]
        %v3747 = vld [vmem:[%s3742 + $0x20] sm:$0xff]
        %v3748 = vld [vmem:[%s3742 + $0x28] sm:$0xff]
        %v3749 = vld [vmem:[%s3742 + $0x30] sm:$0xff]
        %v3750 = vld [vmem:[%s3742 + $0x38] sm:$0xff]
        %v3751 = vld [vmem:[%s3742 + $0x40] sm:$0xff]
        %v3752 = vld [vmem:[%s3742 + $0x48] sm:$0xff]
        %v3753 = vld [vmem:[%s3742 + $0x50] sm:$0xff]
        %v3754 = vld [vmem:[%s3742 + $0x58] sm:$0xff]
        %v3755 = vld [vmem:[%s3742 + $0x60] sm:$0xff]
        %v3756 = vld [vmem:[%s3742 + $0x68] sm:$0xff]
        %v3757 = vld [vmem:[%s3742 + $0x70] sm:$0xff]
        %v3758 = vld [vmem:[%s3742 + $0x78] sm:$0xff]
        %v3759 = vld [vmem:[%s3742 + $0x80] sm:$0xff]
        %v3760 = vld [vmem:[%s3742 + $0x88] sm:$0xff]
        %v3761 = vld [vmem:[%s3742 + $0x90] sm:$0xff]
        %v3762 = vld [vmem:[%s3742 + $0x98] sm:$0xff]
        %v3763 = vld [vmem:[%s3742 + $0xa0] sm:$0xff]
        %v3764 = vld [vmem:[%s3742 + $0xa8] sm:$0xff]
        %v3765 = vld [vmem:[%s3742 + $0xb0] sm:$0xff]
        %v3766 = vld [vmem:[%s3742 + $0xb8] sm:$0xff]
        %v3767 = vsel %vm376, %v3734, 0
        %v3769 = vsel %vm376, %v3736, 0
        %v3771 = vsel %vm376, %v3738, 0
        %3773 = vmatprep.subr.mxu0 0.0
        %3774 = vmatpush1.msra.mxu0 %v3743
        %3775 = vmatprep.subr.mxu0 0.0
        %3776 = vmatpush1.msra.mxu0 %v3744
        %3777 = vmatprep.subr.mxu0 0.0
        %3778 = vmatpush1.msra.mxu0 %v3745
        %3779 = vmatprep.subr.mxu0 0.0
        %3780 = vmatpush1.msra.mxu0 %v3746
        %3781 = vmatprep.subr.mxu0 0.0
        %3782 = vmatpush1.msra.mxu0 %v3747
        %3783 = vmatprep.subr.mxu0 0.0
        %3784 = vmatpush1.msra.mxu0 %v3748
        %3785 = vmatprep.subr.mxu0 0.0
        %3786 = vmatpush1.msra.mxu0 %v3749
        %3787 = vmatprep.subr.mxu0 0.0
        %3788 = vmatpush1.msra.mxu0 %v3750
        %3789 = vmatprep.subr.mxu0 0.0
        %3790 = vmatpush1.msra.mxu0 %v3751
        %3791 = vmatprep.subr.mxu0 0.0
        %3792 = vmatpush1.msra.mxu0 %v3752
        %3793 = vmatprep.subr.mxu0 0.0
        %3794 = vmatpush1.msra.mxu0 %v3753
        %3795 = vmatprep.subr.mxu0 0.0
        %3796 = vmatpush1.msra.mxu0 %v3754
        %3797 = vmatprep.subr.mxu0 0.0
        %3798 = vmatpush1.msra.mxu0 %v3755
        %3799 = vmatprep.subr.mxu0 0.0
        %3800 = vmatpush1.msra.mxu0 %v3756
        %3801 = vmatprep.subr.mxu0 0.0
        %3802 = vmatpush1.msra.mxu0 %v3757
        %3803 = vmatprep.subr.mxu0 0.0
        %3804 = vmatpush1.msra.mxu0 %v3758
        %3805 = vmatprep.subr.mxu0 0.0
        %3806 = vmatpush1.msra.mxu0 %v3759
        %3807 = vmatprep.subr.mxu0 0.0
        %3808 = vmatpush1.msra.mxu0 %v3760
        %3809 = vmatprep.subr.mxu0 0.0
        %3810 = vmatpush1.msra.mxu0 %v3761
        %3811 = vmatprep.subr.mxu0 0.0
        %3812 = vmatpush1.msra.mxu0 %v3762
        %3813 = vmatprep.subr.mxu0 0.0
        %3814 = vmatpush1.msra.mxu0 %v3763
        %3815 = vmatprep.subr.mxu0 0.0
        %3816 = vmatpush1.msra.mxu0 %v3764
        %3817 = vmatprep.subr.mxu0 0.0
        %3818 = vmatpush1.msra.mxu0 %v3765
        %3819 = vmatprep.subr.mxu0 0.0
        %3820 = vmatpush1.msra.mxu0 %v3766
        %3821 = vmatprep.subr.mxu0 0.0
        %3822 = vmatpush1.msra.mxu0 0.0
        %3823 = vmatprep.subr.mxu0 0.0
        %3824 = vmatpush1.msra.mxu0 0.0
        %3825 = vmatprep.subr.mxu0 0.0
        %3826 = vmatpush1.msra.mxu0 0.0
        %3827 = vmatprep.subr.mxu0 0.0
        %3828 = vmatpush1.msra.mxu0 0.0
        %3829 = vmatprep.subr.mxu0 0.0
        %3830 = vmatpush1.msra.mxu0 0.0
        %3831 = vmatprep.subr.mxu0 0.0
        %3832 = vmatpush1.msra.mxu0 0.0
        %3833 = vmatprep.subr.mxu0 0.0
        %3834 = vmatpush1.msra.mxu0 0.0
        %3835 = vmatprep.subr.mxu0 0.0
        %3836 = vmatpush1.msra.mxu0 0.0
        %3837 = vmatprep.mubr.f32.mxu0 %v3041
        %3838 = vmatmul.mubr.f32.gmra.mrb[0].mxu0 %v2917
        %v3839 = vpop.f32.mrb[0].mxu0
        %v3840 = vadd.f32 0.0, %v3839
        %v3841 = vpop.f32.mrb[0].mxu0
        %3842 = vmatprep.mubr.f32.mxu0 %v3043
        %3843 = vmatmul.mubr.f32.gmra.mrb[0].mxu0 %v2918
        %v3844 = vpop.f32.mrb[0].mxu0
        %v3845 = vadd.f32 0.0, %v3844
        %v3846 = vpop.f32.mrb[0].mxu0
        %3847 = vmatprep.mubr.f32.mxu0 %v3045
        %3848 = vmatmul.mubr.f32.gmra.mrb[0].mxu0 %v2919
        %v3849 = vpop.f32.mrb[0].mxu0
        %v3850 = vpop.f32.mrb[0].mxu0
        %3851 = vmatprep.mubr.f32.mxu0 %v3047
        %3852 = vmatmul.mubr.f32.gmra.mrb[0].mxu0 %v2920
        %v3853 = vpop.f32.mrb[0].mxu0
        %v3854 = vadd.f32 0.0, %v3853
        %v3855 = vpop.f32.mrb[0].mxu0
        %3856 = vmatprep.mubr.f32.mxu0 %v3049
        %3857 = vmatmul.mubr.f32.gmra.mrb[0].mxu0 %v2921
        %v3858 = vpop.f32.mrb[0].mxu0
        %v3859 = vadd.f32 0.0, %v3858
        %v3860 = vpop.f32.mrb[0].mxu0
        %3861 = vmatprep.mubr.f32.mxu0 %v3051
        %3862 = vmatmul.mubr.f32.gmra.mrb[0].mxu0 %v2922
        %v3863 = vpop.f32.mrb[0].mxu0
        %v3864 = vpop.f32.mrb[0].mxu0
        %3865 = vmatprep.mubr.f32.mxu0 %v3053
        %3866 = vmatmul.mubr.f32.gmra.mrb[0].mxu0 %v2923
        %v3867 = vpop.f32.mrb[0].mxu0
        %v3868 = vadd.f32 0.0, %v3867
        %v3869 = vpop.f32.mrb[0].mxu0
        %3870 = vmatprep.mubr.f32.mxu0 %v3055
        %3871 = vmatmul.mubr.f32.gmra.mrb[0].mxu0 %v2924
        %v3872 = vpop.f32.mrb[0].mxu0
        %v3873 = vadd.f32 0.0, %v3872
        %v3874 = vpop.f32.mrb[0].mxu0
        %3875 = vmatprep.mubr.f32.mxu0 %v3057
        %3876 = vmatmul.mubr.f32.gmra.mrb[0].mxu0 %v2925
        %v3877 = vpop.f32.mrb[0].mxu0
        %v3878 = vpop.f32.mrb[0].mxu0
        %3879 = vmatprep.mubr.f32.mxu0 %v3059
        %3880 = vmatmul.mubr.f32.gmra.mrb[0].mxu0 %v2926
        %v3881 = vpop.f32.mrb[0].mxu0
        %v3882 = vadd.f32 0.0, %v3881
        %v3883 = vpop.f32.mrb[0].mxu0
        %3884 = vmatprep.mubr.f32.mxu0 %v3061
        %3885 = vmatmul.mubr.f32.gmra.mrb[0].mxu0 %v2927
        %v3886 = vpop.f32.mrb[0].mxu0
        %v3887 = vadd.f32 0.0, %v3886
        %v3888 = vpop.f32.mrb[0].mxu0
        %3889 = vmatprep.mubr.f32.mxu0 %v3063
        %3890 = vmatmul.mubr.f32.gmra.mrb[0].mxu0 %v2928
        %v3891 = vpop.f32.mrb[0].mxu0
        %v3892 = vpop.f32.mrb[0].mxu0
        %3893 = vmatprep.mubr.f32.mxu0 %v3065
        %3894 = vmatmul.mubr.f32.gmra.mrb[0].mxu0 %v2929
        %v3895 = vpop.f32.mrb[0].mxu0
        %v3896 = vadd.f32 0.0, %v3895
        %v3897 = vpop.f32.mrb[0].mxu0
        %3898 = vmatprep.mubr.f32.mxu0 %v3067
        %3899 = vmatmul.mubr.f32.gmra.mrb[0].mxu0 %v2930
        %v3900 = vpop.f32.mrb[0].mxu0
        %v3901 = vadd.f32 0.0, %v3900
        %v3902 = vpop.f32.mrb[0].mxu0
        %3903 = vmatprep.mubr.f32.mxu0 %v3069
        %3904 = vmatmul.mubr.f32.gmra.mrb[0].mxu0 %v2931
        %v3905 = vpop.f32.mrb[0].mxu0
        %v3906 = vpop.f32.mrb[0].mxu0
        %3907 = vmatprep.mubr.f32.mxu0 %v3071
        %3908 = vmatmul.mubr.f32.gmra.mrb[0].mxu0 %v2932
        %v3909 = vpop.f32.mrb[0].mxu0
        %v3910 = vadd.f32 0.0, %v3909
        %v3911 = vpop.f32.mrb[0].mxu0
        %3912 = vmatprep.mubr.f32.mxu0 %v3073
        %3913 = vmatmul.mubr.f32.gmra.mrb[0].mxu0 %v2933
        %v3914 = vpop.f32.mrb[0].mxu0
        %v3915 = vadd.f32 0.0, %v3914
        %v3916 = vpop.f32.mrb[0].mxu0
        %3917 = vmatprep.mubr.f32.mxu0 %v3075
        %3918 = vmatmul.mubr.f32.gmra.mrb[0].mxu0 %v2934
        %v3919 = vpop.f32.mrb[0].mxu0
        %v3920 = vpop.f32.mrb[0].mxu0
        %3921 = vmatprep.mubr.f32.mxu0 %v3077
        %3922 = vmatmul.mubr.f32.gmra.mrb[0].mxu0 %v2935
        %v3923 = vpop.f32.mrb[0].mxu0
        %v3924 = vadd.f32 0.0, %v3923
        %v3925 = vpop.f32.mrb[0].mxu0
        %3926 = vmatprep.mubr.f32.mxu0 %v3079
        %3927 = vmatmul.mubr.f32.gmra.mrb[0].mxu0 %v2936
        %v3928 = vpop.f32.mrb[0].mxu0
        %v3929 = vadd.f32 0.0, %v3928
        %v3930 = vpop.f32.mrb[0].mxu0
        %3931 = vmatprep.mubr.f32.mxu0 %v3081
        %3932 = vmatmul.mubr.f32.gmra.mrb[0].mxu0 %v2937
        %v3933 = vpop.f32.mrb[0].mxu0
        %v3934 = vpop.f32.mrb[0].mxu0
        %3935 = vmatprep.mubr.f32.mxu0 %v3083
        %3936 = vmatmul.mubr.f32.gmra.mrb[0].mxu0 %v2938
        %v3937 = vpop.f32.mrb[0].mxu0
        %v3938 = vadd.f32 0.0, %v3937
        %v3939 = vpop.f32.mrb[0].mxu0
        %3940 = vmatprep.mubr.f32.mxu0 %v3085
        %3941 = vmatmul.mubr.f32.gmra.mrb[0].mxu0 %v2939
        %v3942 = vpop.f32.mrb[0].mxu0
        %v3943 = vadd.f32 0.0, %v3942
        %v3944 = vpop.f32.mrb[0].mxu0
        %3945 = vmatprep.mubr.f32.mxu0 %v3087
        %3946 = vmatmul.mubr.f32.gmra.mrb[0].mxu0 %v2940
        %v3947 = vpop.f32.mrb[0].mxu0
        %v3948 = vpop.f32.mrb[0].mxu0
        %3949 = vmatprep.mubr.f32.mxu0 %v3089
        %3950 = vmatmul.mubr.f32.gmra.mrb[0].mxu0 %v2941
        %v3951 = vpop.f32.mrb[0].mxu0
        %v3952 = vadd.f32 0.0, %v3951
        %v3953 = vpop.f32.mrb[0].mxu0
        %3954 = vmatprep.mubr.f32.mxu0 %v3091
        %3955 = vmatmul.mubr.f32.gmra.mrb[0].mxu0 %v2942
        %v3956 = vpop.f32.mrb[0].mxu0
        %v3957 = vadd.f32 0.0, %v3956
        %v3958 = vpop.f32.mrb[0].mxu0
        %3959 = vmatprep.mubr.f32.mxu0 %v3093
        %3960 = vmatmul.mubr.f32.gmra.mrb[0].mxu0 %v2943
        %v3961 = vpop.f32.mrb[0].mxu0
        %v3962 = vpop.f32.mrb[0].mxu0
        %3963 = vmatprep.mubr.f32.mxu0 %v3095
        %3964 = vmatmul.mubr.f32.gmra.mrb[0].mxu0 %v2944
        %v3965 = vpop.f32.mrb[0].mxu0
        %v3966 = vadd.f32 0.0, %v3965
        %v3967 = vpop.f32.mrb[0].mxu0
        %3968 = vmatprep.mubr.f32.mxu0 %v3097
        %3969 = vmatmul.mubr.f32.gmra.mrb[0].mxu0 %v2945
        %v3970 = vpop.f32.mrb[0].mxu0
        %v3971 = vadd.f32 0.0, %v3970
        %v3972 = vpop.f32.mrb[0].mxu0
        %3973 = vmatprep.mubr.f32.mxu0 %v3099
        %3974 = vmatmul.mubr.f32.gmra.mrb[0].mxu0 %v2946
        %v3975 = vpop.f32.mrb[0].mxu0
        %v3976 = vpop.f32.mrb[0].mxu0
        %3977 = vmatprep.mubr.f32.mxu0 %v3101
        %3978 = vmatmul.mubr.f32.gmra.mrb[0].mxu0 %v2947
        %v3979 = vpop.f32.mrb[0].mxu0
        %v3980 = vadd.f32 0.0, %v3979
        %v3981 = vpop.f32.mrb[0].mxu0
        %3982 = vmatprep.mubr.f32.mxu0 %v3103
        %3983 = vmatmul.mubr.f32.gmra.mrb[0].mxu0 %v2948
        %v3984 = vpop.f32.mrb[0].mxu0
        %v3985 = vadd.f32 0.0, %v3984
        %v3986 = vpop.f32.mrb[0].mxu0
        %3987 = vmatprep.mubr.f32.mxu0 %v3105
        %3988 = vmatmul.mubr.f32.gmra.mrb[0].mxu0 %v2949
        %v3989 = vpop.f32.mrb[0].mxu0
        %v3990 = vpop.f32.mrb[0].mxu0
        %3991 = vmatprep.mubr.f32.mxu0 %v3107
        %3992 = vmatmul.mubr.f32.gmra.mrb[0].mxu0 %v2950
        %v3993 = vpop.f32.mrb[0].mxu0
        %v3994 = vadd.f32 0.0, %v3993
        %v3995 = vpop.f32.mrb[0].mxu0
        %3996 = vmatprep.mubr.f32.mxu0 %v3109
        %3997 = vmatmul.mubr.f32.gmra.mrb[0].mxu0 %v2951
        %v3998 = vpop.f32.mrb[0].mxu0
        %v3999 = vadd.f32 0.0, %v3998
        %v4000 = vpop.f32.mrb[0].mxu0
        %4001 = vmatprep.mubr.f32.mxu0 %v3111
        %4002 = vmatmul.mubr.f32.gmra.mrb[0].mxu0 %v2952
        %v4003 = vpop.f32.mrb[0].mxu0
        %v4004 = vpop.f32.mrb[0].mxu0
        %4005 = vmatprep.mubr.f32.mxu0 %v3113
        %4006 = vmatmul.mubr.f32.gmra.mrb[0].mxu0 %v2953
        %v4007 = vpop.f32.mrb[0].mxu0
        %v4008 = vadd.f32 0.0, %v4007
        %v4009 = vpop.f32.mrb[0].mxu0
        %4010 = vmatprep.mubr.f32.mxu0 %v3115
        %4011 = vmatmul.mubr.f32.gmra.mrb[0].mxu0 %v2954
        %v4012 = vpop.f32.mrb[0].mxu0
        %v4013 = vadd.f32 0.0, %v4012
        %v4014 = vpop.f32.mrb[0].mxu0
        %4015 = vmatprep.mubr.f32.mxu0 %v3117
        %4016 = vmatmul.mubr.f32.gmra.mrb[0].mxu0 %v2955
        %v4017 = vpop.f32.mrb[0].mxu0
        %v4018 = vpop.f32.mrb[0].mxu0
        %4019 = vmatprep.mubr.f32.mxu0 %v3119
        %4020 = vmatmul.mubr.f32.gmra.mrb[0].mxu0 %v2956
        %v4021 = vpop.f32.mrb[0].mxu0
        %v4022 = vadd.f32 0.0, %v4021
        %v4023 = vpop.f32.mrb[0].mxu0
        %4024 = vmatprep.mubr.f32.mxu0 %v3121
        %4025 = vmatmul.mubr.f32.gmra.mrb[0].mxu0 %v2957
        %v4026 = vpop.f32.mrb[0].mxu0
        %v4027 = vadd.f32 0.0, %v4026
        %v4028 = vpop.f32.mrb[0].mxu0
        %4029 = vmatprep.mubr.f32.mxu0 %v3123
        %4030 = vmatmul.mubr.f32.gmra.mrb[0].mxu0 %v2958
        %v4031 = vpop.f32.mrb[0].mxu0
        %v4032 = vpop.f32.mrb[0].mxu0
        %4033 = vmatprep.mubr.f32.mxu0 %v3125
        %4034 = vmatmul.mubr.f32.gmra.mrb[0].mxu0 %v3007
        %v4035 = vpop.f32.mrb[0].mxu0
        %v4036 = vadd.f32 0.0, %v4035
        %v4037 = vpop.f32.mrb[0].mxu0
        %4038 = vmatprep.mubr.f32.mxu0 %v3127
        %4039 = vmatmul.mubr.f32.gmra.mrb[0].mxu0 %v3008
        %v4040 = vpop.f32.mrb[0].mxu0
        %v4041 = vadd.f32 0.0, %v4040
        %v4042 = vpop.f32.mrb[0].mxu0
        %4043 = vmatprep.mubr.f32.mxu0 %v3129
        %4044 = vmatmul.mubr.f32.gmra.mrb[0].mxu0 %v3009
        %v4045 = vpop.f32.mrb[0].mxu0
        %v4046 = vpop.f32.mrb[0].mxu0
        %4047 = vmatprep.mubr.f32.mxu0 %v3767
        %4048 = vmatmul.mubr.f32.gmra.mrb[0].mxu0 %v3739
        %v4049 = vpop.f32.mrb[0].mxu0
        %v4050 = vadd.f32 0.0, %v4049
        %v4051 = vpop.f32.mrb[0].mxu0
        %4052 = vmatprep.mubr.f32.mxu0 %v3769
        %4053 = vmatmul.mubr.f32.gmra.mrb[0].mxu0 %v3740
        %v4054 = vpop.f32.mrb[0].mxu0
        %v4055 = vadd.f32 0.0, %v4054
        %v4056 = vpop.f32.mrb[0].mxu0
        %4057 = vmatprep.mubr.f32.mxu0 %v3771
        %4058 = vmatmul.mubr.f32.gmra.mrb[0].mxu0 %v3741
        %v4059 = vpop.f32.mrb[0].mxu0
        %v4060 = vpop.f32.mrb[0].mxu0
        %4061 = vdwg.mxu0
        %v4062 = vadd.f32 %v3493, %v3840
        %v4063 = vadd.f32 %v3498, %v3845
        %v4064 = vadd.f32 %v3507, %v3854
        %v4065 = vadd.f32 %v3512, %v3859
        %v4066 = vadd.f32 %v3521, %v3868
        %v4067 = vadd.f32 %v3526, %v3873
        %v4068 = vadd.f32 %v3535, %v3882
        %v4069 = vadd.f32 %v3540, %v3887
        %v4070 = vadd.f32 %v3549, %v3896
        %v4071 = vadd.f32 %v3554, %v3901
        %v4072 = vadd.f32 %v3563, %v3910
        %v4073 = vadd.f32 %v3568, %v3915
        %v4074 = vadd.f32 %v3577, %v3924
        %v4075 = vadd.f32 %v3582, %v3929
        %v4076 = vadd.f32 %v3591, %v3938
        %v4077 = vadd.f32 %v3596, %v3943
        %v4078 = vadd.f32 %v3605, %v3952
        %v4079 = vadd.f32 %v3610, %v3957
        %v4080 = vadd.f32 %v3619, %v3966
        %v4081 = vadd.f32 %v3624, %v3971
        %v4082 = vadd.f32 %v3633, %v3980
        %v4083 = vadd.f32 %v3638, %v3985
        %v4084 = vadd.f32 %v3647, %v3994
        %v4085 = vadd.f32 %v3652, %v3999
        %v4086 = vadd.f32 %v3661, %v4008
        %v4087 = vadd.f32 %v3666, %v4013
        %v4088 = vadd.f32 %v3675, %v4022
        %v4089 = vadd.f32 %v3680, %v4027
        %v4090 = vadd.f32 %v3689, %v4036
        %v4091 = vadd.f32 %v3694, %v4041
        %v4092 = vadd.f32 %v3703, %v4050
        %v4093 = vadd.f32 %v3708, %v4055
        %v4094 = vsel %vm376, %v4062, 0.0
        %v4095 = vsel %vm376, %v4064, 0.0
        %v4096 = vadd.f32 %v4094, %v4095
        %v4097 = vsel %vm376, %v4066, 0.0
        %v4098 = vadd.f32 %v4096, %v4097
        %v4099 = vsel %vm376, %v4068, 0.0
        %v4100 = vadd.f32 %v4098, %v4099
        %v4101 = vsel %vm376, %v4070, 0.0
        %v4102 = vadd.f32 %v4100, %v4101
        %v4103 = vsel %vm376, %v4072, 0.0
        %v4104 = vadd.f32 %v4102, %v4103
        %v4105 = vsel %vm376, %v4074, 0.0
        %v4106 = vadd.f32 %v4104, %v4105
        %v4107 = vsel %vm376, %v4076, 0.0
        %v4108 = vadd.f32 %v4106, %v4107
        %v4109 = vsel %vm376, %v4078, 0.0
        %v4110 = vadd.f32 %v4108, %v4109
        %v4111 = vsel %vm376, %v4080, 0.0
        %v4112 = vadd.f32 %v4110, %v4111
        %v4113 = vsel %vm376, %v4082, 0.0
        %v4114 = vadd.f32 %v4112, %v4113
        %v4115 = vsel %vm376, %v4084, 0.0
        %v4116 = vadd.f32 %v4114, %v4115
        %v4117 = vsel %vm376, %v4086, 0.0
        %v4118 = vadd.f32 %v4116, %v4117
        %v4119 = vsel %vm376, %v4088, 0.0
        %v4120 = vadd.f32 %v4118, %v4119
        %v4121 = vsel %vm376, %v4090, 0.0
        %v4122 = vadd.f32 %v4120, %v4121
        %v4123 = vsel %vm376, %v4092, 0.0
        %v4124 = vadd.f32 %v4122, %v4123
        %v4125 = vsel %vm376, %v4063, 0.0
        %v4126 = vsel %vm376, %v4065, 0.0
        %v4127 = vadd.f32 %v4125, %v4126
        %v4128 = vsel %vm376, %v4067, 0.0
        %v4129 = vadd.f32 %v4127, %v4128
        %v4130 = vsel %vm376, %v4069, 0.0
        %v4131 = vadd.f32 %v4129, %v4130
        %v4132 = vsel %vm376, %v4071, 0.0
        %v4133 = vadd.f32 %v4131, %v4132
        %v4134 = vsel %vm376, %v4073, 0.0
        %v4135 = vadd.f32 %v4133, %v4134
        %v4136 = vsel %vm376, %v4075, 0.0
        %v4137 = vadd.f32 %v4135, %v4136
        %v4138 = vsel %vm376, %v4077, 0.0
        %v4139 = vadd.f32 %v4137, %v4138
        %v4140 = vsel %vm376, %v4079, 0.0
        %v4141 = vadd.f32 %v4139, %v4140
        %v4142 = vsel %vm376, %v4081, 0.0
        %v4143 = vadd.f32 %v4141, %v4142
        %v4144 = vsel %vm376, %v4083, 0.0
        %v4145 = vadd.f32 %v4143, %v4144
        %v4146 = vsel %vm376, %v4085, 0.0
        %v4147 = vadd.f32 %v4145, %v4146
        %v4148 = vsel %vm376, %v4087, 0.0
        %v4149 = vadd.f32 %v4147, %v4148
        %v4150 = vsel %vm376, %v4089, 0.0
        %v4151 = vadd.f32 %v4149, %v4150
        %v4152 = vsel %vm376, %v4091, 0.0
        %v4153 = vadd.f32 %v4151, %v4152
        %v4154 = vsel %vm376, %v4093, 0.0
        %v4155 = vadd.f32 %v4153, %v4154
        %v4156 = vsel %vm376, %v4124, 0.0
        %v4157 = vsel %vm376, %v4155, 0.0
        %v4158 = vadd.f32 %v4156, %v4157
        %v4159 = vrot.slane %v4158, 4
        %v4160 = vadd.f32 %v4158, %v4159
        %v4161 = vrot.slane %v4160, 2
        %v4162 = vadd.f32 %v4160, %v4161
        %v4163 = vrot.slane %v4162, 1
        %v4164 = vadd.f32 %v4162, %v4163
        %v4165 = vmul.f32 %v4062, %v4062
        %v4166 = vmul.f32 %v4063, %v4063
        %v4167 = vmul.f32 %v4064, %v4064
        %v4168 = vmul.f32 %v4065, %v4065
        %v4169 = vmul.f32 %v4066, %v4066
        %v4170 = vmul.f32 %v4067, %v4067
        %v4171 = vmul.f32 %v4068, %v4068
        %v4172 = vmul.f32 %v4069, %v4069
        %v4173 = vmul.f32 %v4070, %v4070
        %v4174 = vmul.f32 %v4071, %v4071
        %v4175 = vmul.f32 %v4072, %v4072
        %v4176 = vmul.f32 %v4073, %v4073
        %v4177 = vmul.f32 %v4074, %v4074
        %v4178 = vmul.f32 %v4075, %v4075
        %v4179 = vmul.f32 %v4076, %v4076
        %v4180 = vmul.f32 %v4077, %v4077
        %v4181 = vmul.f32 %v4078, %v4078
        %v4182 = vmul.f32 %v4079, %v4079
        %v4183 = vmul.f32 %v4080, %v4080
        %v4184 = vmul.f32 %v4081, %v4081
        %v4185 = vmul.f32 %v4082, %v4082
        %v4186 = vmul.f32 %v4083, %v4083
        %v4187 = vmul.f32 %v4084, %v4084
        %v4188 = vmul.f32 %v4085, %v4085
        %v4189 = vmul.f32 %v4086, %v4086
        %v4190 = vmul.f32 %v4087, %v4087
        %v4191 = vmul.f32 %v4088, %v4088
        %v4192 = vmul.f32 %v4089, %v4089
        %v4193 = vmul.f32 %v4090, %v4090
        %v4194 = vmul.f32 %v4091, %v4091
        %v4195 = vmul.f32 %v4092, %v4092
        %v4196 = vmul.f32 %v4093, %v4093
        %v4197 = vsel %vm376, %v4165, 0.0
        %v4198 = vsel %vm376, %v4167, 0.0
        %v4199 = vadd.f32 %v4197, %v4198
        %v4200 = vsel %vm376, %v4169, 0.0
        %v4201 = vadd.f32 %v4199, %v4200
        %v4202 = vsel %vm376, %v4171, 0.0
        %v4203 = vadd.f32 %v4201, %v4202
        %v4204 = vsel %vm376, %v4173, 0.0
        %v4205 = vadd.f32 %v4203, %v4204
        %v4206 = vsel %vm376, %v4175, 0.0
        %v4207 = vadd.f32 %v4205, %v4206
        %v4208 = vsel %vm376, %v4177, 0.0
        %v4209 = vadd.f32 %v4207, %v4208
        %v4210 = vsel %vm376, %v4179, 0.0
        %v4211 = vadd.f32 %v4209, %v4210
        %v4212 = vsel %vm376, %v4181, 0.0
        %v4213 = vadd.f32 %v4211, %v4212
        %v4214 = vsel %vm376, %v4183, 0.0
        %v4215 = vadd.f32 %v4213, %v4214
        %v4216 = vsel %vm376, %v4185, 0.0
        %v4217 = vadd.f32 %v4215, %v4216
        %v4218 = vsel %vm376, %v4187, 0.0
        %v4219 = vadd.f32 %v4217, %v4218
        %v4220 = vsel %vm376, %v4189, 0.0
        %v4221 = vadd.f32 %v4219, %v4220
        %v4222 = vsel %vm376, %v4191, 0.0
        %v4223 = vadd.f32 %v4221, %v4222
        %v4224 = vsel %vm376, %v4193, 0.0
        %v4225 = vadd.f32 %v4223, %v4224
        %v4226 = vsel %vm376, %v4195, 0.0
        %v4227 = vadd.f32 %v4225, %v4226
        %v4228 = vsel %vm376, %v4166, 0.0
        %v4229 = vsel %vm376, %v4168, 0.0
        %v4230 = vadd.f32 %v4228, %v4229
        %v4231 = vsel %vm376, %v4170, 0.0
        %v4232 = vadd.f32 %v4230, %v4231
        %v4233 = vsel %vm376, %v4172, 0.0
        %v4234 = vadd.f32 %v4232, %v4233
        %v4235 = vsel %vm376, %v4174, 0.0
        %v4236 = vadd.f32 %v4234, %v4235
        %v4237 = vsel %vm376, %v4176, 0.0
        %v4238 = vadd.f32 %v4236, %v4237
        %v4239 = vsel %vm376, %v4178, 0.0
        %v4240 = vadd.f32 %v4238, %v4239
        %v4241 = vsel %vm376, %v4180, 0.0
        %v4242 = vadd.f32 %v4240, %v4241
        %v4243 = vsel %vm376, %v4182, 0.0
        %v4244 = vadd.f32 %v4242, %v4243
        %v4245 = vsel %vm376, %v4184, 0.0
        %v4246 = vadd.f32 %v4244, %v4245
        %v4247 = vsel %vm376, %v4186, 0.0
        %v4248 = vadd.f32 %v4246, %v4247
        %v4249 = vsel %vm376, %v4188, 0.0
        %v4250 = vadd.f32 %v4248, %v4249
        %v4251 = vsel %vm376, %v4190, 0.0
        %v4252 = vadd.f32 %v4250, %v4251
        %v4253 = vsel %vm376, %v4192, 0.0
        %v4254 = vadd.f32 %v4252, %v4253
        %v4255 = vsel %vm376, %v4194, 0.0
        %v4256 = vadd.f32 %v4254, %v4255
        %v4257 = vsel %vm376, %v4196, 0.0
        %v4258 = vadd.f32 %v4256, %v4257
        %v4259 = vsel %vm376, %v4227, 0.0
        %v4260 = vsel %vm376, %v4258, 0.0
        %v4261 = vadd.f32 %v4259, %v4260
        %v4262 = vrot.slane %v4261, 4
        %v4263 = vadd.f32 %v4261, %v4262
        %v4264 = vrot.slane %v4263, 2
        %v4265 = vadd.f32 %v4263, %v4264
        %v4266 = vrot.slane %v4265, 1
        %v4267 = vadd.f32 %v4265, %v4266
        %v4268 = vmul.f32 %v4164, 0.00390625
        %v4269 = vmul.f32 %v4267, 0.00390625
        %v4270 = vmul.f32 %v4268, %v4268
        %v4271 = vsub.f32 %v4269, %v4270
        %v4272 = vld [vmem:[#allocation12] sm:$0x1]
        %v4273 = vadd.f32 %v4271, 1e-05
        %v4274 = vrsqrt.pop %v4273
        %v4275 = vmul.f32 %v4272, %v4274
        %v4276 = vld [vmem:[#allocation14] sm:$0x1]
        %v4277 = vmul.f32 %v4268, %v4275
        %v4278 = vsub.f32 %v4276, %v4277
        %v4280 = vlaneseq
        %v4281 = vshrl.u32 %v4280, 7
        %v4282 = vsub.s32 0, %v4281
        %v4283 = vrot.slane %v4275, %v4282
        %v4285 = vmul.f32 %v4062, %v4283
        %v4286 = vmul.f32 %v4063, %v4283
        %v4287 = vmul.f32 %v4064, %v4283
        %v4288 = vmul.f32 %v4065, %v4283
        %v4289 = vmul.f32 %v4066, %v4283
        %v4290 = vmul.f32 %v4067, %v4283
        %v4291 = vmul.f32 %v4068, %v4283
        %v4292 = vmul.f32 %v4069, %v4283
        %v4293 = vmul.f32 %v4070, %v4283
        %v4294 = vmul.f32 %v4071, %v4283
        %v4295 = vmul.f32 %v4072, %v4283
        %v4296 = vmul.f32 %v4073, %v4283
        %v4297 = vmul.f32 %v4074, %v4283
        %v4298 = vmul.f32 %v4075, %v4283
        %v4299 = vmul.f32 %v4076, %v4283
        %v4300 = vmul.f32 %v4077, %v4283
        %v4301 = vmul.f32 %v4078, %v4283
        %v4302 = vmul.f32 %v4079, %v4283
        %v4303 = vmul.f32 %v4080, %v4283
        %v4304 = vmul.f32 %v4081, %v4283
        %v4305 = vmul.f32 %v4082, %v4283
        %v4306 = vmul.f32 %v4083, %v4283
        %v4307 = vmul.f32 %v4084, %v4283
        %v4308 = vmul.f32 %v4085, %v4283
        %v4309 = vmul.f32 %v4086, %v4283
        %v4310 = vmul.f32 %v4087, %v4283
        %v4311 = vmul.f32 %v4088, %v4283
        %v4312 = vmul.f32 %v4089, %v4283
        %v4313 = vmul.f32 %v4090, %v4283
        %v4314 = vmul.f32 %v4091, %v4283
        %v4315 = vmul.f32 %v4092, %v4283
        %v4316 = vmul.f32 %v4093, %v4283
        %v4318 = vlaneseq
        %v4319 = vshrl.u32 %v4318, 7
        %v4320 = vsub.s32 0, %v4319
        %v4321 = vrot.slane %v4278, %v4320
        %v4323 = vadd.f32 %v4285, %v4321
        %v4324 = vadd.f32 %v4286, %v4321
        %v4325 = vadd.f32 %v4287, %v4321
        %v4326 = vadd.f32 %v4288, %v4321
        %v4327 = vadd.f32 %v4289, %v4321
        %v4328 = vadd.f32 %v4290, %v4321
        %v4329 = vadd.f32 %v4291, %v4321
        %v4330 = vadd.f32 %v4292, %v4321
        %v4331 = vadd.f32 %v4293, %v4321
        %v4332 = vadd.f32 %v4294, %v4321
        %v4333 = vadd.f32 %v4295, %v4321
        %v4334 = vadd.f32 %v4296, %v4321
        %v4335 = vadd.f32 %v4297, %v4321
        %v4336 = vadd.f32 %v4298, %v4321
        %v4337 = vadd.f32 %v4299, %v4321
        %v4338 = vadd.f32 %v4300, %v4321
        %v4339 = vadd.f32 %v4301, %v4321
        %v4340 = vadd.f32 %v4302, %v4321
        %v4341 = vadd.f32 %v4303, %v4321
        %v4342 = vadd.f32 %v4304, %v4321
        %v4343 = vadd.f32 %v4305, %v4321
        %v4344 = vadd.f32 %v4306, %v4321
        %v4345 = vadd.f32 %v4307, %v4321
        %v4346 = vadd.f32 %v4308, %v4321
        %v4347 = vadd.f32 %v4309, %v4321
        %v4348 = vadd.f32 %v4310, %v4321
        %v4349 = vadd.f32 %v4311, %v4321
        %v4350 = vadd.f32 %v4312, %v4321
        %v4351 = vadd.f32 %v4313, %v4321
        %v4352 = vadd.f32 %v4314, %v4321
        %v4353 = vadd.f32 %v4315, %v4321
        %v4354 = vadd.f32 %v4316, %v4321
        %v4355 = vld [vmem:[%s321] sm:$0xff]
        %v4356 = vld [vmem:[%s321 + $0x8] sm:$0xff]
        %v4357 = vld [vmem:[%s321 + $0x10] sm:$0xff]
        %v4358 = vld [vmem:[%s321 + $0x18] sm:$0xff]
        %v4359 = vld [vmem:[%s321 + $0x20] sm:$0xff]
        %v4360 = vld [vmem:[%s321 + $0x28] sm:$0xff]
        %v4361 = vld [vmem:[%s321 + $0x30] sm:$0xff]
        %v4362 = vld [vmem:[%s321 + $0x38] sm:$0xff]
        %v4363 = vld [vmem:[%s321 + $0x40] sm:$0xff]
        %v4364 = vld [vmem:[%s321 + $0x48] sm:$0xff]
        %v4365 = vld [vmem:[%s321 + $0x50] sm:$0xff]
        %v4366 = vld [vmem:[%s321 + $0x58] sm:$0xff]
        %v4367 = vld [vmem:[%s321 + $0x60] sm:$0xff]
        %v4368 = vld [vmem:[%s321 + $0x68] sm:$0xff]
        %v4369 = vld [vmem:[%s321 + $0x70] sm:$0xff]
        %v4370 = vld [vmem:[%s321 + $0x78] sm:$0xff]
        %v4371 = vld [vmem:[%s321 + $0x80] sm:$0xff]
        %v4372 = vld [vmem:[%s321 + $0x88] sm:$0xff]
        %v4373 = vld [vmem:[%s321 + $0x90] sm:$0xff]
        %v4374 = vld [vmem:[%s321 + $0x98] sm:$0xff]
        %v4375 = vld [vmem:[%s321 + $0xa0] sm:$0xff]
        %v4376 = vld [vmem:[%s321 + $0xa8] sm:$0xff]
        %v4377 = vld [vmem:[%s321 + $0xb0] sm:$0xff]
        %v4378 = vld [vmem:[%s321 + $0xb8] sm:$0xff]
        %v4379 = vld [vmem:[%s321 + $0xc0] sm:$0xff]
        %v4380 = vld [vmem:[%s321 + $0xc8] sm:$0xff]
        %v4381 = vld [vmem:[%s321 + $0xd0] sm:$0xff]
        %v4382 = vld [vmem:[%s321 + $0xd8] sm:$0xff]
        %v4383 = vld [vmem:[%s321 + $0xe0] sm:$0xff]
        %v4384 = vld [vmem:[%s321 + $0xe8] sm:$0xff]
        %v4385 = vld [vmem:[%s321 + $0xf0] sm:$0xff]
        %v4386 = vld [vmem:[%s321 + $0xf8] sm:$0xff]
        %v4387 = vadd.f32 %v4323, %v4355
        %v4388 = vadd.f32 %v4324, %v4356
        %v4389 = vadd.f32 %v4325, %v4357
        %v4390 = vadd.f32 %v4326, %v4358
        %v4391 = vadd.f32 %v4327, %v4359
        %v4392 = vadd.f32 %v4328, %v4360
        %v4393 = vadd.f32 %v4329, %v4361
        %v4394 = vadd.f32 %v4330, %v4362
        %v4395 = vadd.f32 %v4331, %v4363
        %v4396 = vadd.f32 %v4332, %v4364
        %v4397 = vadd.f32 %v4333, %v4365
        %v4398 = vadd.f32 %v4334, %v4366
        %v4399 = vadd.f32 %v4335, %v4367
        %v4400 = vadd.f32 %v4336, %v4368
        %v4401 = vadd.f32 %v4337, %v4369
        %v4402 = vadd.f32 %v4338, %v4370
        %v4403 = vadd.f32 %v4339, %v4371
        %v4404 = vadd.f32 %v4340, %v4372
        %v4405 = vadd.f32 %v4341, %v4373
        %v4406 = vadd.f32 %v4342, %v4374
        %v4407 = vadd.f32 %v4343, %v4375
        %v4408 = vadd.f32 %v4344, %v4376
        %v4409 = vadd.f32 %v4345, %v4377
        %v4410 = vadd.f32 %v4346, %v4378
        %v4411 = vadd.f32 %v4347, %v4379
        %v4412 = vadd.f32 %v4348, %v4380
        %v4413 = vadd.f32 %v4349, %v4381
        %v4414 = vadd.f32 %v4350, %v4382
        %v4415 = vadd.f32 %v4351, %v4383
        %v4416 = vadd.f32 %v4352, %v4384
        %v4417 = vadd.f32 %v4353, %v4385
        %v4418 = vadd.f32 %v4354, %v4386
        %4419 = vst.msk [vmem:[%s375] sm:$0xff] %vm376, %v4387
        %4420 = vst.msk [vmem:[%s375 + $0x8] sm:$0xff] %vm376, %v4388
        %4421 = vst.msk [vmem:[%s375 + $0x10] sm:$0xff] %vm376, %v4389
        %4422 = vst.msk [vmem:[%s375 + $0x18] sm:$0xff] %vm376, %v4390
        %4423 = vst.msk [vmem:[%s375 + $0x20] sm:$0xff] %vm376, %v4391
        %4424 = vst.msk [vmem:[%s375 + $0x28] sm:$0xff] %vm376, %v4392
        %4425 = vst.msk [vmem:[%s375 + $0x30] sm:$0xff] %vm376, %v4393
        %4426 = vst.msk [vmem:[%s375 + $0x38] sm:$0xff] %vm376, %v4394
        %4427 = vst.msk [vmem:[%s375 + $0x40] sm:$0xff] %vm376, %v4395
        %4428 = vst.msk [vmem:[%s375 + $0x48] sm:$0xff] %vm376, %v4396
        %4429 = vst.msk [vmem:[%s375 + $0x50] sm:$0xff] %vm376, %v4397
        %4430 = vst.msk [vmem:[%s375 + $0x58] sm:$0xff] %vm376, %v4398
        %4431 = vst.msk [vmem:[%s375 + $0x60] sm:$0xff] %vm376, %v4399
        %4432 = vst.msk [vmem:[%s375 + $0x68] sm:$0xff] %vm376, %v4400
        %4433 = vst.msk [vmem:[%s375 + $0x70] sm:$0xff] %vm376, %v4401
        %4434 = vst.msk [vmem:[%s375 + $0x78] sm:$0xff] %vm376, %v4402
        %4435 = vst.msk [vmem:[%s375 + $0x80] sm:$0xff] %vm376, %v4403
        %4436 = vst.msk [vmem:[%s375 + $0x88] sm:$0xff] %vm376, %v4404
        %4437 = vst.msk [vmem:[%s375 + $0x90] sm:$0xff] %vm376, %v4405
        %4438 = vst.msk [vmem:[%s375 + $0x98] sm:$0xff] %vm376, %v4406
        %4439 = vst.msk [vmem:[%s375 + $0xa0] sm:$0xff] %vm376, %v4407
        %4440 = vst.msk [vmem:[%s375 + $0xa8] sm:$0xff] %vm376, %v4408
        %4441 = vst.msk [vmem:[%s375 + $0xb0] sm:$0xff] %vm376, %v4409
        %4442 = vst.msk [vmem:[%s375 + $0xb8] sm:$0xff] %vm376, %v4410
        %4443 = vst.msk [vmem:[%s375 + $0xc0] sm:$0xff] %vm376, %v4411
        %4444 = vst.msk [vmem:[%s375 + $0xc8] sm:$0xff] %vm376, %v4412
        %4445 = vst.msk [vmem:[%s375 + $0xd0] sm:$0xff] %vm376, %v4413
        %4446 = vst.msk [vmem:[%s375 + $0xd8] sm:$0xff] %vm376, %v4414
        %4447 = vst.msk [vmem:[%s375 + $0xe0] sm:$0xff] %vm376, %v4415
        %4448 = vst.msk [vmem:[%s375 + $0xe8] sm:$0xff] %vm376, %v4416
        %4449 = vst.msk [vmem:[%s375 + $0xf0] sm:$0xff] %vm376, %v4417
        %4450 = vst.msk [vmem:[%s375 + $0xf8] sm:$0xff] %vm376, %v4418
        %s4451 = sand.u32 %s187, 1
        %s4452 = scalar_lea.sflag [#allocation5], %s4451
        %s4453 = sand.u32 %s187, 1
        %s4454 = smul.addr %s4453, 256
        %s4455 = scalar_lea.vmem [#allocation15], %s4454
        // Predicated region
        $region77: #{tpu_custom_call.1} parent=47 // pred_check
          %p4456 = pneg %p197
        $region78: #{tpu_custom_call.1} parent=47 // pred_check_branch
          %4458 = sbr.rel (%p4456) target = $region80
        $region79: #{tpu_custom_call.1} parent=47 // pred_region
          %s4460 = ssub.s32 4096, 4096
          %4461 = vsyncadd %s4452, %s4460
          %s4462 = smul.addr %s27, 32
          %s4463 = smul.addr %s4462, 128
          %s4464 = scalar_lea.hbm %s7, %s4463
          %s4465 = sshll.u32 %s4455, 4
          %s4466 = int_to_ptr.vmem [resolvable:$true] %s4465
          %4471 = dma.vmem_to_hbm [thread:$0]  %s4466, 4096, %s4464, %s4452, 128, 128, 8
        $region80: #{tpu_custom_call.1} parent=47 // pred_fallthru
          _
      $region48: #{tpu_custom_call.1} parent=5 // pred_fallthru
        _
      %p4472 = scmp.le.s32.totalorder 2, %s22
      // Predicated region
      $region81: #{tpu_custom_call.1} parent=5 // pred_check
        %p4473 = pneg %p4472
      $region82: #{tpu_custom_call.1} parent=5 // pred_check_branch
        %4475 = sbr.rel (%p4473) target = $region84
      $region83: #{tpu_custom_call.1} parent=5 // pred_region
        %s4476 = ssub.s32 %s22, 2
        // Predicated region
        $region85: #{tpu_custom_call.1} parent=83 // pred_check
          %p4477 = pneg %p203
        $region86: #{tpu_custom_call.1} parent=83 // pred_check_branch
          %4479 = sbr.rel (%p4477) target = $region88
        $region87: #{tpu_custom_call.1} parent=83 // pred_region
          %s4480 = sand.u32 %s188, 1
          %s4481 = scalar_lea.sflag [#allocation5], %s4480
          %s4482 = sand.u32 %s188, 1
          %s4483 = smul.addr %s4482, 256
          %s4484 = scalar_lea.vmem [#allocation15], %s4483
          %4485 = dma.done %s4481, 4096
        $region88: #{tpu_custom_call.1} parent=83 // pred_fallthru
          _
      $region84: #{tpu_custom_call.1} parent=5 // pred_fallthru
        _
    $region6: #{tpu_custom_call.1} parent=1 // loop_footer
      %s26 = sadd.s32 1, %s22
    $region7: #{tpu_custom_call.1} parent=1 // loop_footer_branch
      %21 = sbr.rel target = $region3
    $region8: #{tpu_custom_call.1} parent=1 // loop_exit
      _
    %4486 = vsyncpa [#allocation4], 1
    %s4487 = scalar_lea.sflag [#allocation4], 1
    %4488 = vsyncpa %s4487, 1
    %4489 = vsyncpa [#allocation7], 1
    %4490 = vsyncpa [#allocation10], 1
    %4491 = vsyncpa [#allocation13], 1
    %4492 = vsyncpa [#allocation5], 1
    %s4493 = scalar_lea.sflag [#allocation5], 1
    %4494 = vsyncpa %s4493, 1

</llo_original>
